<compile_context>
chip_gen: v6e
topology: v6e:2x2x1
jax: 0.10.0
libtpu: 0.0.40
codegen_flags: <defaults>
</compile_context>

<pallas_src>
import functools

import jax
import jax.numpy as jnp
from jax.experimental import pallas as pl
from jax.experimental.pallas import tpu as pltpu


# ----------------------------- Pallas kernels -------------------------------

def _linear_relu_kernel(x_ref, w_ref, b_ref, o_ref):
    # y = relu(x @ w + b)   (im2col-convs and fc1); bias/ReLU fused in epilogue.
    y = jnp.dot(x_ref[...], w_ref[...], preferred_element_type=jnp.float32)
    o_ref[...] = jnp.maximum(y + b_ref[...], 0.0)


def _linear_logsoftmax_kernel(x_ref, w_ref, b_ref, o_ref, *, n_valid):
    # y = log_softmax(x @ w + b) over the first n_valid (un-padded) columns.
    y = jnp.dot(x_ref[...], w_ref[...], preferred_element_type=jnp.float32)
    y = y + b_ref[...]
    col = jax.lax.broadcasted_iota(jnp.int32, y.shape, 1)
    valid = col < n_valid
    ym = jnp.where(valid, y, jnp.float32(-1e30))
    m = jnp.max(ym, axis=-1, keepdims=True)
    lse = m + jnp.log(jnp.sum(jnp.where(valid, jnp.exp(ym - m), 0.0),
                              axis=-1, keepdims=True))
    o_ref[...] = y - lse


def _maxpool4_kernel(a_ref, b_ref, c_ref, d_ref, o_ref):
    # elementwise max over the four 2x2-window corners (lane-dense, 128-wide C)
    o_ref[...] = jnp.maximum(jnp.maximum(a_ref[...], b_ref[...]),
                             jnp.maximum(c_ref[...], d_ref[...]))


# ------------------------------ wrappers -------------------------------------

def _round_up(x, m):
    return (x + m - 1) // m * m


def _pallas_linear(x, w, b, kernel, *, tm):
    """x:(M,K), w:(K,N), b:(N,) -> (M, N_pad) with N_pad = round_up(N,128).

    M is tiled over a 'parallel' grid (double-buffered, TC-shardable); the
    output lane dim is padded to 128 so every store is unmasked.  Padded
    columns of w / b are zero, so padded outputs are exact zeros pre-activation.
    """
    M, K = x.shape
    Kw, N = w.shape
    assert K == Kw
    n_pad = _round_up(N, 128)
    if n_pad != N:
        w = jnp.pad(w, ((0, 0), (0, n_pad - N)))
        b = jnp.pad(b, (0, n_pad - N))
    tm_eff = min(tm, _round_up(M, 8))
    grid_m = pl.cdiv(M, tm_eff)

    cost = pl.CostEstimate(
        flops=2 * M * K * n_pad,
        transcendentals=0,
        bytes_accessed=4 * (M * K + K * n_pad + n_pad + M * n_pad),
    )
    return pl.pallas_call(
        kernel,
        grid=(grid_m,),
        out_shape=jax.ShapeDtypeStruct((M, n_pad), jnp.float32),
        in_specs=[
            pl.BlockSpec((tm_eff, K), lambda i: (i, 0)),
            pl.BlockSpec((K, n_pad), lambda i: (0, 0)),
            pl.BlockSpec((1, n_pad), lambda i: (0, 0)),
        ],
        out_specs=pl.BlockSpec((tm_eff, n_pad), lambda i: (i, 0)),
        compiler_params=pltpu.CompilerParams(
            dimension_semantics=("parallel",)),
        cost_estimate=cost,
    )(x, w, b.reshape(1, n_pad))


def linear_relu(x, w, b, *, tm=512):
    return _pallas_linear(x, w, b, _linear_relu_kernel, tm=tm)


def linear_logsoftmax(x, w, b, *, tm=256):
    kernel = functools.partial(_linear_logsoftmax_kernel, n_valid=w.shape[1])
    return _pallas_linear(x, w, b, kernel, tm=tm)


def maxpool2x2(x_nhwc, *, tm=512):
    """2x2/stride-2 max pool on NHWC with a lane-dense (C multiple of 128) channel axis.

    The corner slices are XLA glue; the max runs in a Pallas kernel tiled over
    rows with 'parallel' semantics.
    """
    N, H, W, C = x_nhwc.shape
    OH, OW = H // 2, W // 2
    a = x_nhwc[:, 0::2, 0::2, :].reshape(-1, C)
    b = x_nhwc[:, 0::2, 1::2, :].reshape(-1, C)
    c = x_nhwc[:, 1::2, 0::2, :].reshape(-1, C)
    d = x_nhwc[:, 1::2, 1::2, :].reshape(-1, C)
    M = a.shape[0]
    tm_eff = min(tm, _round_up(M, 8))
    out = pl.pallas_call(
        _maxpool4_kernel,
        grid=(pl.cdiv(M, tm_eff),),
        out_shape=jax.ShapeDtypeStruct((M, C), jnp.float32),
        in_specs=[pl.BlockSpec((tm_eff, C), lambda i: (i, 0))] * 4,
        out_specs=pl.BlockSpec((tm_eff, C), lambda i: (i, 0)),
        compiler_params=pltpu.CompilerParams(
            dimension_semantics=("parallel",)),
    )(a, b, c, d)
    return out.reshape(N, OH, OW, C)


def im2col_nhwc(x_nhwc, k):
    """NHWC -> (N*OH*OW, k*k*C) patches, flattened in (kh, kw, c) order."""
    N, H, W, C = x_nhwc.shape
    OH, OW = H - k + 1, W - k + 1
    cols = []
    for di in range(k):
        for dj in range(k):
            cols.append(x_nhwc[:, di:di + OH, dj:dj + OW, :])     # (N, OH, OW, C)
    p = jnp.stack(cols, axis=3)                                   # (N, OH, OW, k*k, C)
    return p.reshape(N * OH * OW, k * k * C)


# ------------------------------ Net forward ----------------------------------

def net_forward(x, params):
    """x: (N, 3, 32, 32) float32 -> (N, 10) log-probabilities."""
    w1, b1, w2, b2, wf1, bf1, wf2, bf2 = params
    N = x.shape[0]

    # NCHW -> NHWC once up front: channels on the lane axis for the whole net.
    x_nhwc = x.transpose(0, 2, 3, 1)                              # (N, 32, 32, 3)

    # conv1 (3->20, k=5) + bias + ReLU, output lane-padded to 128 channels.
    p1 = im2col_nhwc(x_nhwc, 5)                                   # (N*784, 75)
    w1_mat = w1.transpose(2, 3, 1, 0).reshape(3 * 5 * 5, 20)      # (kh,kw,c) x out
    y1 = linear_relu(p1, w1_mat, b1, tm=512)                      # (N*784, 128)
    y1 = maxpool2x2(y1.reshape(N, 28, 28, 128))                   # (N, 14, 14, 128)
    y1 = y1[..., :20]                                             # drop padded channels

    # conv2 (20->50, k=5) + bias + ReLU; patches stay in (kh,kw,c) NHWC order,
    # so no NHWC->NCHW transpose is needed (weight permutation is trace-time glue).
    p2 = im2col_nhwc(y1, 5)                                       # (N*100, 500)
    w2_mat = w2.transpose(2, 3, 1, 0).reshape(20 * 5 * 5, 50)
    y2 = linear_relu(p2, w2_mat, b2, tm=256)                      # (N*100, 128)
    y2 = maxpool2x2(y2.reshape(N, 10, 10, 128))                   # (N, 5, 5, 128)
    y2 = y2[..., :50]                                             # (N, 5, 5, 50)

    # flatten exactly like torch's x.view(-1, 5*5*50) on NCHW
    flat = y2.transpose(0, 3, 1, 2).reshape(N, 50 * 5 * 5)        # (N, 1250)

    # fc1: pad K 1250->1280 (weights + activations) and N 500->512 (inside the
    # wrapper) so MXU tiles are full and vector loads are aligned.
    flat_p = jnp.pad(flat, ((0, 0), (0, 30)))                     # (N, 1280)
    wf1_p = jnp.pad(wf1, ((0, 30), (0, 0)))                       # (1280, 500)
    h = linear_relu(flat_p, wf1_p, bf1, tm=256)                   # (N, 512); cols 500.. are 0

    # fc2 + log_softmax fused; padded K rows of wf2 are zero (h padding is zero too),
    # padded logits are masked inside the kernel.
    wf2_p = jnp.pad(wf2, ((0, 12), (0, 0)))                       # (512, 10)
    out = linear_logsoftmax(h, wf2_p, bf2, tm=256)                # (N, 128)
    return out[:, :10]


# ------------------------- pure-JAX reference (check) ------------------------

def reference_forward(x, params):
    w1, b1, w2, b2, wf1, bf1, wf2, bf2 = params
    dn = ("NCHW", "OIHW", "NCHW")
    y = jax.lax.conv_general_dilated(x, w1, (1, 1), "VALID", dimension_numbers=dn)
    y = jnp.maximum(y + b1[None, :, None, None], 0.0)
    y = jax.lax.reduce_window(y, -jnp.inf, jax.lax.max, (1, 1, 2, 2), (1, 1, 2, 2), "VALID")
    y = jax.lax.conv_general_dilated(y, w2, (1, 1), "VALID", dimension_numbers=dn)
    y = jnp.maximum(y + b2[None, :, None, None], 0.0)
    y = jax.lax.reduce_window(y, -jnp.inf, jax.lax.max, (1, 1, 2, 2), (1, 1, 2, 2), "VALID")
    y = y.reshape(x.shape[0], -1)
    y = jnp.maximum(y @ wf1 + bf1, 0.0)
    y = y @ wf2 + bf2
    return jax.nn.log_softmax(y, axis=1)


# --------------------------------- main ---------------------------------------

def init_params(key):
    ks = jax.random.split(key, 8)

    def u(k, shape, fan_in):
        bound = 1.0 / jnp.sqrt(fan_in)
        return jax.random.uniform(k, shape, jnp.float32, -bound, bound)

    w1 = u(ks[0], (20, 3, 5, 5), 3 * 25)
    b1 = u(ks[1], (20,), 3 * 25)
    w2 = u(ks[2], (50, 20, 5, 5), 20 * 25)
    b2 = u(ks[3], (50,), 20 * 25)
    wf1 = u(ks[4], (1250, 500), 1250)     # stored as (in, out) = torch_W.T
    bf1 = u(ks[5], (500,), 1250)
    wf2 = u(ks[6], (500, 10), 500)
    bf2 = u(ks[7], (10,), 500)
    return (w1, b1, w2, b2, wf1, bf1, wf2, bf2)


if __name__ == "__main__":
    key = jax.random.PRNGKey(0)
    kx, kp = jax.random.split(key)
    # batch=2, 3 channels, 32x32 spatial (required so the flatten is 5*5*50 = 1250)
    x = jax.random.normal(kx, (2, 3, 32, 32), dtype=jnp.float32)
    params = init_params(kp)

    out = jax.jit(net_forward)(x, params)
    out = jax.block_until_ready(out)

    ref = jax.block_until_ready(jax.jit(reference_forward)(x, params))
    assert out.shape == (2, 10)
    assert jnp.allclose(out, ref, atol=1e-4, rtol=1e-4), "mismatch vs pure-JAX reference"

    print("KERNEL_OK")
</pallas_src>

<mosaic_0001>
module attributes {stable_mosaic.version = 11 : i64} {
  func.func @_linear_relu_kernel(%arg0: i32, %arg1: memref<512x75xf32, #tpu.memory_space<vmem>>, %arg2: memref<75x128xf32, #tpu.memory_space<vmem>>, %arg3: memref<1x128xf32, #tpu.memory_space<vmem>>, %arg4: memref<512x128xf32, #tpu.memory_space<vmem>>) attributes {dimension_semantics = [#tpu.dimension_semantics<parallel>], iteration_bounds = array<i64: 4>, scalar_prefetch = 0 : i64, scratch_operands = 0 : i64, tpu.core_type = #tpu.core_type<tc>, window_params = [{transform_indices = @transform_0, window_bounds = array<i64: 512, 75>}, {pipeline_mode = #tpu.pipeline_mode<synchronous>, transform_indices = @transform_1, window_bounds = array<i64: 75, 128>}, {pipeline_mode = #tpu.pipeline_mode<synchronous>, transform_indices = @transform_2, window_bounds = array<i64: 1, 128>}, {transform_indices = @transform_3, window_bounds = array<i64: 512, 128>}]} {
    %c0 = arith.constant 0 : index
    %c0_0 = arith.constant 0 : index
    %0 = vector.load %arg1[%c0, %c0_0] : memref<512x75xf32, #tpu.memory_space<vmem>>, vector<512x75xf32>
    %c0_1 = arith.constant 0 : index
    %c0_2 = arith.constant 0 : index
    %1 = vector.load %arg2[%c0_1, %c0_2] : memref<75x128xf32, #tpu.memory_space<vmem>>, vector<75x128xf32>
    %cst = arith.constant dense<0.000000e+00> : vector<512x128xf32>
    %2 = tpu.matmul %0, %1, %cst {dimension_numbers = #tpu.dot_dimension_numbers<[1], [0], [0], [1], [0, 0, 1, 1], [], []>} : vector<512x75xf32>, vector<75x128xf32>, vector<512x128xf32> -> vector<512x128xf32>
    %c0_3 = arith.constant 0 : index
    %c0_4 = arith.constant 0 : index
    %3 = vector.load %arg3[%c0_3, %c0_4] : memref<1x128xf32, #tpu.memory_space<vmem>>, vector<1x128xf32>
    %4 = vector.broadcast %3 : vector<1x128xf32> to vector<512x128xf32>
    %5 = arith.addf %2, %4 : vector<512x128xf32>
    %cst_5 = arith.constant 0.000000e+00 : f32
    %6 = vector.broadcast %cst_5 : f32 to vector<512x128xf32>
    %7 = arith.maximumf %5, %6 : vector<512x128xf32>
    %c0_6 = arith.constant 0 : index
    %c0_7 = arith.constant 0 : index
    %8 = vector.load %arg4[%c0_6, %c0_7] : memref<512x128xf32, #tpu.memory_space<vmem>>, vector<512x128xf32>
    tpu.vector_store %arg4[%c0_6, %c0_7], %7 {strides = array<i32>} : memref<512x128xf32, #tpu.memory_space<vmem>>, vector<512x128xf32>,
    return
  }
  func.func @transform_0(%arg0: i32) -> (i32, i32) {
    %c0_i32 = arith.constant 0 : i32
    %c0_i32_0 = arith.constant 0 : i32
    return %arg0, %c0_i32 : i32, i32
  }
  func.func @transform_1(%arg0: i32) -> (i32, i32) {
    %c0_i32 = arith.constant 0 : i32
    %c0_i32_0 = arith.constant 0 : i32
    %c0_i32_1 = arith.constant 0 : i32
    return %c0_i32, %c0_i32_0 : i32, i32
  }
  func.func @transform_2(%arg0: i32) -> (i32, i32) {
    %c0_i32 = arith.constant 0 : i32
    %c0_i32_0 = arith.constant 0 : i32
    %c0_i32_1 = arith.constant 0 : i32
    return %c0_i32, %c0_i32_0 : i32, i32
  }
  func.func @transform_3(%arg0: i32) -> (i32, i32) {
    %c0_i32 = arith.constant 0 : i32
    %c0_i32_0 = arith.constant 0 : i32
    return %arg0, %c0_i32 : i32, i32
  }
}

module attributes {stable_mosaic.version = 11 : i64} {
  func.func @_maxpool4_kernel(%arg0: i32, %arg1: memref<392x128xf32, #tpu.memory_space<vmem>>, %arg2: memref<392x128xf32, #tpu.memory_space<vmem>>, %arg3: memref<392x128xf32, #tpu.memory_space<vmem>>, %arg4: memref<392x128xf32, #tpu.memory_space<vmem>>, %arg5: memref<392x128xf32, #tpu.memory_space<vmem>>) attributes {dimension_semantics = [#tpu.dimension_semantics<parallel>], iteration_bounds = array<i64: 1>, scalar_prefetch = 0 : i64, scratch_operands = 0 : i64, tpu.core_type = #tpu.core_type<tc>, window_params = [{transform_indices = @transform_0, window_bounds = array<i64: 392, 128>}, {transform_indices = @transform_1, window_bounds = array<i64: 392, 128>}, {transform_indices = @transform_2, window_bounds = array<i64: 392, 128>}, {transform_indices = @transform_3, window_bounds = array<i64: 392, 128>}, {transform_indices = @transform_4, window_bounds = array<i64: 392, 128>}]} {
    %c0 = arith.constant 0 : index
    %c0_0 = arith.constant 0 : index
    %0 = vector.load %arg1[%c0, %c0_0] : memref<392x128xf32, #tpu.memory_space<vmem>>, vector<392x128xf32>
    %c0_1 = arith.constant 0 : index
    %c0_2 = arith.constant 0 : index
    %1 = vector.load %arg2[%c0_1, %c0_2] : memref<392x128xf32, #tpu.memory_space<vmem>>, vector<392x128xf32>
    %2 = arith.maximumf %0, %1 : vector<392x128xf32>
    %c0_3 = arith.constant 0 : index
    %c0_4 = arith.constant 0 : index
    %3 = vector.load %arg3[%c0_3, %c0_4] : memref<392x128xf32, #tpu.memory_space<vmem>>, vector<392x128xf32>
    %c0_5 = arith.constant 0 : index
    %c0_6 = arith.constant 0 : index
    %4 = vector.load %arg4[%c0_5, %c0_6] : memref<392x128xf32, #tpu.memory_space<vmem>>, vector<392x128xf32>
    %5 = arith.maximumf %3, %4 : vector<392x128xf32>
    %6 = arith.maximumf %2, %5 : vector<392x128xf32>
    %c0_7 = arith.constant 0 : index
    %c0_8 = arith.constant 0 : index
    %7 = vector.load %arg5[%c0_7, %c0_8] : memref<392x128xf32, #tpu.memory_space<vmem>>, vector<392x128xf32>
    tpu.vector_store %arg5[%c0_7, %c0_8], %6 {strides = array<i32>} : memref<392x128xf32, #tpu.memory_space<vmem>>, vector<392x128xf32>,
    return
  }
  func.func @transform_0(%arg0: i32) -> (i32, i32) {
    %c0_i32 = arith.constant 0 : i32
    %c0_i32_0 = arith.constant 0 : i32
    return %arg0, %c0_i32 : i32, i32
  }
  func.func @transform_1(%arg0: i32) -> (i32, i32) {
    %c0_i32 = arith.constant 0 : i32
    %c0_i32_0 = arith.constant 0 : i32
    return %arg0, %c0_i32 : i32, i32
  }
  func.func @transform_2(%arg0: i32) -> (i32, i32) {
    %c0_i32 = arith.constant 0 : i32
    %c0_i32_0 = arith.constant 0 : i32
    return %arg0, %c0_i32 : i32, i32
  }
  func.func @transform_3(%arg0: i32) -> (i32, i32) {
    %c0_i32 = arith.constant 0 : i32
    %c0_i32_0 = arith.constant 0 : i32
    return %arg0, %c0_i32 : i32, i32
  }
  func.func @transform_4(%arg0: i32) -> (i32, i32) {
    %c0_i32 = arith.constant 0 : i32
    %c0_i32_0 = arith.constant 0 : i32
    return %arg0, %c0_i32 : i32, i32
  }
}

module attributes {stable_mosaic.version = 11 : i64} {
  func.func @_linear_relu_kernel(%arg0: i32, %arg1: memref<200x500xf32, #tpu.memory_space<vmem>>, %arg2: memref<500x128xf32, #tpu.memory_space<vmem>>, %arg3: memref<1x128xf32, #tpu.memory_space<vmem>>, %arg4: memref<200x128xf32, #tpu.memory_space<vmem>>) attributes {dimension_semantics = [#tpu.dimension_semantics<parallel>], iteration_bounds = array<i64: 1>, scalar_prefetch = 0 : i64, scratch_operands = 0 : i64, tpu.core_type = #tpu.core_type<tc>, window_params = [{transform_indices = @transform_0, window_bounds = array<i64: 200, 500>}, {pipeline_mode = #tpu.pipeline_mode<synchronous>, transform_indices = @transform_1, window_bounds = array<i64: 500, 128>}, {pipeline_mode = #tpu.pipeline_mode<synchronous>, transform_indices = @transform_2, window_bounds = array<i64: 1, 128>}, {transform_indices = @transform_3, window_bounds = array<i64: 200, 128>}]} {
    %c0 = arith.constant 0 : index
    %c0_0 = arith.constant 0 : index
    %0 = vector.load %arg1[%c0, %c0_0] : memref<200x500xf32, #tpu.memory_space<vmem>>, vector<200x500xf32>
    %c0_1 = arith.constant 0 : index
    %c0_2 = arith.constant 0 : index
    %1 = vector.load %arg2[%c0_1, %c0_2] : memref<500x128xf32, #tpu.memory_space<vmem>>, vector<500x128xf32>
    %cst = arith.constant dense<0.000000e+00> : vector<200x128xf32>
    %2 = tpu.matmul %0, %1, %cst {dimension_numbers = #tpu.dot_dimension_numbers<[1], [0], [0], [1], [0, 0, 1, 1], [], []>} : vector<200x500xf32>, vector<500x128xf32>, vector<200x128xf32> -> vector<200x128xf32>
    %c0_3 = arith.constant 0 : index
    %c0_4 = arith.constant 0 : index
    %3 = vector.load %arg3[%c0_3, %c0_4] : memref<1x128xf32, #tpu.memory_space<vmem>>, vector<1x128xf32>
    %4 = vector.broadcast %3 : vector<1x128xf32> to vector<200x128xf32>
    %5 = arith.addf %2, %4 : vector<200x128xf32>
    %cst_5 = arith.constant 0.000000e+00 : f32
    %6 = vector.broadcast %cst_5 : f32 to vector<200x128xf32>
    %7 = arith.maximumf %5, %6 : vector<200x128xf32>
    %c0_6 = arith.constant 0 : index
    %c0_7 = arith.constant 0 : index
    %8 = vector.load %arg4[%c0_6, %c0_7] : memref<200x128xf32, #tpu.memory_space<vmem>>, vector<200x128xf32>
    tpu.vector_store %arg4[%c0_6, %c0_7], %7 {strides = array<i32>} : memref<200x128xf32, #tpu.memory_space<vmem>>, vector<200x128xf32>,
    return
  }
  func.func @transform_0(%arg0: i32) -> (i32, i32) {
    %c0_i32 = arith.constant 0 : i32
    %c0_i32_0 = arith.constant 0 : i32
    return %arg0, %c0_i32 : i32, i32
  }
  func.func @transform_1(%arg0: i32) -> (i32, i32) {
    %c0_i32 = arith.constant 0 : i32
    %c0_i32_0 = arith.constant 0 : i32
    %c0_i32_1 = arith.constant 0 : i32
    return %c0_i32, %c0_i32_0 : i32, i32
  }
  func.func @transform_2(%arg0: i32) -> (i32, i32) {
    %c0_i32 = arith.constant 0 : i32
    %c0_i32_0 = arith.constant 0 : i32
    %c0_i32_1 = arith.constant 0 : i32
    return %c0_i32, %c0_i32_0 : i32, i32
  }
  func.func @transform_3(%arg0: i32) -> (i32, i32) {
    %c0_i32 = arith.constant 0 : i32
    %c0_i32_0 = arith.constant 0 : i32
    return %arg0, %c0_i32 : i32, i32
  }
}

module attributes {stable_mosaic.version = 11 : i64} {
  func.func @_maxpool4_kernel(%arg0: i32, %arg1: memref<56x128xf32, #tpu.memory_space<vmem>>, %arg2: memref<56x128xf32, #tpu.memory_space<vmem>>, %arg3: memref<56x128xf32, #tpu.memory_space<vmem>>, %arg4: memref<56x128xf32, #tpu.memory_space<vmem>>, %arg5: memref<56x128xf32, #tpu.memory_space<vmem>>) attributes {dimension_semantics = [#tpu.dimension_semantics<parallel>], iteration_bounds = array<i64: 1>, scalar_prefetch = 0 : i64, scratch_operands = 0 : i64, tpu.core_type = #tpu.core_type<tc>, window_params = [{transform_indices = @transform_0, window_bounds = array<i64: 56, 128>}, {transform_indices = @transform_1, window_bounds = array<i64: 56, 128>}, {transform_indices = @transform_2, window_bounds = array<i64: 56, 128>}, {transform_indices = @transform_3, window_bounds = array<i64: 56, 128>}, {transform_indices = @transform_4, window_bounds = array<i64: 56, 128>}]} {
    %c0 = arith.constant 0 : index
    %c0_0 = arith.constant 0 : index
    %0 = vector.load %arg1[%c0, %c0_0] : memref<56x128xf32, #tpu.memory_space<vmem>>, vector<56x128xf32>
    %c0_1 = arith.constant 0 : index
    %c0_2 = arith.constant 0 : index
    %1 = vector.load %arg2[%c0_1, %c0_2] : memref<56x128xf32, #tpu.memory_space<vmem>>, vector<56x128xf32>
    %2 = arith.maximumf %0, %1 : vector<56x128xf32>
    %c0_3 = arith.constant 0 : index
    %c0_4 = arith.constant 0 : index
    %3 = vector.load %arg3[%c0_3, %c0_4] : memref<56x128xf32, #tpu.memory_space<vmem>>, vector<56x128xf32>
    %c0_5 = arith.constant 0 : index
    %c0_6 = arith.constant 0 : index
    %4 = vector.load %arg4[%c0_5, %c0_6] : memref<56x128xf32, #tpu.memory_space<vmem>>, vector<56x128xf32>
    %5 = arith.maximumf %3, %4 : vector<56x128xf32>
    %6 = arith.maximumf %2, %5 : vector<56x128xf32>
    %c0_7 = arith.constant 0 : index
    %c0_8 = arith.constant 0 : index
    %7 = vector.load %arg5[%c0_7, %c0_8] : memref<56x128xf32, #tpu.memory_space<vmem>>, vector<56x128xf32>
    tpu.vector_store %arg5[%c0_7, %c0_8], %6 {strides = array<i32>} : memref<56x128xf32, #tpu.memory_space<vmem>>, vector<56x128xf32>,
    return
  }
  func.func @transform_0(%arg0: i32) -> (i32, i32) {
    %c0_i32 = arith.constant 0 : i32
    %c0_i32_0 = arith.constant 0 : i32
    return %arg0, %c0_i32 : i32, i32
  }
  func.func @transform_1(%arg0: i32) -> (i32, i32) {
    %c0_i32 = arith.constant 0 : i32
    %c0_i32_0 = arith.constant 0 : i32
    return %arg0, %c0_i32 : i32, i32
  }
  func.func @transform_2(%arg0: i32) -> (i32, i32) {
    %c0_i32 = arith.constant 0 : i32
    %c0_i32_0 = arith.constant 0 : i32
    return %arg0, %c0_i32 : i32, i32
  }
  func.func @transform_3(%arg0: i32) -> (i32, i32) {
    %c0_i32 = arith.constant 0 : i32
    %c0_i32_0 = arith.constant 0 : i32
    return %arg0, %c0_i32 : i32, i32
  }
  func.func @transform_4(%arg0: i32) -> (i32, i32) {
    %c0_i32 = arith.constant 0 : i32
    %c0_i32_0 = arith.constant 0 : i32
    return %arg0, %c0_i32 : i32, i32
  }
}

module attributes {stable_mosaic.version = 11 : i64} {
  func.func @_linear_relu_kernel(%arg0: i32, %arg1: memref<8x1280xf32, #tpu.memory_space<vmem>>, %arg2: memref<1280x512xf32, #tpu.memory_space<vmem>>, %arg3: memref<1x512xf32, #tpu.memory_space<vmem>>, %arg4: memref<8x512xf32, #tpu.memory_space<vmem>>) attributes {dimension_semantics = [#tpu.dimension_semantics<parallel>], iteration_bounds = array<i64: 1>, scalar_prefetch = 0 : i64, scratch_operands = 0 : i64, tpu.core_type = #tpu.core_type<tc>, window_params = [{transform_indices = @transform_0, window_bounds = array<i64: 8, 1280>}, {pipeline_mode = #tpu.pipeline_mode<synchronous>, transform_indices = @transform_1, window_bounds = array<i64: 1280, 512>}, {pipeline_mode = #tpu.pipeline_mode<synchronous>, transform_indices = @transform_2, window_bounds = array<i64: 1, 512>}, {transform_indices = @transform_3, window_bounds = array<i64: 8, 512>}]} {
    %c0 = arith.constant 0 : index
    %c0_0 = arith.constant 0 : index
    %0 = vector.load %arg1[%c0, %c0_0] : memref<8x1280xf32, #tpu.memory_space<vmem>>, vector<8x1280xf32>
    %c0_1 = arith.constant 0 : index
    %c0_2 = arith.constant 0 : index
    %1 = vector.load %arg2[%c0_1, %c0_2] : memref<1280x512xf32, #tpu.memory_space<vmem>>, vector<1280x512xf32>
    %cst = arith.constant dense<0.000000e+00> : vector<8x512xf32>
    %2 = tpu.matmul %0, %1, %cst {dimension_numbers = #tpu.dot_dimension_numbers<[1], [0], [0], [1], [0, 0, 1, 1], [], []>} : vector<8x1280xf32>, vector<1280x512xf32>, vector<8x512xf32> -> vector<8x512xf32>
    %c0_3 = arith.constant 0 : index
    %c0_4 = arith.constant 0 : index
    %3 = vector.load %arg3[%c0_3, %c0_4] : memref<1x512xf32, #tpu.memory_space<vmem>>, vector<1x512xf32>
    %4 = vector.broadcast %3 : vector<1x512xf32> to vector<8x512xf32>
    %5 = arith.addf %2, %4 : vector<8x512xf32>
    %cst_5 = arith.constant 0.000000e+00 : f32
    %6 = vector.broadcast %cst_5 : f32 to vector<8x512xf32>
    %7 = arith.maximumf %5, %6 : vector<8x512xf32>
    %c0_6 = arith.constant 0 : index
    %c0_7 = arith.constant 0 : index
    %8 = vector.load %arg4[%c0_6, %c0_7] : memref<8x512xf32, #tpu.memory_space<vmem>>, vector<8x512xf32>
    tpu.vector_store %arg4[%c0_6, %c0_7], %7 {strides = array<i32>} : memref<8x512xf32, #tpu.memory_space<vmem>>, vector<8x512xf32>,
    return
  }
  func.func @transform_0(%arg0: i32) -> (i32, i32) {
    %c0_i32 = arith.constant 0 : i32
    %c0_i32_0 = arith.constant 0 : i32
    return %arg0, %c0_i32 : i32, i32
  }
  func.func @transform_1(%arg0: i32) -> (i32, i32) {
    %c0_i32 = arith.constant 0 : i32
    %c0_i32_0 = arith.constant 0 : i32
    %c0_i32_1 = arith.constant 0 : i32
    return %c0_i32, %c0_i32_0 : i32, i32
  }
  func.func @transform_2(%arg0: i32) -> (i32, i32) {
    %c0_i32 = arith.constant 0 : i32
    %c0_i32_0 = arith.constant 0 : i32
    %c0_i32_1 = arith.constant 0 : i32
    return %c0_i32, %c0_i32_0 : i32, i32
  }
  func.func @transform_3(%arg0: i32) -> (i32, i32) {
    %c0_i32 = arith.constant 0 : i32
    %c0_i32_0 = arith.constant 0 : i32
    return %arg0, %c0_i32 : i32, i32
  }
}

module attributes {stable_mosaic.version = 11 : i64} {
  func.func @_linear_logsoftmax_kernel(%arg0: i32, %arg1: memref<8x512xf32, #tpu.memory_space<vmem>>, %arg2: memref<512x128xf32, #tpu.memory_space<vmem>>, %arg3: memref<1x128xf32, #tpu.memory_space<vmem>>, %arg4: memref<8x128xf32, #tpu.memory_space<vmem>>) attributes {dimension_semantics = [#tpu.dimension_semantics<parallel>], iteration_bounds = array<i64: 1>, scalar_prefetch = 0 : i64, scratch_operands = 0 : i64, tpu.core_type = #tpu.core_type<tc>, window_params = [{transform_indices = @transform_0, window_bounds = array<i64: 8, 512>}, {pipeline_mode = #tpu.pipeline_mode<synchronous>, transform_indices = @transform_1, window_bounds = array<i64: 512, 128>}, {pipeline_mode = #tpu.pipeline_mode<synchronous>, transform_indices = @transform_2, window_bounds = array<i64: 1, 128>}, {transform_indices = @transform_3, window_bounds = array<i64: 8, 128>}]} {
    %c0 = arith.constant 0 : index
    %c0_0 = arith.constant 0 : index
    %0 = vector.load %arg1[%c0, %c0_0] : memref<8x512xf32, #tpu.memory_space<vmem>>, vector<8x512xf32>
    %c0_1 = arith.constant 0 : index
    %c0_2 = arith.constant 0 : index
    %1 = vector.load %arg2[%c0_1, %c0_2] : memref<512x128xf32, #tpu.memory_space<vmem>>, vector<512x128xf32>
    %cst = arith.constant dense<0.000000e+00> : vector<8x128xf32>
    %2 = tpu.matmul %0, %1, %cst {dimension_numbers = #tpu.dot_dimension_numbers<[1], [0], [0], [1], [0, 0, 1, 1], [], []>} : vector<8x512xf32>, vector<512x128xf32>, vector<8x128xf32> -> vector<8x128xf32>
    %c0_3 = arith.constant 0 : index
    %c0_4 = arith.constant 0 : index
    %3 = vector.load %arg3[%c0_3, %c0_4] : memref<1x128xf32, #tpu.memory_space<vmem>>, vector<1x128xf32>
    %4 = vector.broadcast %3 : vector<1x128xf32> to vector<8x128xf32>
    %5 = arith.addf %2, %4 : vector<8x128xf32>
    %6 = tpu.iota {dimensions = array<i32: 1>} : vector<8x128xi32>
    %c10_i32 = arith.constant 10 : i32
    %7 = vector.broadcast %c10_i32 : i32 to vector<8x128xi32>
    %8 = arith.cmpi slt, %6, %7 : vector<8x128xi32>
    %cst_5 = arith.constant -1.000000e+30 : f32
    %9 = vector.broadcast %cst_5 : f32 to vector<8x128xf32>
    %10 = arith.select %8, %5, %9 : vector<8x128xi1>, vector<8x128xf32>
    %cst_6 = arith.constant dense<0xFF800000> : vector<8xf32>
    %11 = vector.multi_reduction <maximumf>, %10, %cst_6 [1] : vector<8x128xf32> to vector<8xf32>
    %12 = vector.shape_cast %11 : vector<8xf32> to vector<8x1xf32>
    %13 = vector.broadcast %12 : vector<8x1xf32> to vector<8x128xf32>
    %14 = arith.subf %10, %13 : vector<8x128xf32>
    %15 = math.exp %14 : vector<8x128xf32>
    %cst_7 = arith.constant 0.000000e+00 : f32
    %16 = vector.broadcast %cst_7 : f32 to vector<8x128xf32>
    %17 = arith.select %8, %15, %16 : vector<8x128xi1>, vector<8x128xf32>
    %cst_8 = arith.constant dense<0.000000e+00> : vector<8xf32>
    %18 = vector.multi_reduction <add>, %17, %cst_8 [1] : vector<8x128xf32> to vector<8xf32>
    %19 = vector.shape_cast %18 : vector<8xf32> to vector<8x1xf32>
    %20 = math.log %19 : vector<8x1xf32>
    %21 = arith.addf %12, %20 : vector<8x1xf32>
    %22 = vector.broadcast %21 : vector<8x1xf32> to vector<8x128xf32>
    %23 = arith.subf %5, %22 : vector<8x128xf32>
    %c0_9 = arith.constant 0 : index
    %c0_10 = arith.constant 0 : index
    %24 = vector.load %arg4[%c0_9, %c0_10] : memref<8x128xf32, #tpu.memory_space<vmem>>, vector<8x128xf32>
    tpu.vector_store %arg4[%c0_9, %c0_10], %23 {strides = array<i32>} : memref<8x128xf32, #tpu.memory_space<vmem>>, vector<8x128xf32>,
    return
  }
  func.func @transform_0(%arg0: i32) -> (i32, i32) {
    %c0_i32 = arith.constant 0 : i32
    %c0_i32_0 = arith.constant 0 : i32
    return %arg0, %c0_i32 : i32, i32
  }
  func.func @transform_1(%arg0: i32) -> (i32, i32) {
    %c0_i32 = arith.constant 0 : i32
    %c0_i32_0 = arith.constant 0 : i32
    %c0_i32_1 = arith.constant 0 : i32
    return %c0_i32, %c0_i32_0 : i32, i32
  }
  func.func @transform_2(%arg0: i32) -> (i32, i32) {
    %c0_i32 = arith.constant 0 : i32
    %c0_i32_0 = arith.constant 0 : i32
    %c0_i32_1 = arith.constant 0 : i32
    return %c0_i32, %c0_i32_0 : i32, i32
  }
  func.func @transform_3(%arg0: i32) -> (i32, i32) {
    %c0_i32 = arith.constant 0 : i32
    %c0_i32_0 = arith.constant 0 : i32
    return %arg0, %c0_i32 : i32, i32
  }
}

</mosaic_0001>

<llo_original>
// kernel: net_forward.6
$region0: #{net_forward.6}
  #allocation0 [shape = 'u32[]', space=smem, size = 0x4, offset = 0x4, fixed_abs, tag = 'smem constant byte address 0x4 - core index']
  #allocation1 [shape = 'u32[144,128]{1,0:T(1,128)}', space=vmem, size = 0x12000, scoped, tag = 'internal scratch']
  %s0 = inlined_call_operand.vmem [shape: f32[1568,75], index: 0, kind: input, shape index: {}]
  %s1 = inlined_call_operand.vmem [shape: f32[75,128], index: 1, kind: input, shape index: {}]
  %s2 = inlined_call_operand.vmem [shape: f32[1,128], index: 2, kind: input, shape index: {}]
  %s3 = inlined_call_operand.vmem [shape: f32[1568,128], index: 3, kind: output, shape index: {}]
  %s4 = sld [smem:[#allocation0]]
  $region93: #{net_forward.6} parent=0
    _
  %s6 = ssub.s32 1, %s4
  %s7 = scalar_select 0, %s6, %s4
  $region1: #{net_forward.6} parent=0
    #allocation2 [shape = 'u8[524288]{0}', space=vmem, size = 0x80000, scoped, tag = 'output window, operand 0']
    loop: start=0, step=1, limit=6
    $region2: #{net_forward.6} parent=1 // loop_pre_header
      _
    $region3: #{net_forward.6} parent=1 // loop_header
      %s9 = sphi 0, %s13
      %p10 = scmp.ge.s32.totalorder %s9, 6
      %s19 = sphi 0, %s21
      %s22 = sphi 0, %s19
      %s23 = sphi 0, %s22
      %s39 = sphi 0, %s23
      %s43 = sphi 0, %s43
      %s45 = sphi 0, %s43
      %s46 = sphi 0, %s45
      %s60 = sphi 0, %s46
      %s64 = sphi 0, %s64
      %s66 = sphi 0, %s64
      %s67 = sphi 0, %s66
      %s81 = sphi 0, %s67
      %s87 = sphi 0, %s89
      %s90 = sphi 0, %s87
      %s91 = sphi 0, %s90
      %s107 = sphi 0, %s91
    $region4: #{net_forward.6} parent=1 // loop_header_branch
      %12 = sbr.rel (%p10) target = $region8
    $region5: #{net_forward.6} parent=1 // loop_body
      %s14 = ssub.s32 %s9, 1
      %s15 = ssub.s32 %s9, 2
      %s16 = sadd.s32 %s9, 1
      %s17 = ssub.s32 %s9, %s16
      %p18 = scmp.eq.s32.totalorder %s17, 0
      %s20 = sadd.s32 %s19, 1
      %s21 = scalar_select %p18, %s19, %s20
      %p24 = pneg %p18
      %p25 = scmp.eq.s32.totalorder %s9, 3
      %p26 = por %p24, %p25
      %p27 = scmp.ne.s32.totalorder %s19, %s22
      %p28 = scmp.eq.s32.totalorder %s9, 0
      %p29 = por %p27, %p28
      %p30 = scmp.ne.s32.totalorder %s19, %s22
      %p31 = scmp.eq.s32.totalorder %s14, 3
      %p32 = por %p30, %p31
      %p33 = scmp.ne.s32.totalorder %s22, %s23
      %p34 = scmp.eq.s32.totalorder %s14, 0
      %p35 = por %p33, %p34
      %p36 = scmp.ne.s32.totalorder %s22, %s23
      %p37 = scmp.eq.s32.totalorder %s15, 3
      %p38 = por %p36, %p37
      %p40 = scmp.ne.s32.totalorder %s23, %s39
      %p41 = scmp.eq.s32.totalorder %s15, 0
      %p42 = por %p40, %p41
      %s44 = sadd.s32 %s43, 1
      %p47 = scmp.eq.s32.totalorder %s9, 3
      %p48 = scmp.ne.s32.totalorder %s43, %s45
      %p49 = scmp.eq.s32.totalorder %s9, 0
      %p50 = por %p48, %p49
      %p51 = scmp.ne.s32.totalorder %s43, %s45
      %p52 = scmp.eq.s32.totalorder %s14, 3
      %p53 = por %p51, %p52
      %p54 = scmp.ne.s32.totalorder %s45, %s46
      %p55 = scmp.eq.s32.totalorder %s14, 0
      %p56 = por %p54, %p55
      %p57 = scmp.ne.s32.totalorder %s45, %s46
      %p58 = scmp.eq.s32.totalorder %s15, 3
      %p59 = por %p57, %p58
      %p61 = scmp.ne.s32.totalorder %s46, %s60
      %p62 = scmp.eq.s32.totalorder %s15, 0
      %p63 = por %p61, %p62
      %s65 = sadd.s32 %s64, 1
      %p68 = scmp.eq.s32.totalorder %s9, 3
      %p69 = scmp.ne.s32.totalorder %s64, %s66
      %p70 = scmp.eq.s32.totalorder %s9, 0
      %p71 = por %p69, %p70
      %p72 = scmp.ne.s32.totalorder %s64, %s66
      %p73 = scmp.eq.s32.totalorder %s14, 3
      %p74 = por %p72, %p73
      %p75 = scmp.ne.s32.totalorder %s66, %s67
      %p76 = scmp.eq.s32.totalorder %s14, 0
      %p77 = por %p75, %p76
      %p78 = scmp.ne.s32.totalorder %s66, %s67
      %p79 = scmp.eq.s32.totalorder %s15, 3
      %p80 = por %p78, %p79
      %p82 = scmp.ne.s32.totalorder %s67, %s81
      %p83 = scmp.eq.s32.totalorder %s15, 0
      %p84 = por %p82, %p83
      %s85 = ssub.s32 %s9, %s16
      %p86 = scmp.eq.s32.totalorder %s85, 0
      %s88 = sadd.s32 %s87, 1
      %s89 = scalar_select %p86, %s87, %s88
      %p92 = pneg %p86
      %p93 = scmp.eq.s32.totalorder %s9, 3
      %p94 = por %p92, %p93
      %p95 = scmp.ne.s32.totalorder %s87, %s90
      %p96 = scmp.eq.s32.totalorder %s9, 0
      %p97 = por %p95, %p96
      %p98 = scmp.ne.s32.totalorder %s87, %s90
      %p99 = scmp.eq.s32.totalorder %s14, 3
      %p100 = por %p98, %p99
      %p101 = scmp.ne.s32.totalorder %s90, %s91
      %p102 = scmp.eq.s32.totalorder %s14, 0
      %p103 = por %p101, %p102
      %p104 = scmp.ne.s32.totalorder %s90, %s91
      %p105 = scmp.eq.s32.totalorder %s15, 3
      %p106 = por %p104, %p105
      %p108 = scmp.ne.s32.totalorder %s91, %s107
      %p109 = scmp.eq.s32.totalorder %s15, 0
      %p110 = por %p108, %p109
      %p111 = scmp.le.s32.totalorder 1, %s9
      %p112 = scmp.lt.s32.totalorder %s9, 5
      %p113 = pnand %p111, %p112
      %p114 = pneg %p113
      // Predicated region
      $region9: #{net_forward.6} parent=5 // pred_check
        _
      $region10: #{net_forward.6} parent=5 // pred_check_branch
        %116 = sbr.rel (%p113) target = $region12
      $region11: #{net_forward.6} parent=5 // pred_region
        %s117 = ssub.s32 %s9, 1
        // Predicated region
        $region13: #{net_forward.6} parent=11 // pred_check
          %p118 = pneg %p56
        $region14: #{net_forward.6} parent=11 // pred_check_branch
          %120 = sbr.rel (%p118) target = $region16
        $region15: #{net_forward.6} parent=11 // pred_region
          _
        $region16: #{net_forward.6} parent=11 // pred_fallthru
          _
        // Predicated region
        $region17: #{net_forward.6} parent=11 // pred_check
          %p121 = pneg %p77
        $region18: #{net_forward.6} parent=11 // pred_check_branch
          %123 = sbr.rel (%p121) target = $region20
        $region19: #{net_forward.6} parent=11 // pred_region
          _
        $region20: #{net_forward.6} parent=11 // pred_fallthru
          _
      $region12: #{net_forward.6} parent=5 // pred_fallthru
        _
      %p124 = scmp.lt.s32.totalorder %s9, 4
      // Predicated region
      $region21: #{net_forward.6} parent=5 // pred_check
        %p125 = pneg %p124
      $region22: #{net_forward.6} parent=5 // pred_check_branch
        %127 = sbr.rel (%p125) target = $region24
      $region23: #{net_forward.6} parent=5 // pred_region
        // Predicated region
        $region25: #{net_forward.6} parent=23 // pred_check
          %p128 = pneg %p29
        $region26: #{net_forward.6} parent=23 // pred_check_branch
          %130 = sbr.rel (%p128) target = $region28
        $region27: #{net_forward.6} parent=23 // pred_region
          %s131 = smul.u32 64, %s9
          %s132 = ssub.s32 196, %s131
          %p133 = scmp.lt.s32.totalorder %s132, 64
          %s134 = scalar_select %p133, %s132, 64
          %s135 = smul.u32 128, %s134
          %p136 = scmp.lt.s32.totalorder %s131, 195
          %s137 = scalar_select %p136, %s131, 195
          %s138 = smul.addr %s137, 8
          %s139 = scalar_lea.vmem %s0, %s138
          %s140 = smul.u32 64, %s9
          %s141 = ssub.s32 196, %s140
          %p142 = scmp.lt.s32.totalorder %s141, 64
          %s143 = scalar_select %p142, %s141, 64
          %s144 = smul.u32 128, %s143
        $region28: #{net_forward.6} parent=23 // pred_fallthru
          _
      $region24: #{net_forward.6} parent=5 // pred_fallthru
        _
      %p145 = scmp.le.s32.totalorder 1, %s9
      %p146 = scmp.lt.s32.totalorder %s9, 5
      %p147 = pnand %p145, %p146
      %p148 = pneg %p147
      // Predicated region
      $region29: #{net_forward.6} parent=5 // pred_check
        _
      $region30: #{net_forward.6} parent=5 // pred_check_branch
        %150 = sbr.rel (%p147) target = $region32
      $region31: #{net_forward.6} parent=5 // pred_region
        %s151 = ssub.s32 %s9, 1
        %s152 = smul.u32 64, %s14
        %s153 = ssub.s32 196, %s152
        %p154 = scmp.lt.s32.totalorder %s153, 64
        %s155 = scalar_select %p154, %s153, 64
        %s156 = smul.u32 128, %s155
        %p157 = scmp.lt.s32.totalorder %s152, 195
        %s158 = scalar_select %p157, %s152, 195
        %s159 = smul.addr %s158, 8
        %s160 = scalar_lea.vmem %s0, %s159
        %p161 = pneg %p35
        %p162 = pneg %p32
        %p163 = pneg %p56
        %p164 = pneg %p53
        %p165 = pneg %p77
        %p166 = pneg %p74
        %p167 = pneg %p103
        %p168 = pneg %p100
        %s169 = sand.u32 %s90, 1
        %s170 = sand.u32 %s90, 1
        %s171 = smul.addr %s170, 512
        %s172 = scalar_lea.vmem [#allocation2], %s171
        %s173 = smul.u32 64, %s14
        %s174 = ssub.s32 196, %s173
        %p175 = scmp.lt.s32.totalorder %s174, 64
        %s176 = scalar_select %p175, %s174, 64
        %s177 = smul.u32 128, %s176
        %p178 = scmp.lt.s32.totalorder %s173, 195
        %s179 = scalar_select %p178, %s173, 195
        %s180 = smul.addr %s179, 8
        %s181 = scalar_lea.vmem %s0, %s180
        %s182 = smul.u32 64, %s14
        %s183 = ssub.s32 196, %s182
        %p184 = scmp.lt.s32.totalorder %s183, 64
        %s185 = scalar_select %p184, %s183, 64
        %s186 = smul.u32 128, %s185
        %s187 = smul.u32 64, %s14
        %s188 = ssub.s32 196, %s187
        %p189 = scmp.lt.s32.totalorder %s188, 64
        %s190 = scalar_select %p189, %s188, 64
        %s191 = smul.u32 128, %s190
        %v192 = vld [vmem:[%s181] sm:$0xff]
        %v193 = vld [vmem:[%s181 + $0x8] sm:$0xff]
        %v194 = vld [vmem:[%s181 + $0x10] sm:$0xff]
        %v195 = vld [vmem:[%s181 + $0x18] sm:$0xff]
        %v196 = vld [vmem:[%s181 + $0x20] sm:$0xff]
        %v197 = vld [vmem:[%s181 + $0x28] sm:$0xff]
        %v198 = vld [vmem:[%s181 + $0x30] sm:$0xff]
        %v199 = vld [vmem:[%s181 + $0x38] sm:$0xff]
        %v200 = vld [vmem:[%s181 + $0x40] sm:$0xff]
        %v201 = vld [vmem:[%s181 + $0x48] sm:$0xff]
        %v202 = vld [vmem:[%s181 + $0x50] sm:$0xff]
        %v203 = vld [vmem:[%s181 + $0x58] sm:$0xff]
        %v204 = vld [vmem:[%s181 + $0x60] sm:$0xff]
        %v205 = vld [vmem:[%s181 + $0x68] sm:$0xff]
        %v206 = vld [vmem:[%s181 + $0x70] sm:$0xff]
        %v207 = vld [vmem:[%s181 + $0x78] sm:$0xff]
        %v208 = vld [vmem:[%s181 + $0x80] sm:$0xff]
        %v209 = vld [vmem:[%s181 + $0x88] sm:$0xff]
        %v210 = vld [vmem:[%s181 + $0x90] sm:$0xff]
        %v211 = vld [vmem:[%s181 + $0x98] sm:$0xff]
        %v212 = vld [vmem:[%s181 + $0xa0] sm:$0xff]
        %v213 = vld [vmem:[%s181 + $0xa8] sm:$0xff]
        %v214 = vld [vmem:[%s181 + $0xb0] sm:$0xff]
        %v215 = vld [vmem:[%s181 + $0xb8] sm:$0xff]
        %v216 = vld [vmem:[%s181 + $0xc0] sm:$0xff]
        %v217 = vld [vmem:[%s181 + $0xc8] sm:$0xff]
        %v218 = vld [vmem:[%s181 + $0xd0] sm:$0xff]
        %v219 = vld [vmem:[%s181 + $0xd8] sm:$0xff]
        %v220 = vld [vmem:[%s181 + $0xe0] sm:$0xff]
        %v221 = vld [vmem:[%s181 + $0xe8] sm:$0xff]
        %v222 = vld [vmem:[%s181 + $0xf0] sm:$0xff]
        %v223 = vld [vmem:[%s181 + $0xf8] sm:$0xff]
        %v224 = vld [vmem:[%s181 + $0x100] sm:$0xff]
        %v225 = vld [vmem:[%s181 + $0x108] sm:$0xff]
        %v226 = vld [vmem:[%s181 + $0x110] sm:$0xff]
        %v227 = vld [vmem:[%s181 + $0x118] sm:$0xff]
        %v228 = vld [vmem:[%s181 + $0x120] sm:$0xff]
        %v229 = vld [vmem:[%s181 + $0x128] sm:$0xff]
        %v230 = vld [vmem:[%s181 + $0x130] sm:$0xff]
        %v231 = vld [vmem:[%s181 + $0x138] sm:$0xff]
        %v232 = vld [vmem:[%s181 + $0x140] sm:$0xff]
        %v233 = vld [vmem:[%s181 + $0x148] sm:$0xff]
        %v234 = vld [vmem:[%s181 + $0x150] sm:$0xff]
        %v235 = vld [vmem:[%s181 + $0x158] sm:$0xff]
        %v236 = vld [vmem:[%s181 + $0x160] sm:$0xff]
        %v237 = vld [vmem:[%s181 + $0x168] sm:$0xff]
        %v238 = vld [vmem:[%s181 + $0x170] sm:$0xff]
        %v239 = vld [vmem:[%s181 + $0x178] sm:$0xff]
        %v240 = vld [vmem:[%s181 + $0x180] sm:$0xff]
        %v241 = vld [vmem:[%s181 + $0x188] sm:$0xff]
        %v242 = vld [vmem:[%s181 + $0x190] sm:$0xff]
        %v243 = vld [vmem:[%s181 + $0x198] sm:$0xff]
        %v244 = vld [vmem:[%s181 + $0x1a0] sm:$0xff]
        %v245 = vld [vmem:[%s181 + $0x1a8] sm:$0xff]
        %v246 = vld [vmem:[%s181 + $0x1b0] sm:$0xff]
        %v247 = vld [vmem:[%s181 + $0x1b8] sm:$0xff]
        %v248 = vld [vmem:[%s181 + $0x1c0] sm:$0xff]
        %v249 = vld [vmem:[%s181 + $0x1c8] sm:$0xff]
        %v250 = vld [vmem:[%s181 + $0x1d0] sm:$0xff]
        %v251 = vld [vmem:[%s181 + $0x1d8] sm:$0xff]
        %v252 = vld [vmem:[%s181 + $0x1e0] sm:$0xff]
        %v253 = vld [vmem:[%s181 + $0x1e8] sm:$0xff]
        %v254 = vld [vmem:[%s181 + $0x1f0] sm:$0xff]
        %v255 = vld [vmem:[%s181 + $0x1f8] sm:$0xff]
        %v256 = vld [vmem:[%s1] sm:$0xff]
        %v257 = vld [vmem:[%s1 + $0x8] sm:$0xff]
        %v258 = vld [vmem:[%s1 + $0x10] sm:$0xff]
        %v259 = vld [vmem:[%s1 + $0x18] sm:$0xff]
        %v260 = vld [vmem:[%s1 + $0x20] sm:$0xff]
        %v261 = vld [vmem:[%s1 + $0x28] sm:$0xff]
        %v262 = vld [vmem:[%s1 + $0x30] sm:$0xff]
        %v263 = vld [vmem:[%s1 + $0x38] sm:$0xff]
        %v264 = vld [vmem:[%s1 + $0x40] sm:$0xff]
        %v265 = vld [vmem:[%s1 + $0x48] sm:$0x7]
        %v266 = vld [vmem:[%s2] sm:$0x1]
        %v268 = vlaneseq
        %v269 = vshrl.u32 %v268, 7
        %v270 = vsub.s32 0, %v269
        %v271 = vrot.slane %v266, %v270
        %vm273 = vcmask 613376
        %v275 = vsel %vm273, %v192, 0
        %v278 = vsel %vm273, %v193, 0
        %v281 = vsel %vm273, %v194, 0
        %v284 = vsel %vm273, %v195, 0
        %v287 = vsel %vm273, %v196, 0
        %v290 = vsel %vm273, %v197, 0
        %v293 = vsel %vm273, %v198, 0
        %v296 = vsel %vm273, %v199, 0
        %v299 = vsel %vm273, %v200, 0
        %v302 = vsel %vm273, %v201, 0
        %v305 = vsel %vm273, %v202, 0
        %v308 = vsel %vm273, %v203, 0
        %v311 = vsel %vm273, %v204, 0
        %v314 = vsel %vm273, %v205, 0
        %v317 = vsel %vm273, %v206, 0
        %v320 = vsel %vm273, %v207, 0
        %v323 = vsel %vm273, %v208, 0
        %v326 = vsel %vm273, %v209, 0
        %v329 = vsel %vm273, %v210, 0
        %v332 = vsel %vm273, %v211, 0
        %v335 = vsel %vm273, %v212, 0
        %v338 = vsel %vm273, %v213, 0
        %v341 = vsel %vm273, %v214, 0
        %v344 = vsel %vm273, %v215, 0
        %v347 = vsel %vm273, %v216, 0
        %v350 = vsel %vm273, %v217, 0
        %v353 = vsel %vm273, %v218, 0
        %v356 = vsel %vm273, %v219, 0
        %v359 = vsel %vm273, %v220, 0
        %v362 = vsel %vm273, %v221, 0
        %v365 = vsel %vm273, %v222, 0
        %v368 = vsel %vm273, %v223, 0
        %v371 = vsel %vm273, %v224, 0
        %v374 = vsel %vm273, %v225, 0
        %v377 = vsel %vm273, %v226, 0
        %v380 = vsel %vm273, %v227, 0
        %v383 = vsel %vm273, %v228, 0
        %v386 = vsel %vm273, %v229, 0
        %v389 = vsel %vm273, %v230, 0
        %v392 = vsel %vm273, %v231, 0
        %v395 = vsel %vm273, %v232, 0
        %v398 = vsel %vm273, %v233, 0
        %v401 = vsel %vm273, %v234, 0
        %v404 = vsel %vm273, %v235, 0
        %v407 = vsel %vm273, %v236, 0
        %v410 = vsel %vm273, %v237, 0
        %v413 = vsel %vm273, %v238, 0
        %v416 = vsel %vm273, %v239, 0
        %v419 = vsel %vm273, %v240, 0
        %v422 = vsel %vm273, %v241, 0
        %v425 = vsel %vm273, %v242, 0
        %v428 = vsel %vm273, %v243, 0
        %v431 = vsel %vm273, %v244, 0
        %v434 = vsel %vm273, %v245, 0
        %v437 = vsel %vm273, %v246, 0
        %v440 = vsel %vm273, %v247, 0
        %v443 = vsel %vm273, %v248, 0
        %v446 = vsel %vm273, %v249, 0
        %v449 = vsel %vm273, %v250, 0
        %v452 = vsel %vm273, %v251, 0
        %v455 = vsel %vm273, %v252, 0
        %v458 = vsel %vm273, %v253, 0
        %v461 = vsel %vm273, %v254, 0
        %v464 = vsel %vm273, %v255, 0
        %vm466 = vcmask 1042432
        %v468 = vsel %vm466, %v265, 0
        %470 = vmatprep.subr.mxu0 0.0
        %471 = vmatpush1.msra.mxu0 0.0
        %472 = vmatprep.subr.mxu0 0.0
        %473 = vmatpush1.msra.mxu0 0.0
        %474 = vmatprep.subr.mxu0 0.0
        %475 = vmatpush1.msra.mxu0 0.0
        %476 = vmatprep.subr.mxu0 0.0
        %477 = vmatpush1.msra.mxu0 0.0
        %478 = vmatprep.subr.mxu0 0.0
        %479 = vmatpush1.msra.mxu0 0.0
        %480 = vmatprep.subr.mxu0 0.0
        %481 = vmatpush1.msra.mxu0 0.0
        %482 = vmatprep.subr.mxu0 0.0
        %483 = vmatpush1.msra.mxu0 %v468
        %484 = vmatprep.subr.mxu0 0.0
        %485 = vmatpush1.msra.mxu0 %v264
        %486 = vmatprep.subr.mxu0 0.0
        %487 = vmatpush1.msra.mxu0 %v263
        %488 = vmatprep.subr.mxu0 0.0
        %489 = vmatpush1.msra.mxu0 %v262
        %490 = vmatprep.subr.mxu0 0.0
        %491 = vmatpush1.msra.mxu0 %v261
        %492 = vmatprep.subr.mxu0 0.0
        %493 = vmatpush1.msra.mxu0 %v260
        %494 = vmatprep.subr.mxu0 0.0
        %495 = vmatpush1.msra.mxu0 %v259
        %496 = vmatprep.subr.mxu0 0.0
        %497 = vmatpush1.msra.mxu0 %v258
        %498 = vmatprep.subr.mxu0 0.0
        %499 = vmatpush1.msra.mxu0 %v257
        %500 = vmatprep.subr.mxu0 0.0
        %501 = vmatpush1.msra.mxu0 %v256
        %502 = vmatprep.subr.mxu0 0.0
        %503 = vmatpush2.msra.mxu0 0.0
        %504 = vmatprep.subr.mxu0 0.0
        %505 = vmatpush2.msra.mxu0 0.0
        %506 = vmatprep.subr.mxu0 0.0
        %507 = vmatpush2.msra.mxu0 0.0
        %508 = vmatprep.subr.mxu0 0.0
        %509 = vmatpush2.msra.mxu0 0.0
        %510 = vmatprep.subr.mxu0 0.0
        %511 = vmatpush2.msra.mxu0 0.0
        %512 = vmatprep.subr.mxu0 0.0
        %513 = vmatpush2.msra.mxu0 0.0
        %514 = vmatprep.subr.mxu0 0.0
        %515 = vmatpush2.msra.mxu0 0.0
        %516 = vmatprep.subr.mxu0 0.0
        %517 = vmatpush2.msra.mxu0 0.0
        %518 = vmatprep.subr.mxu0 0.0
        %519 = vmatpush2.msra.mxu0 0.0
        %520 = vmatprep.subr.mxu0 0.0
        %521 = vmatpush2.msra.mxu0 0.0
        %522 = vmatprep.subr.mxu0 0.0
        %523 = vmatpush2.msra.mxu0 0.0
        %524 = vmatprep.subr.mxu0 0.0
        %525 = vmatpush2.msra.mxu0 0.0
        %526 = vmatprep.subr.mxu0 0.0
        %527 = vmatpush2.msra.mxu0 0.0
        %528 = vmatprep.subr.mxu0 0.0
        %529 = vmatpush2.msra.mxu0 0.0
        %530 = vmatprep.subr.mxu0 0.0
        %531 = vmatpush2.msra.mxu0 0.0
        %532 = vmatprep.subr.mxu0 0.0
        %533 = vmatpush2.msra.mxu0 0.0
        %534 = vmatprep.mubr.f32.mxu0 0.0
        %535 = vmatmul.mubr.f32.gmra.mxu0 %v275
        %v536 = vpop.f32.mrf.mxu0
        %v537 = vadd.f32 %v271, %v536
        %v538 = vpop.f32.mrf.mxu0
        %539 = vmatprep.mubr.f32.mxu0 0.0
        %540 = vmatmul.mubr.f32.gmra.mxu0 %v278
        %v541 = vpop.f32.mrf.mxu0
        %v542 = vadd.f32 %v271, %v541
        %v543 = vpop.f32.mrf.mxu0
        %544 = vmatprep.mubr.f32.mxu0 0.0
        %545 = vmatmul.mubr.f32.gmra.mxu0 %v281
        %v546 = vpop.f32.mrf.mxu0
        %v547 = vadd.f32 %v271, %v546
        %v548 = vpop.f32.mrf.mxu0
        %549 = vmatprep.mubr.f32.mxu0 0.0
        %550 = vmatmul.mubr.f32.gmra.mxu0 %v284
        %v551 = vpop.f32.mrf.mxu0
        %v552 = vadd.f32 %v271, %v551
        %v553 = vpop.f32.mrf.mxu0
        %554 = vmatprep.mubr.f32.mxu0 0.0
        %555 = vmatmul.mubr.f32.gmra.mxu0 %v287
        %v556 = vpop.f32.mrf.mxu0
        %v557 = vadd.f32 %v271, %v556
        %v558 = vpop.f32.mrf.mxu0
        %559 = vmatprep.mubr.f32.mxu0 0.0
        %560 = vmatmul.mubr.f32.gmra.mxu0 %v290
        %v561 = vpop.f32.mrf.mxu0
        %v562 = vadd.f32 %v271, %v561
        %v563 = vpop.f32.mrf.mxu0
        %564 = vmatprep.mubr.f32.mxu0 0.0
        %565 = vmatmul.mubr.f32.gmra.mxu0 %v293
        %v566 = vpop.f32.mrf.mxu0
        %v567 = vadd.f32 %v271, %v566
        %v568 = vpop.f32.mrf.mxu0
        %569 = vmatprep.mubr.f32.mxu0 0.0
        %570 = vmatmul.mubr.f32.gmra.mxu0 %v296
        %v571 = vpop.f32.mrf.mxu0
        %v572 = vadd.f32 %v271, %v571
        %v573 = vpop.f32.mrf.mxu0
        %574 = vmatprep.mubr.f32.mxu0 0.0
        %575 = vmatmul.mubr.f32.gmra.mxu0 %v299
        %v576 = vpop.f32.mrf.mxu0
        %v577 = vadd.f32 %v271, %v576
        %v578 = vpop.f32.mrf.mxu0
        %579 = vmatprep.mubr.f32.mxu0 0.0
        %580 = vmatmul.mubr.f32.gmra.mxu0 %v302
        %v581 = vpop.f32.mrf.mxu0
        %v582 = vadd.f32 %v271, %v581
        %v583 = vpop.f32.mrf.mxu0
        %584 = vmatprep.mubr.f32.mxu0 0.0
        %585 = vmatmul.mubr.f32.gmra.mxu0 %v305
        %v586 = vpop.f32.mrf.mxu0
        %v587 = vadd.f32 %v271, %v586
        %v588 = vpop.f32.mrf.mxu0
        %589 = vmatprep.mubr.f32.mxu0 0.0
        %590 = vmatmul.mubr.f32.gmra.mxu0 %v308
        %v591 = vpop.f32.mrf.mxu0
        %v592 = vadd.f32 %v271, %v591
        %v593 = vpop.f32.mrf.mxu0
        %594 = vmatprep.mubr.f32.mxu0 0.0
        %595 = vmatmul.mubr.f32.gmra.mxu0 %v311
        %v596 = vpop.f32.mrf.mxu0
        %v597 = vadd.f32 %v271, %v596
        %v598 = vpop.f32.mrf.mxu0
        %599 = vmatprep.mubr.f32.mxu0 0.0
        %600 = vmatmul.mubr.f32.gmra.mxu0 %v314
        %v601 = vpop.f32.mrf.mxu0
        %v602 = vadd.f32 %v271, %v601
        %v603 = vpop.f32.mrf.mxu0
        %604 = vmatprep.mubr.f32.mxu0 0.0
        %605 = vmatmul.mubr.f32.gmra.mxu0 %v317
        %v606 = vpop.f32.mrf.mxu0
        %v607 = vadd.f32 %v271, %v606
        %v608 = vpop.f32.mrf.mxu0
        %609 = vmatprep.mubr.f32.mxu0 0.0
        %610 = vmatmul.mubr.f32.gmra.mxu0 %v320
        %v611 = vpop.f32.mrf.mxu0
        %v612 = vadd.f32 %v271, %v611
        %v613 = vpop.f32.mrf.mxu0
        %614 = vmatprep.mubr.f32.mxu0 0.0
        %615 = vmatmul.mubr.f32.gmra.mxu0 %v323
        %v616 = vpop.f32.mrf.mxu0
        %v617 = vadd.f32 %v271, %v616
        %v618 = vpop.f32.mrf.mxu0
        %619 = vmatprep.mubr.f32.mxu0 0.0
        %620 = vmatmul.mubr.f32.gmra.mxu0 %v326
        %v621 = vpop.f32.mrf.mxu0
        %v622 = vadd.f32 %v271, %v621
        %v623 = vpop.f32.mrf.mxu0
        %624 = vmatprep.mubr.f32.mxu0 0.0
        %625 = vmatmul.mubr.f32.gmra.mxu0 %v329
        %v626 = vpop.f32.mrf.mxu0
        %v627 = vadd.f32 %v271, %v626
        %v628 = vpop.f32.mrf.mxu0
        %629 = vmatprep.mubr.f32.mxu0 0.0
        %630 = vmatmul.mubr.f32.gmra.mxu0 %v332
        %v631 = vpop.f32.mrf.mxu0
        %v632 = vadd.f32 %v271, %v631
        %v633 = vpop.f32.mrf.mxu0
        %634 = vmatprep.mubr.f32.mxu0 0.0
        %635 = vmatmul.mubr.f32.gmra.mxu0 %v335
        %v636 = vpop.f32.mrf.mxu0
        %v637 = vadd.f32 %v271, %v636
        %v638 = vpop.f32.mrf.mxu0
        %639 = vmatprep.mubr.f32.mxu0 0.0
        %640 = vmatmul.mubr.f32.gmra.mxu0 %v338
        %v641 = vpop.f32.mrf.mxu0
        %v642 = vadd.f32 %v271, %v641
        %v643 = vpop.f32.mrf.mxu0
        %644 = vmatprep.mubr.f32.mxu0 0.0
        %645 = vmatmul.mubr.f32.gmra.mxu0 %v341
        %v646 = vpop.f32.mrf.mxu0
        %v647 = vadd.f32 %v271, %v646
        %v648 = vpop.f32.mrf.mxu0
        %649 = vmatprep.mubr.f32.mxu0 0.0
        %650 = vmatmul.mubr.f32.gmra.mxu0 %v344
        %v651 = vpop.f32.mrf.mxu0
        %v652 = vadd.f32 %v271, %v651
        %v653 = vpop.f32.mrf.mxu0
        %654 = vmatprep.mubr.f32.mxu0 0.0
        %655 = vmatmul.mubr.f32.gmra.mxu0 %v347
        %v656 = vpop.f32.mrf.mxu0
        %v657 = vadd.f32 %v271, %v656
        %v658 = vpop.f32.mrf.mxu0
        %659 = vmatprep.mubr.f32.mxu0 0.0
        %660 = vmatmul.mubr.f32.gmra.mxu0 %v350
        %v661 = vpop.f32.mrf.mxu0
        %v662 = vadd.f32 %v271, %v661
        %v663 = vpop.f32.mrf.mxu0
        %664 = vmatprep.mubr.f32.mxu0 0.0
        %665 = vmatmul.mubr.f32.gmra.mxu0 %v353
        %v666 = vpop.f32.mrf.mxu0
        %v667 = vadd.f32 %v271, %v666
        %v668 = vpop.f32.mrf.mxu0
        %669 = vmatprep.mubr.f32.mxu0 0.0
        %670 = vmatmul.mubr.f32.gmra.mxu0 %v356
        %v671 = vpop.f32.mrf.mxu0
        %v672 = vadd.f32 %v271, %v671
        %v673 = vpop.f32.mrf.mxu0
        %674 = vmatprep.mubr.f32.mxu0 0.0
        %675 = vmatmul.mubr.f32.gmra.mxu0 %v359
        %v676 = vpop.f32.mrf.mxu0
        %v677 = vadd.f32 %v271, %v676
        %v678 = vpop.f32.mrf.mxu0
        %679 = vmatprep.mubr.f32.mxu0 0.0
        %680 = vmatmul.mubr.f32.gmra.mxu0 %v362
        %v681 = vpop.f32.mrf.mxu0
        %v682 = vadd.f32 %v271, %v681
        %v683 = vpop.f32.mrf.mxu0
        %684 = vmatprep.mubr.f32.mxu0 0.0
        %685 = vmatmul.mubr.f32.gmra.mxu0 %v365
        %v686 = vpop.f32.mrf.mxu0
        %v687 = vadd.f32 %v271, %v686
        %v688 = vpop.f32.mrf.mxu0
        %689 = vmatprep.mubr.f32.mxu0 0.0
        %690 = vmatmul.mubr.f32.gmra.mxu0 %v368
        %v691 = vpop.f32.mrf.mxu0
        %v692 = vadd.f32 %v271, %v691
        %v693 = vpop.f32.mrf.mxu0
        %694 = vmatprep.mubr.f32.mxu0 0.0
        %695 = vmatmul.mubr.f32.gmra.mxu0 %v371
        %v696 = vpop.f32.mrf.mxu0
        %v697 = vadd.f32 %v271, %v696
        %v698 = vpop.f32.mrf.mxu0
        %699 = vmatprep.mubr.f32.mxu0 0.0
        %700 = vmatmul.mubr.f32.gmra.mxu0 %v374
        %v701 = vpop.f32.mrf.mxu0
        %v702 = vadd.f32 %v271, %v701
        %v703 = vpop.f32.mrf.mxu0
        %704 = vmatprep.mubr.f32.mxu0 0.0
        %705 = vmatmul.mubr.f32.gmra.mxu0 %v377
        %v706 = vpop.f32.mrf.mxu0
        %v707 = vadd.f32 %v271, %v706
        %v708 = vpop.f32.mrf.mxu0
        %709 = vmatprep.mubr.f32.mxu0 0.0
        %710 = vmatmul.mubr.f32.gmra.mxu0 %v380
        %v711 = vpop.f32.mrf.mxu0
        %v712 = vadd.f32 %v271, %v711
        %v713 = vpop.f32.mrf.mxu0
        %714 = vmatprep.mubr.f32.mxu0 0.0
        %715 = vmatmul.mubr.f32.gmra.mxu0 %v383
        %v716 = vpop.f32.mrf.mxu0
        %v717 = vadd.f32 %v271, %v716
        %v718 = vpop.f32.mrf.mxu0
        %719 = vmatprep.mubr.f32.mxu0 0.0
        %720 = vmatmul.mubr.f32.gmra.mxu0 %v386
        %v721 = vpop.f32.mrf.mxu0
        %v722 = vadd.f32 %v271, %v721
        %v723 = vpop.f32.mrf.mxu0
        %724 = vmatprep.mubr.f32.mxu0 0.0
        %725 = vmatmul.mubr.f32.gmra.mxu0 %v389
        %v726 = vpop.f32.mrf.mxu0
        %v727 = vadd.f32 %v271, %v726
        %v728 = vpop.f32.mrf.mxu0
        %729 = vmatprep.mubr.f32.mxu0 0.0
        %730 = vmatmul.mubr.f32.gmra.mxu0 %v392
        %v731 = vpop.f32.mrf.mxu0
        %v732 = vadd.f32 %v271, %v731
        %v733 = vpop.f32.mrf.mxu0
        %734 = vmatprep.mubr.f32.mxu0 0.0
        %735 = vmatmul.mubr.f32.gmra.mxu0 %v395
        %v736 = vpop.f32.mrf.mxu0
        %v737 = vadd.f32 %v271, %v736
        %v738 = vpop.f32.mrf.mxu0
        %739 = vmatprep.mubr.f32.mxu0 0.0
        %740 = vmatmul.mubr.f32.gmra.mxu0 %v398
        %v741 = vpop.f32.mrf.mxu0
        %v742 = vadd.f32 %v271, %v741
        %v743 = vpop.f32.mrf.mxu0
        %744 = vmatprep.mubr.f32.mxu0 0.0
        %745 = vmatmul.mubr.f32.gmra.mxu0 %v401
        %v746 = vpop.f32.mrf.mxu0
        %v747 = vadd.f32 %v271, %v746
        %v748 = vpop.f32.mrf.mxu0
        %749 = vmatprep.mubr.f32.mxu0 0.0
        %750 = vmatmul.mubr.f32.gmra.mxu0 %v404
        %v751 = vpop.f32.mrf.mxu0
        %v752 = vadd.f32 %v271, %v751
        %v753 = vpop.f32.mrf.mxu0
        %754 = vmatprep.mubr.f32.mxu0 0.0
        %755 = vmatmul.mubr.f32.gmra.mxu0 %v407
        %v756 = vpop.f32.mrf.mxu0
        %v757 = vadd.f32 %v271, %v756
        %v758 = vpop.f32.mrf.mxu0
        %759 = vmatprep.mubr.f32.mxu0 0.0
        %760 = vmatmul.mubr.f32.gmra.mxu0 %v410
        %v761 = vpop.f32.mrf.mxu0
        %v762 = vadd.f32 %v271, %v761
        %v763 = vpop.f32.mrf.mxu0
        %764 = vmatprep.mubr.f32.mxu0 0.0
        %765 = vmatmul.mubr.f32.gmra.mxu0 %v413
        %v766 = vpop.f32.mrf.mxu0
        %v767 = vadd.f32 %v271, %v766
        %v768 = vpop.f32.mrf.mxu0
        %769 = vmatprep.mubr.f32.mxu0 0.0
        %770 = vmatmul.mubr.f32.gmra.mxu0 %v416
        %v771 = vpop.f32.mrf.mxu0
        %v772 = vadd.f32 %v271, %v771
        %v773 = vpop.f32.mrf.mxu0
        %774 = vmatprep.mubr.f32.mxu0 0.0
        %775 = vmatmul.mubr.f32.gmra.mxu0 %v419
        %v776 = vpop.f32.mrf.mxu0
        %v777 = vadd.f32 %v271, %v776
        %v778 = vpop.f32.mrf.mxu0
        %779 = vmatprep.mubr.f32.mxu0 0.0
        %780 = vmatmul.mubr.f32.gmra.mxu0 %v422
        %v781 = vpop.f32.mrf.mxu0
        %v782 = vadd.f32 %v271, %v781
        %v783 = vpop.f32.mrf.mxu0
        %784 = vmatprep.mubr.f32.mxu0 0.0
        %785 = vmatmul.mubr.f32.gmra.mxu0 %v425
        %v786 = vpop.f32.mrf.mxu0
        %v787 = vadd.f32 %v271, %v786
        %v788 = vpop.f32.mrf.mxu0
        %789 = vmatprep.mubr.f32.mxu0 0.0
        %790 = vmatmul.mubr.f32.gmra.mxu0 %v428
        %v791 = vpop.f32.mrf.mxu0
        %v792 = vadd.f32 %v271, %v791
        %v793 = vpop.f32.mrf.mxu0
        %794 = vmatprep.mubr.f32.mxu0 0.0
        %795 = vmatmul.mubr.f32.gmra.mxu0 %v431
        %v796 = vpop.f32.mrf.mxu0
        %v797 = vadd.f32 %v271, %v796
        %v798 = vpop.f32.mrf.mxu0
        %799 = vmatprep.mubr.f32.mxu0 0.0
        %800 = vmatmul.mubr.f32.gmra.mxu0 %v434
        %v801 = vpop.f32.mrf.mxu0
        %v802 = vadd.f32 %v271, %v801
        %v803 = vpop.f32.mrf.mxu0
        %804 = vmatprep.mubr.f32.mxu0 0.0
        %805 = vmatmul.mubr.f32.gmra.mxu0 %v437
        %v806 = vpop.f32.mrf.mxu0
        %v807 = vadd.f32 %v271, %v806
        %v808 = vpop.f32.mrf.mxu0
        %809 = vmatprep.mubr.f32.mxu0 0.0
        %810 = vmatmul.mubr.f32.gmra.mxu0 %v440
        %v811 = vpop.f32.mrf.mxu0
        %v812 = vadd.f32 %v271, %v811
        %v813 = vpop.f32.mrf.mxu0
        %814 = vmatprep.mubr.f32.mxu0 0.0
        %815 = vmatmul.mubr.f32.gmra.mxu0 %v443
        %v816 = vpop.f32.mrf.mxu0
        %v817 = vadd.f32 %v271, %v816
        %v818 = vpop.f32.mrf.mxu0
        %819 = vmatprep.mubr.f32.mxu0 0.0
        %820 = vmatmul.mubr.f32.gmra.mxu0 %v446
        %v821 = vpop.f32.mrf.mxu0
        %v822 = vadd.f32 %v271, %v821
        %v823 = vpop.f32.mrf.mxu0
        %824 = vmatprep.mubr.f32.mxu0 0.0
        %825 = vmatmul.mubr.f32.gmra.mxu0 %v449
        %v826 = vpop.f32.mrf.mxu0
        %v827 = vadd.f32 %v271, %v826
        %v828 = vpop.f32.mrf.mxu0
        %829 = vmatprep.mubr.f32.mxu0 0.0
        %830 = vmatmul.mubr.f32.gmra.mxu0 %v452
        %v831 = vpop.f32.mrf.mxu0
        %v832 = vadd.f32 %v271, %v831
        %v833 = vpop.f32.mrf.mxu0
        %834 = vmatprep.mubr.f32.mxu0 0.0
        %835 = vmatmul.mubr.f32.gmra.mxu0 %v455
        %v836 = vpop.f32.mrf.mxu0
        %v837 = vadd.f32 %v271, %v836
        %v838 = vpop.f32.mrf.mxu0
        %839 = vmatprep.mubr.f32.mxu0 0.0
        %840 = vmatmul.mubr.f32.gmra.mxu0 %v458
        %v841 = vpop.f32.mrf.mxu0
        %v842 = vadd.f32 %v271, %v841
        %v843 = vpop.f32.mrf.mxu0
        %844 = vmatprep.mubr.f32.mxu0 0.0
        %845 = vmatmul.mubr.f32.gmra.mxu0 %v461
        %v846 = vpop.f32.mrf.mxu0
        %v847 = vadd.f32 %v271, %v846
        %v848 = vpop.f32.mrf.mxu0
        %849 = vmatprep.mubr.f32.mxu0 0.0
        %850 = vmatmul.mubr.f32.gmra.mxu0 %v464
        %v851 = vpop.f32.mrf.mxu0
        %v852 = vadd.f32 %v271, %v851
        %v853 = vpop.f32.mrf.mxu0
        %854 = vdwg.mxu0
        %v855 = vmax.f32 %v537, 0.0
        %v856 = vmax.f32 %v542, 0.0
        %v857 = vmax.f32 %v547, 0.0
        %v858 = vmax.f32 %v552, 0.0
        %v859 = vmax.f32 %v557, 0.0
        %v860 = vmax.f32 %v562, 0.0
        %v861 = vmax.f32 %v567, 0.0
        %v862 = vmax.f32 %v572, 0.0
        %v863 = vmax.f32 %v577, 0.0
        %v864 = vmax.f32 %v582, 0.0
        %v865 = vmax.f32 %v587, 0.0
        %v866 = vmax.f32 %v592, 0.0
        %v867 = vmax.f32 %v597, 0.0
        %v868 = vmax.f32 %v602, 0.0
        %v869 = vmax.f32 %v607, 0.0
        %v870 = vmax.f32 %v612, 0.0
        %v871 = vmax.f32 %v617, 0.0
        %v872 = vmax.f32 %v622, 0.0
        %v873 = vmax.f32 %v627, 0.0
        %v874 = vmax.f32 %v632, 0.0
        %v875 = vmax.f32 %v637, 0.0
        %v876 = vmax.f32 %v642, 0.0
        %v877 = vmax.f32 %v647, 0.0
        %v878 = vmax.f32 %v652, 0.0
        %v879 = vmax.f32 %v657, 0.0
        %v880 = vmax.f32 %v662, 0.0
        %v881 = vmax.f32 %v667, 0.0
        %v882 = vmax.f32 %v672, 0.0
        %v883 = vmax.f32 %v677, 0.0
        %v884 = vmax.f32 %v682, 0.0
        %v885 = vmax.f32 %v687, 0.0
        %v886 = vmax.f32 %v692, 0.0
        %v887 = vmax.f32 %v697, 0.0
        %v888 = vmax.f32 %v702, 0.0
        %v889 = vmax.f32 %v707, 0.0
        %v890 = vmax.f32 %v712, 0.0
        %v891 = vmax.f32 %v717, 0.0
        %v892 = vmax.f32 %v722, 0.0
        %v893 = vmax.f32 %v727, 0.0
        %v894 = vmax.f32 %v732, 0.0
        %v895 = vmax.f32 %v737, 0.0
        %v896 = vmax.f32 %v742, 0.0
        %v897 = vmax.f32 %v747, 0.0
        %v898 = vmax.f32 %v752, 0.0
        %v899 = vmax.f32 %v757, 0.0
        %v900 = vmax.f32 %v762, 0.0
        %v901 = vmax.f32 %v767, 0.0
        %v902 = vmax.f32 %v772, 0.0
        %v903 = vmax.f32 %v777, 0.0
        %v904 = vmax.f32 %v782, 0.0
        %v905 = vmax.f32 %v787, 0.0
        %v906 = vmax.f32 %v792, 0.0
        %v907 = vmax.f32 %v797, 0.0
        %v908 = vmax.f32 %v802, 0.0
        %v909 = vmax.f32 %v807, 0.0
        %v910 = vmax.f32 %v812, 0.0
        %v911 = vmax.f32 %v817, 0.0
        %v912 = vmax.f32 %v822, 0.0
        %v913 = vmax.f32 %v827, 0.0
        %v914 = vmax.f32 %v832, 0.0
        %v915 = vmax.f32 %v837, 0.0
        %v916 = vmax.f32 %v842, 0.0
        %v917 = vmax.f32 %v847, 0.0
        %v918 = vmax.f32 %v852, 0.0
        %919 = vst [vmem:[%s172] sm:$0xff] %v855
        %920 = vst [vmem:[%s172 + $0x8] sm:$0xff] %v856
        %921 = vst [vmem:[%s172 + $0x10] sm:$0xff] %v857
        %922 = vst [vmem:[%s172 + $0x18] sm:$0xff] %v858
        %923 = vst [vmem:[%s172 + $0x20] sm:$0xff] %v859
        %924 = vst [vmem:[%s172 + $0x28] sm:$0xff] %v860
        %925 = vst [vmem:[%s172 + $0x30] sm:$0xff] %v861
        %926 = vst [vmem:[%s172 + $0x38] sm:$0xff] %v862
        %927 = vst [vmem:[%s172 + $0x40] sm:$0xff] %v863
        %928 = vst [vmem:[%s172 + $0x48] sm:$0xff] %v864
        %929 = vst [vmem:[%s172 + $0x50] sm:$0xff] %v865
        %930 = vst [vmem:[%s172 + $0x58] sm:$0xff] %v866
        %931 = vst [vmem:[%s172 + $0x60] sm:$0xff] %v867
        %932 = vst [vmem:[%s172 + $0x68] sm:$0xff] %v868
        %933 = vst [vmem:[%s172 + $0x70] sm:$0xff] %v869
        %934 = vst [vmem:[%s172 + $0x78] sm:$0xff] %v870
        %935 = vst [vmem:[%s172 + $0x80] sm:$0xff] %v871
        %936 = vst [vmem:[%s172 + $0x88] sm:$0xff] %v872
        %937 = vst [vmem:[%s172 + $0x90] sm:$0xff] %v873
        %938 = vst [vmem:[%s172 + $0x98] sm:$0xff] %v874
        %939 = vst [vmem:[%s172 + $0xa0] sm:$0xff] %v875
        %940 = vst [vmem:[%s172 + $0xa8] sm:$0xff] %v876
        %941 = vst [vmem:[%s172 + $0xb0] sm:$0xff] %v877
        %942 = vst [vmem:[%s172 + $0xb8] sm:$0xff] %v878
        %943 = vst [vmem:[%s172 + $0xc0] sm:$0xff] %v879
        %944 = vst [vmem:[%s172 + $0xc8] sm:$0xff] %v880
        %945 = vst [vmem:[%s172 + $0xd0] sm:$0xff] %v881
        %946 = vst [vmem:[%s172 + $0xd8] sm:$0xff] %v882
        %947 = vst [vmem:[%s172 + $0xe0] sm:$0xff] %v883
        %948 = vst [vmem:[%s172 + $0xe8] sm:$0xff] %v884
        %949 = vst [vmem:[%s172 + $0xf0] sm:$0xff] %v885
        %950 = vst [vmem:[%s172 + $0xf8] sm:$0xff] %v886
        %951 = vst [vmem:[%s172 + $0x100] sm:$0xff] %v887
        %952 = vst [vmem:[%s172 + $0x108] sm:$0xff] %v888
        %953 = vst [vmem:[%s172 + $0x110] sm:$0xff] %v889
        %954 = vst [vmem:[%s172 + $0x118] sm:$0xff] %v890
        %955 = vst [vmem:[%s172 + $0x120] sm:$0xff] %v891
        %956 = vst [vmem:[%s172 + $0x128] sm:$0xff] %v892
        %957 = vst [vmem:[%s172 + $0x130] sm:$0xff] %v893
        %958 = vst [vmem:[%s172 + $0x138] sm:$0xff] %v894
        %959 = vst [vmem:[%s172 + $0x140] sm:$0xff] %v895
        %960 = vst [vmem:[%s172 + $0x148] sm:$0xff] %v896
        %961 = vst [vmem:[%s172 + $0x150] sm:$0xff] %v897
        %962 = vst [vmem:[%s172 + $0x158] sm:$0xff] %v898
        %963 = vst [vmem:[%s172 + $0x160] sm:$0xff] %v899
        %964 = vst [vmem:[%s172 + $0x168] sm:$0xff] %v900
        %965 = vst [vmem:[%s172 + $0x170] sm:$0xff] %v901
        %966 = vst [vmem:[%s172 + $0x178] sm:$0xff] %v902
        %967 = vst [vmem:[%s172 + $0x180] sm:$0xff] %v903
        %968 = vst [vmem:[%s172 + $0x188] sm:$0xff] %v904
        %969 = vst [vmem:[%s172 + $0x190] sm:$0xff] %v905
        %970 = vst [vmem:[%s172 + $0x198] sm:$0xff] %v906
        %971 = vst [vmem:[%s172 + $0x1a0] sm:$0xff] %v907
        %972 = vst [vmem:[%s172 + $0x1a8] sm:$0xff] %v908
        %973 = vst [vmem:[%s172 + $0x1b0] sm:$0xff] %v909
        %974 = vst [vmem:[%s172 + $0x1b8] sm:$0xff] %v910
        %975 = vst [vmem:[%s172 + $0x1c0] sm:$0xff] %v911
        %976 = vst [vmem:[%s172 + $0x1c8] sm:$0xff] %v912
        %977 = vst [vmem:[%s172 + $0x1d0] sm:$0xff] %v913
        %978 = vst [vmem:[%s172 + $0x1d8] sm:$0xff] %v914
        %979 = vst [vmem:[%s172 + $0x1e0] sm:$0xff] %v915
        %980 = vst [vmem:[%s172 + $0x1e8] sm:$0xff] %v916
        %981 = vst [vmem:[%s172 + $0x1f0] sm:$0xff] %v917
        %982 = vst [vmem:[%s172 + $0x1f8] sm:$0xff] %v918
        %s983 = sand.u32 %s90, 1
        %s984 = sand.u32 %s90, 1
        %s985 = smul.addr %s984, 512
        %s986 = scalar_lea.vmem [#allocation2], %s985
        // Predicated region
        $region33: #{net_forward.6} parent=31 // pred_check
          %p987 = pneg %p100
        $region34: #{net_forward.6} parent=31 // pred_check_branch
          %989 = sbr.rel (%p987) target = $region36
        $region35: #{net_forward.6} parent=31 // pred_region
          %s990 = smul.u32 64, %s14
          %s991 = ssub.s32 196, %s990
          %p992 = scmp.lt.s32.totalorder %s991, 64
          %s993 = scalar_select %p992, %s991, 64
          %s994 = smul.u32 128, %s993
          %p995 = scmp.ne.s32.totalorder 0, %s994
          %s996 = smul.addr %s990, 8
          %s997 = scalar_lea.vmem %s3, %s996
          // Predicated region
          $region37: #{net_forward.6} parent=35 // pred_check
            %p998 = pneg %p995
          $region38: #{net_forward.6} parent=35 // pred_check_branch
            %1000 = sbr.rel (%p998) target = $region40
          $region39: #{net_forward.6} parent=35 // pred_region
            // Predicated region
            $region41: #{net_forward.6} parent=39 // pred_check
              _
            $region42: #{net_forward.6} parent=39 // pred_check_branch
              %1002 = sbr.rel (0) target = $region44
            $region43: #{net_forward.6} parent=39 // pred_region
              // Predicated region
              $region63: #{net_forward.6} parent=43 // pred_check
                _
              $region64: #{net_forward.6} parent=43 // pred_check_branch
                %1178 = sbr.rel (0) target = $region66
              $region65: #{net_forward.6} parent=43 // pred_region
                %s1179 = sshrl.u32 %s993, 6
                // While loop
                $region67: #{net_forward.6} parent=65 // loop_pre_header
                  _
                $region68: #{net_forward.6} parent=65 // loop_header
                  %s1181 = sphi 0, %s1183
                  %p1182 = scmp.ge.s32.totalorder %s1181, %s1179
                  %s1186 = sphi 0, %s1319
                  %s1187 = sphi %s986, %s1322
                  %s1188 = sphi %s997, %s1323
                $region69: #{net_forward.6} parent=65 // loop_header_branch
                  %1185 = sbr.rel (%p1182) target = $region73
                $region70: #{net_forward.6} parent=65 // loop_body
                  %v1189 = vld [vmem:[%s1187] sm:$0xff]
                  %1190 = vst [vmem:[%s1188] sm:$0xff] %v1189
                  %v1191 = vld [vmem:[%s1187 + $0x8] sm:$0xff]
                  %1192 = vst [vmem:[%s1188 + $0x8] sm:$0xff] %v1191
                  %v1193 = vld [vmem:[%s1187 + $0x10] sm:$0xff]
                  %1194 = vst [vmem:[%s1188 + $0x10] sm:$0xff] %v1193
                  %v1195 = vld [vmem:[%s1187 + $0x18] sm:$0xff]
                  %1196 = vst [vmem:[%s1188 + $0x18] sm:$0xff] %v1195
                  %v1197 = vld [vmem:[%s1187 + $0x20] sm:$0xff]
                  %1198 = vst [vmem:[%s1188 + $0x20] sm:$0xff] %v1197
                  %v1199 = vld [vmem:[%s1187 + $0x28] sm:$0xff]
                  %1200 = vst [vmem:[%s1188 + $0x28] sm:$0xff] %v1199
                  %v1201 = vld [vmem:[%s1187 + $0x30] sm:$0xff]
                  %1202 = vst [vmem:[%s1188 + $0x30] sm:$0xff] %v1201
                  %v1203 = vld [vmem:[%s1187 + $0x38] sm:$0xff]
                  %1204 = vst [vmem:[%s1188 + $0x38] sm:$0xff] %v1203
                  %v1205 = vld [vmem:[%s1187 + $0x40] sm:$0xff]
                  %1206 = vst [vmem:[%s1188 + $0x40] sm:$0xff] %v1205
                  %v1207 = vld [vmem:[%s1187 + $0x48] sm:$0xff]
                  %1208 = vst [vmem:[%s1188 + $0x48] sm:$0xff] %v1207
                  %v1209 = vld [vmem:[%s1187 + $0x50] sm:$0xff]
                  %1210 = vst [vmem:[%s1188 + $0x50] sm:$0xff] %v1209
                  %v1211 = vld [vmem:[%s1187 + $0x58] sm:$0xff]
                  %1212 = vst [vmem:[%s1188 + $0x58] sm:$0xff] %v1211
                  %v1213 = vld [vmem:[%s1187 + $0x60] sm:$0xff]
                  %1214 = vst [vmem:[%s1188 + $0x60] sm:$0xff] %v1213
                  %v1215 = vld [vmem:[%s1187 + $0x68] sm:$0xff]
                  %1216 = vst [vmem:[%s1188 + $0x68] sm:$0xff] %v1215
                  %v1217 = vld [vmem:[%s1187 + $0x70] sm:$0xff]
                  %1218 = vst [vmem:[%s1188 + $0x70] sm:$0xff] %v1217
                  %v1219 = vld [vmem:[%s1187 + $0x78] sm:$0xff]
                  %1220 = vst [vmem:[%s1188 + $0x78] sm:$0xff] %v1219
                  %v1221 = vld [vmem:[%s1187 + $0x80] sm:$0xff]
                  %1222 = vst [vmem:[%s1188 + $0x80] sm:$0xff] %v1221
                  %v1223 = vld [vmem:[%s1187 + $0x88] sm:$0xff]
                  %1224 = vst [vmem:[%s1188 + $0x88] sm:$0xff] %v1223
                  %v1225 = vld [vmem:[%s1187 + $0x90] sm:$0xff]
                  %1226 = vst [vmem:[%s1188 + $0x90] sm:$0xff] %v1225
                  %v1227 = vld [vmem:[%s1187 + $0x98] sm:$0xff]
                  %1228 = vst [vmem:[%s1188 + $0x98] sm:$0xff] %v1227
                  %v1229 = vld [vmem:[%s1187 + $0xa0] sm:$0xff]
                  %1230 = vst [vmem:[%s1188 + $0xa0] sm:$0xff] %v1229
                  %v1231 = vld [vmem:[%s1187 + $0xa8] sm:$0xff]
                  %1232 = vst [vmem:[%s1188 + $0xa8] sm:$0xff] %v1231
                  %v1233 = vld [vmem:[%s1187 + $0xb0] sm:$0xff]
                  %1234 = vst [vmem:[%s1188 + $0xb0] sm:$0xff] %v1233
                  %v1235 = vld [vmem:[%s1187 + $0xb8] sm:$0xff]
                  %1236 = vst [vmem:[%s1188 + $0xb8] sm:$0xff] %v1235
                  %v1237 = vld [vmem:[%s1187 + $0xc0] sm:$0xff]
                  %1238 = vst [vmem:[%s1188 + $0xc0] sm:$0xff] %v1237
                  %v1239 = vld [vmem:[%s1187 + $0xc8] sm:$0xff]
                  %1240 = vst [vmem:[%s1188 + $0xc8] sm:$0xff] %v1239
                  %v1241 = vld [vmem:[%s1187 + $0xd0] sm:$0xff]
                  %1242 = vst [vmem:[%s1188 + $0xd0] sm:$0xff] %v1241
                  %v1243 = vld [vmem:[%s1187 + $0xd8] sm:$0xff]
                  %1244 = vst [vmem:[%s1188 + $0xd8] sm:$0xff] %v1243
                  %v1245 = vld [vmem:[%s1187 + $0xe0] sm:$0xff]
                  %1246 = vst [vmem:[%s1188 + $0xe0] sm:$0xff] %v1245
                  %v1247 = vld [vmem:[%s1187 + $0xe8] sm:$0xff]
                  %1248 = vst [vmem:[%s1188 + $0xe8] sm:$0xff] %v1247
                  %v1249 = vld [vmem:[%s1187 + $0xf0] sm:$0xff]
                  %1250 = vst [vmem:[%s1188 + $0xf0] sm:$0xff] %v1249
                  %v1251 = vld [vmem:[%s1187 + $0xf8] sm:$0xff]
                  %1252 = vst [vmem:[%s1188 + $0xf8] sm:$0xff] %v1251
                  %v1253 = vld [vmem:[%s1187 + $0x100] sm:$0xff]
                  %1254 = vst [vmem:[%s1188 + $0x100] sm:$0xff] %v1253
                  %v1255 = vld [vmem:[%s1187 + $0x108] sm:$0xff]
                  %1256 = vst [vmem:[%s1188 + $0x108] sm:$0xff] %v1255
                  %v1257 = vld [vmem:[%s1187 + $0x110] sm:$0xff]
                  %1258 = vst [vmem:[%s1188 + $0x110] sm:$0xff] %v1257
                  %v1259 = vld [vmem:[%s1187 + $0x118] sm:$0xff]
                  %1260 = vst [vmem:[%s1188 + $0x118] sm:$0xff] %v1259
                  %v1261 = vld [vmem:[%s1187 + $0x120] sm:$0xff]
                  %1262 = vst [vmem:[%s1188 + $0x120] sm:$0xff] %v1261
                  %v1263 = vld [vmem:[%s1187 + $0x128] sm:$0xff]
                  %1264 = vst [vmem:[%s1188 + $0x128] sm:$0xff] %v1263
                  %v1265 = vld [vmem:[%s1187 + $0x130] sm:$0xff]
                  %1266 = vst [vmem:[%s1188 + $0x130] sm:$0xff] %v1265
                  %v1267 = vld [vmem:[%s1187 + $0x138] sm:$0xff]
                  %1268 = vst [vmem:[%s1188 + $0x138] sm:$0xff] %v1267
                  %v1269 = vld [vmem:[%s1187 + $0x140] sm:$0xff]
                  %1270 = vst [vmem:[%s1188 + $0x140] sm:$0xff] %v1269
                  %v1271 = vld [vmem:[%s1187 + $0x148] sm:$0xff]
                  %1272 = vst [vmem:[%s1188 + $0x148] sm:$0xff] %v1271
                  %v1273 = vld [vmem:[%s1187 + $0x150] sm:$0xff]
                  %1274 = vst [vmem:[%s1188 + $0x150] sm:$0xff] %v1273
                  %v1275 = vld [vmem:[%s1187 + $0x158] sm:$0xff]
                  %1276 = vst [vmem:[%s1188 + $0x158] sm:$0xff] %v1275
                  %v1277 = vld [vmem:[%s1187 + $0x160] sm:$0xff]
                  %1278 = vst [vmem:[%s1188 + $0x160] sm:$0xff] %v1277
                  %v1279 = vld [vmem:[%s1187 + $0x168] sm:$0xff]
                  %1280 = vst [vmem:[%s1188 + $0x168] sm:$0xff] %v1279
                  %v1281 = vld [vmem:[%s1187 + $0x170] sm:$0xff]
                  %1282 = vst [vmem:[%s1188 + $0x170] sm:$0xff] %v1281
                  %v1283 = vld [vmem:[%s1187 + $0x178] sm:$0xff]
                  %1284 = vst [vmem:[%s1188 + $0x178] sm:$0xff] %v1283
                  %v1285 = vld [vmem:[%s1187 + $0x180] sm:$0xff]
                  %1286 = vst [vmem:[%s1188 + $0x180] sm:$0xff] %v1285
                  %v1287 = vld [vmem:[%s1187 + $0x188] sm:$0xff]
                  %1288 = vst [vmem:[%s1188 + $0x188] sm:$0xff] %v1287
                  %v1289 = vld [vmem:[%s1187 + $0x190] sm:$0xff]
                  %1290 = vst [vmem:[%s1188 + $0x190] sm:$0xff] %v1289
                  %v1291 = vld [vmem:[%s1187 + $0x198] sm:$0xff]
                  %1292 = vst [vmem:[%s1188 + $0x198] sm:$0xff] %v1291
                  %v1293 = vld [vmem:[%s1187 + $0x1a0] sm:$0xff]
                  %1294 = vst [vmem:[%s1188 + $0x1a0] sm:$0xff] %v1293
                  %v1295 = vld [vmem:[%s1187 + $0x1a8] sm:$0xff]
                  %1296 = vst [vmem:[%s1188 + $0x1a8] sm:$0xff] %v1295
                  %v1297 = vld [vmem:[%s1187 + $0x1b0] sm:$0xff]
                  %1298 = vst [vmem:[%s1188 + $0x1b0] sm:$0xff] %v1297
                  %v1299 = vld [vmem:[%s1187 + $0x1b8] sm:$0xff]
                  %1300 = vst [vmem:[%s1188 + $0x1b8] sm:$0xff] %v1299
                  %v1301 = vld [vmem:[%s1187 + $0x1c0] sm:$0xff]
                  %1302 = vst [vmem:[%s1188 + $0x1c0] sm:$0xff] %v1301
                  %v1303 = vld [vmem:[%s1187 + $0x1c8] sm:$0xff]
                  %1304 = vst [vmem:[%s1188 + $0x1c8] sm:$0xff] %v1303
                  %v1305 = vld [vmem:[%s1187 + $0x1d0] sm:$0xff]
                  %1306 = vst [vmem:[%s1188 + $0x1d0] sm:$0xff] %v1305
                  %v1307 = vld [vmem:[%s1187 + $0x1d8] sm:$0xff]
                  %1308 = vst [vmem:[%s1188 + $0x1d8] sm:$0xff] %v1307
                  %v1309 = vld [vmem:[%s1187 + $0x1e0] sm:$0xff]
                  %1310 = vst [vmem:[%s1188 + $0x1e0] sm:$0xff] %v1309
                  %v1311 = vld [vmem:[%s1187 + $0x1e8] sm:$0xff]
                  %1312 = vst [vmem:[%s1188 + $0x1e8] sm:$0xff] %v1311
                  %v1313 = vld [vmem:[%s1187 + $0x1f0] sm:$0xff]
                  %1314 = vst [vmem:[%s1188 + $0x1f0] sm:$0xff] %v1313
                  %v1315 = vld [vmem:[%s1187 + $0x1f8] sm:$0xff]
                  %1316 = vst [vmem:[%s1188 + $0x1f8] sm:$0xff] %v1315
                  %s1317 = sadd.s32 1, %s1186
                  %p1318 = scmp.ge.s32.totalorder %s1317, %s1179
                  %s1319 = scalar_select %p1318, 0, %s1317
                  %s1320 = smul.u32 %s1319, 512
                  %s1321 = smul.u32 %s1319, 512
                  %s1322 = scalar_lea.vmem %s986, %s1320 [#allocation2]
                  %s1323 = scalar_lea.vmem %s997, %s1321
                $region71: #{net_forward.6} parent=65 // loop_footer
                  %s1183 = sadd.s32 %s1181, 1
                $region72: #{net_forward.6} parent=65 // loop_footer_branch
                  %1180 = sbr.rel target = $region68
                $region73: #{net_forward.6} parent=65 // loop_exit
                  _
                %s1324 = sshrl.u32 %s993, 6
                %s1325 = sand.u32 %s993, 63
                %s1326 = smul.u32 %s1324, 64
                %s1327 = smul.u32 8, %s1326
                %s1328 = scalar_lea.vmem %s986, %s1327 [#allocation2]
                %s1329 = smul.u32 8, %s1326
                %s1330 = scalar_lea.vmem %s997, %s1329
                // While loop
                $region74: #{net_forward.6} parent=65 // loop_pre_header
                  _
                $region75: #{net_forward.6} parent=65 // loop_header
                  %s1332 = sphi 0, %s1334
                  %p1333 = scmp.ge.s32.totalorder %s1332, %s1325
                  %s1337 = sphi 0, %s1344
                  %s1338 = sphi %s1328, %s1347
                  %s1339 = sphi %s1330, %s1348
                $region76: #{net_forward.6} parent=65 // loop_header_branch
                  %1336 = sbr.rel (%p1333) target = $region80
                $region77: #{net_forward.6} parent=65 // loop_body
                  %v1340 = vld [vmem:[%s1338] sm:$0xff]
                  %1341 = vst [vmem:[%s1339] sm:$0xff] %v1340
                  %s1342 = sadd.s32 1, %s1337
                  %p1343 = scmp.ge.s32.totalorder %s1342, %s1325
                  %s1344 = scalar_select %p1343, 0, %s1342
                  %s1345 = smul.u32 %s1344, 8
                  %s1346 = smul.u32 %s1344, 8
                  %s1347 = scalar_lea.vmem %s1328, %s1345 [#allocation2]
                  %s1348 = scalar_lea.vmem %s1330, %s1346
                $region78: #{net_forward.6} parent=65 // loop_footer
                  %s1334 = sadd.s32 %s1332, 1
                $region79: #{net_forward.6} parent=65 // loop_footer_branch
                  %1331 = sbr.rel target = $region75
                $region80: #{net_forward.6} parent=65 // loop_exit
                  _
              $region66: #{net_forward.6} parent=43 // pred_fallthru
                _
              // Predicated region
              $region81: #{net_forward.6} parent=43 // pred_check
                _
              $region82: #{net_forward.6} parent=43 // pred_check_branch
                %1350 = sbr.rel target = $region84
              $region83: #{net_forward.6} parent=43 // pred_region
                _
              $region84: #{net_forward.6} parent=43 // pred_fallthru
                _
            $region44: #{net_forward.6} parent=39 // pred_fallthru
              _
            // Predicated region
            $region45: #{net_forward.6} parent=39 // pred_check
              _
            $region46: #{net_forward.6} parent=39 // pred_check_branch
              %1004 = sbr.rel target = $region48
            $region47: #{net_forward.6} parent=39 // pred_region
              %s1006 = ssub.s32 256, 1
              %s1007 = sshrl.u32 %s993, 6
              // While loop
              $region49: #{net_forward.6} parent=47 // loop_pre_header
                _
              $region50: #{net_forward.6} parent=47 // loop_header
                %s1009 = sphi 0, %s1011
                %p1010 = scmp.ge.s32.totalorder %s1009, %s1007
                %s1014 = sphi 0, %s1147
                %s1015 = sphi %s986, %s1150
                %s1016 = sphi %s997, %s1151
              $region51: #{net_forward.6} parent=47 // loop_header_branch
                %1013 = sbr.rel (%p1010) target = $region55
              $region52: #{net_forward.6} parent=47 // loop_body
                %v1017 = vld [vmem:[%s1015] sm:%s1006]
                %1018 = vst [vmem:[%s1016] sm:%s1006] %v1017
                %v1019 = vld [vmem:[%s1015 + $0x8] sm:%s1006]
                %1020 = vst [vmem:[%s1016 + $0x8] sm:%s1006] %v1019
                %v1021 = vld [vmem:[%s1015 + $0x10] sm:%s1006]
                %1022 = vst [vmem:[%s1016 + $0x10] sm:%s1006] %v1021
                %v1023 = vld [vmem:[%s1015 + $0x18] sm:%s1006]
                %1024 = vst [vmem:[%s1016 + $0x18] sm:%s1006] %v1023
                %v1025 = vld [vmem:[%s1015 + $0x20] sm:%s1006]
                %1026 = vst [vmem:[%s1016 + $0x20] sm:%s1006] %v1025
                %v1027 = vld [vmem:[%s1015 + $0x28] sm:%s1006]
                %1028 = vst [vmem:[%s1016 + $0x28] sm:%s1006] %v1027
                %v1029 = vld [vmem:[%s1015 + $0x30] sm:%s1006]
                %1030 = vst [vmem:[%s1016 + $0x30] sm:%s1006] %v1029
                %v1031 = vld [vmem:[%s1015 + $0x38] sm:%s1006]
                %1032 = vst [vmem:[%s1016 + $0x38] sm:%s1006] %v1031
                %v1033 = vld [vmem:[%s1015 + $0x40] sm:%s1006]
                %1034 = vst [vmem:[%s1016 + $0x40] sm:%s1006] %v1033
                %v1035 = vld [vmem:[%s1015 + $0x48] sm:%s1006]
                %1036 = vst [vmem:[%s1016 + $0x48] sm:%s1006] %v1035
                %v1037 = vld [vmem:[%s1015 + $0x50] sm:%s1006]
                %1038 = vst [vmem:[%s1016 + $0x50] sm:%s1006] %v1037
                %v1039 = vld [vmem:[%s1015 + $0x58] sm:%s1006]
                %1040 = vst [vmem:[%s1016 + $0x58] sm:%s1006] %v1039
                %v1041 = vld [vmem:[%s1015 + $0x60] sm:%s1006]
                %1042 = vst [vmem:[%s1016 + $0x60] sm:%s1006] %v1041
                %v1043 = vld [vmem:[%s1015 + $0x68] sm:%s1006]
                %1044 = vst [vmem:[%s1016 + $0x68] sm:%s1006] %v1043
                %v1045 = vld [vmem:[%s1015 + $0x70] sm:%s1006]
                %1046 = vst [vmem:[%s1016 + $0x70] sm:%s1006] %v1045
                %v1047 = vld [vmem:[%s1015 + $0x78] sm:%s1006]
                %1048 = vst [vmem:[%s1016 + $0x78] sm:%s1006] %v1047
                %v1049 = vld [vmem:[%s1015 + $0x80] sm:%s1006]
                %1050 = vst [vmem:[%s1016 + $0x80] sm:%s1006] %v1049
                %v1051 = vld [vmem:[%s1015 + $0x88] sm:%s1006]
                %1052 = vst [vmem:[%s1016 + $0x88] sm:%s1006] %v1051
                %v1053 = vld [vmem:[%s1015 + $0x90] sm:%s1006]
                %1054 = vst [vmem:[%s1016 + $0x90] sm:%s1006] %v1053
                %v1055 = vld [vmem:[%s1015 + $0x98] sm:%s1006]
                %1056 = vst [vmem:[%s1016 + $0x98] sm:%s1006] %v1055
                %v1057 = vld [vmem:[%s1015 + $0xa0] sm:%s1006]
                %1058 = vst [vmem:[%s1016 + $0xa0] sm:%s1006] %v1057
                %v1059 = vld [vmem:[%s1015 + $0xa8] sm:%s1006]
                %1060 = vst [vmem:[%s1016 + $0xa8] sm:%s1006] %v1059
                %v1061 = vld [vmem:[%s1015 + $0xb0] sm:%s1006]
                %1062 = vst [vmem:[%s1016 + $0xb0] sm:%s1006] %v1061
                %v1063 = vld [vmem:[%s1015 + $0xb8] sm:%s1006]
                %1064 = vst [vmem:[%s1016 + $0xb8] sm:%s1006] %v1063
                %v1065 = vld [vmem:[%s1015 + $0xc0] sm:%s1006]
                %1066 = vst [vmem:[%s1016 + $0xc0] sm:%s1006] %v1065
                %v1067 = vld [vmem:[%s1015 + $0xc8] sm:%s1006]
                %1068 = vst [vmem:[%s1016 + $0xc8] sm:%s1006] %v1067
                %v1069 = vld [vmem:[%s1015 + $0xd0] sm:%s1006]
                %1070 = vst [vmem:[%s1016 + $0xd0] sm:%s1006] %v1069
                %v1071 = vld [vmem:[%s1015 + $0xd8] sm:%s1006]
                %1072 = vst [vmem:[%s1016 + $0xd8] sm:%s1006] %v1071
                %v1073 = vld [vmem:[%s1015 + $0xe0] sm:%s1006]
                %1074 = vst [vmem:[%s1016 + $0xe0] sm:%s1006] %v1073
                %v1075 = vld [vmem:[%s1015 + $0xe8] sm:%s1006]
                %1076 = vst [vmem:[%s1016 + $0xe8] sm:%s1006] %v1075
                %v1077 = vld [vmem:[%s1015 + $0xf0] sm:%s1006]
                %1078 = vst [vmem:[%s1016 + $0xf0] sm:%s1006] %v1077
                %v1079 = vld [vmem:[%s1015 + $0xf8] sm:%s1006]
                %1080 = vst [vmem:[%s1016 + $0xf8] sm:%s1006] %v1079
                %v1081 = vld [vmem:[%s1015 + $0x100] sm:%s1006]
                %1082 = vst [vmem:[%s1016 + $0x100] sm:%s1006] %v1081
                %v1083 = vld [vmem:[%s1015 + $0x108] sm:%s1006]
                %1084 = vst [vmem:[%s1016 + $0x108] sm:%s1006] %v1083
                %v1085 = vld [vmem:[%s1015 + $0x110] sm:%s1006]
                %1086 = vst [vmem:[%s1016 + $0x110] sm:%s1006] %v1085
                %v1087 = vld [vmem:[%s1015 + $0x118] sm:%s1006]
                %1088 = vst [vmem:[%s1016 + $0x118] sm:%s1006] %v1087
                %v1089 = vld [vmem:[%s1015 + $0x120] sm:%s1006]
                %1090 = vst [vmem:[%s1016 + $0x120] sm:%s1006] %v1089
                %v1091 = vld [vmem:[%s1015 + $0x128] sm:%s1006]
                %1092 = vst [vmem:[%s1016 + $0x128] sm:%s1006] %v1091
                %v1093 = vld [vmem:[%s1015 + $0x130] sm:%s1006]
                %1094 = vst [vmem:[%s1016 + $0x130] sm:%s1006] %v1093
                %v1095 = vld [vmem:[%s1015 + $0x138] sm:%s1006]
                %1096 = vst [vmem:[%s1016 + $0x138] sm:%s1006] %v1095
                %v1097 = vld [vmem:[%s1015 + $0x140] sm:%s1006]
                %1098 = vst [vmem:[%s1016 + $0x140] sm:%s1006] %v1097
                %v1099 = vld [vmem:[%s1015 + $0x148] sm:%s1006]
                %1100 = vst [vmem:[%s1016 + $0x148] sm:%s1006] %v1099
                %v1101 = vld [vmem:[%s1015 + $0x150] sm:%s1006]
                %1102 = vst [vmem:[%s1016 + $0x150] sm:%s1006] %v1101
                %v1103 = vld [vmem:[%s1015 + $0x158] sm:%s1006]
                %1104 = vst [vmem:[%s1016 + $0x158] sm:%s1006] %v1103
                %v1105 = vld [vmem:[%s1015 + $0x160] sm:%s1006]
                %1106 = vst [vmem:[%s1016 + $0x160] sm:%s1006] %v1105
                %v1107 = vld [vmem:[%s1015 + $0x168] sm:%s1006]
                %1108 = vst [vmem:[%s1016 + $0x168] sm:%s1006] %v1107
                %v1109 = vld [vmem:[%s1015 + $0x170] sm:%s1006]
                %1110 = vst [vmem:[%s1016 + $0x170] sm:%s1006] %v1109
                %v1111 = vld [vmem:[%s1015 + $0x178] sm:%s1006]
                %1112 = vst [vmem:[%s1016 + $0x178] sm:%s1006] %v1111
                %v1113 = vld [vmem:[%s1015 + $0x180] sm:%s1006]
                %1114 = vst [vmem:[%s1016 + $0x180] sm:%s1006] %v1113
                %v1115 = vld [vmem:[%s1015 + $0x188] sm:%s1006]
                %1116 = vst [vmem:[%s1016 + $0x188] sm:%s1006] %v1115
                %v1117 = vld [vmem:[%s1015 + $0x190] sm:%s1006]
                %1118 = vst [vmem:[%s1016 + $0x190] sm:%s1006] %v1117
                %v1119 = vld [vmem:[%s1015 + $0x198] sm:%s1006]
                %1120 = vst [vmem:[%s1016 + $0x198] sm:%s1006] %v1119
                %v1121 = vld [vmem:[%s1015 + $0x1a0] sm:%s1006]
                %1122 = vst [vmem:[%s1016 + $0x1a0] sm:%s1006] %v1121
                %v1123 = vld [vmem:[%s1015 + $0x1a8] sm:%s1006]
                %1124 = vst [vmem:[%s1016 + $0x1a8] sm:%s1006] %v1123
                %v1125 = vld [vmem:[%s1015 + $0x1b0] sm:%s1006]
                %1126 = vst [vmem:[%s1016 + $0x1b0] sm:%s1006] %v1125
                %v1127 = vld [vmem:[%s1015 + $0x1b8] sm:%s1006]
                %1128 = vst [vmem:[%s1016 + $0x1b8] sm:%s1006] %v1127
                %v1129 = vld [vmem:[%s1015 + $0x1c0] sm:%s1006]
                %1130 = vst [vmem:[%s1016 + $0x1c0] sm:%s1006] %v1129
                %v1131 = vld [vmem:[%s1015 + $0x1c8] sm:%s1006]
                %1132 = vst [vmem:[%s1016 + $0x1c8] sm:%s1006] %v1131
                %v1133 = vld [vmem:[%s1015 + $0x1d0] sm:%s1006]
                %1134 = vst [vmem:[%s1016 + $0x1d0] sm:%s1006] %v1133
                %v1135 = vld [vmem:[%s1015 + $0x1d8] sm:%s1006]
                %1136 = vst [vmem:[%s1016 + $0x1d8] sm:%s1006] %v1135
                %v1137 = vld [vmem:[%s1015 + $0x1e0] sm:%s1006]
                %1138 = vst [vmem:[%s1016 + $0x1e0] sm:%s1006] %v1137
                %v1139 = vld [vmem:[%s1015 + $0x1e8] sm:%s1006]
                %1140 = vst [vmem:[%s1016 + $0x1e8] sm:%s1006] %v1139
                %v1141 = vld [vmem:[%s1015 + $0x1f0] sm:%s1006]
                %1142 = vst [vmem:[%s1016 + $0x1f0] sm:%s1006] %v1141
                %v1143 = vld [vmem:[%s1015 + $0x1f8] sm:%s1006]
                %1144 = vst [vmem:[%s1016 + $0x1f8] sm:%s1006] %v1143
                %s1145 = sadd.s32 1, %s1014
                %p1146 = scmp.ge.s32.totalorder %s1145, %s1007
                %s1147 = scalar_select %p1146, 0, %s1145
                %s1148 = smul.u32 %s1147, 512
                %s1149 = smul.u32 %s1147, 512
                %s1150 = scalar_lea.vmem %s986, %s1148 [#allocation2]
                %s1151 = scalar_lea.vmem %s997, %s1149
              $region53: #{net_forward.6} parent=47 // loop_footer
                %s1011 = sadd.s32 %s1009, 1
              $region54: #{net_forward.6} parent=47 // loop_footer_branch
                %1008 = sbr.rel target = $region50
              $region55: #{net_forward.6} parent=47 // loop_exit
                _
              %s1152 = sshrl.u32 %s993, 6
              %s1153 = sand.u32 %s993, 63
              %s1154 = smul.u32 %s1152, 64
              %s1155 = smul.u32 8, %s1154
              %s1156 = scalar_lea.vmem %s986, %s1155 [#allocation2]
              %s1157 = smul.u32 8, %s1154
              %s1158 = scalar_lea.vmem %s997, %s1157
              // While loop
              $region56: #{net_forward.6} parent=47 // loop_pre_header
                _
              $region57: #{net_forward.6} parent=47 // loop_header
                %s1160 = sphi 0, %s1162
                %p1161 = scmp.ge.s32.totalorder %s1160, %s1153
                %s1165 = sphi 0, %s1172
                %s1166 = sphi %s1156, %s1175
                %s1167 = sphi %s1158, %s1176
              $region58: #{net_forward.6} parent=47 // loop_header_branch
                %1164 = sbr.rel (%p1161) target = $region62
              $region59: #{net_forward.6} parent=47 // loop_body
                %v1168 = vld [vmem:[%s1166] sm:%s1006]
                %1169 = vst [vmem:[%s1167] sm:%s1006] %v1168
                %s1170 = sadd.s32 1, %s1165
                %p1171 = scmp.ge.s32.totalorder %s1170, %s1153
                %s1172 = scalar_select %p1171, 0, %s1170
                %s1173 = smul.u32 %s1172, 8
                %s1174 = smul.u32 %s1172, 8
                %s1175 = scalar_lea.vmem %s1156, %s1173 [#allocation2]
                %s1176 = scalar_lea.vmem %s1158, %s1174
              $region60: #{net_forward.6} parent=47 // loop_footer
                %s1162 = sadd.s32 %s1160, 1
              $region61: #{net_forward.6} parent=47 // loop_footer_branch
                %1159 = sbr.rel target = $region57
              $region62: #{net_forward.6} parent=47 // loop_exit
                _
            $region48: #{net_forward.6} parent=39 // pred_fallthru
              _
          $region40: #{net_forward.6} parent=35 // pred_fallthru
            _
          %1351 = vnop
        $region36: #{net_forward.6} parent=31 // pred_fallthru
          _
      $region32: #{net_forward.6} parent=5 // pred_fallthru
        _
      %p1352 = scmp.le.s32.totalorder 2, %s9
      // Predicated region
      $region85: #{net_forward.6} parent=5 // pred_check
        %p1353 = pneg %p1352
      $region86: #{net_forward.6} parent=5 // pred_check_branch
        %1355 = sbr.rel (%p1353) target = $region88
      $region87: #{net_forward.6} parent=5 // pred_region
        %s1356 = ssub.s32 %s9, 2
        // Predicated region
        $region89: #{net_forward.6} parent=87 // pred_check
          %p1357 = pneg %p106
        $region90: #{net_forward.6} parent=87 // pred_check_branch
          %1359 = sbr.rel (%p1357) target = $region92
        $region91: #{net_forward.6} parent=87 // pred_region
          %s1360 = sand.u32 %s91, 1
          %s1361 = sand.u32 %s91, 1
          %s1362 = smul.addr %s1361, 512
          %s1363 = scalar_lea.vmem [#allocation2], %s1362
        $region92: #{net_forward.6} parent=87 // pred_fallthru
          _
      $region88: #{net_forward.6} parent=5 // pred_fallthru
        _
    $region6: #{net_forward.6} parent=1 // loop_footer
      %s13 = sadd.s32 1, %s9
    $region7: #{net_forward.6} parent=1 // loop_footer_branch
      %8 = sbr.rel target = $region3
    $region8: #{net_forward.6} parent=1 // loop_exit
      _

// kernel: net_forward.7
$region0: #{net_forward.7}
  #allocation0 [shape = 'u32[]', space=smem, size = 0x4, offset = 0x4, fixed_abs, tag = 'smem constant byte address 0x4 - core index']
  #allocation1 [shape = 'u32[144,128]{1,0:T(1,128)}', space=vmem, size = 0x12000, scoped, tag = 'internal scratch']
  %s0 = inlined_call_operand.vmem [shape: f32[392,128], index: 0, kind: input, shape index: {}]
  %s1 = inlined_call_operand.vmem [shape: f32[392,128], index: 1, kind: input, shape index: {}]
  %s2 = inlined_call_operand.vmem [shape: f32[392,128], index: 2, kind: input, shape index: {}]
  %s3 = inlined_call_operand.vmem [shape: f32[392,128], index: 3, kind: input, shape index: {}]
  %s4 = inlined_call_operand.vmem [shape: f32[392,128], index: 4, kind: output, shape index: {}]
  %s5 = sld [smem:[#allocation0]]
  $region26: #{net_forward.7} parent=0
    _
  %s7 = ssub.s32 1, %s5
  %s8 = scalar_select 0, %s7, %s5
  // Predicated region
  $region2: #{net_forward.7} parent=0 // pred_check
    _
  $region3: #{net_forward.7} parent=0 // pred_check_branch
    %10 = sbr.rel (0) target = $region5
  $region4: #{net_forward.7} parent=0 // pred_region
    _
  $region5: #{net_forward.7} parent=0 // pred_fallthru
    _
  // Predicated region
  $region6: #{net_forward.7} parent=0 // pred_check
    _
  $region7: #{net_forward.7} parent=0 // pred_check_branch
    %12 = sbr.rel (0) target = $region9
  $region8: #{net_forward.7} parent=0 // pred_region
    _
  $region9: #{net_forward.7} parent=0 // pred_fallthru
    _
  // Predicated region
  $region10: #{net_forward.7} parent=0 // pred_check
    _
  $region11: #{net_forward.7} parent=0 // pred_check_branch
    %14 = sbr.rel (0) target = $region13
  $region12: #{net_forward.7} parent=0 // pred_region
    _
  $region13: #{net_forward.7} parent=0 // pred_fallthru
    _
  // Predicated region
  $region14: #{net_forward.7} parent=0 // pred_check
    _
  $region15: #{net_forward.7} parent=0 // pred_check_branch
    %16 = sbr.rel (0) target = $region17
  $region16: #{net_forward.7} parent=0 // pred_region
    _
  $region17: #{net_forward.7} parent=0 // pred_fallthru
    _
  %v17 = vld [vmem:[%s0] sm:$0xff]
  %v18 = vld [vmem:[%s0 + $0x8] sm:$0xff]
  %v19 = vld [vmem:[%s0 + $0x10] sm:$0xff]
  %v20 = vld [vmem:[%s0 + $0x18] sm:$0xff]
  %v21 = vld [vmem:[%s0 + $0x20] sm:$0xff]
  %v22 = vld [vmem:[%s0 + $0x28] sm:$0xff]
  %v23 = vld [vmem:[%s0 + $0x30] sm:$0xff]
  %v24 = vld [vmem:[%s0 + $0x38] sm:$0xff]
  %v25 = vld [vmem:[%s0 + $0x40] sm:$0xff]
  %v26 = vld [vmem:[%s0 + $0x48] sm:$0xff]
  %v27 = vld [vmem:[%s0 + $0x50] sm:$0xff]
  %v28 = vld [vmem:[%s0 + $0x58] sm:$0xff]
  %v29 = vld [vmem:[%s0 + $0x60] sm:$0xff]
  %v30 = vld [vmem:[%s0 + $0x68] sm:$0xff]
  %v31 = vld [vmem:[%s0 + $0x70] sm:$0xff]
  %v32 = vld [vmem:[%s0 + $0x78] sm:$0xff]
  %v33 = vld [vmem:[%s0 + $0x80] sm:$0xff]
  %v34 = vld [vmem:[%s0 + $0x88] sm:$0xff]
  %v35 = vld [vmem:[%s0 + $0x90] sm:$0xff]
  %v36 = vld [vmem:[%s0 + $0x98] sm:$0xff]
  %v37 = vld [vmem:[%s0 + $0xa0] sm:$0xff]
  %v38 = vld [vmem:[%s0 + $0xa8] sm:$0xff]
  %v39 = vld [vmem:[%s0 + $0xb0] sm:$0xff]
  %v40 = vld [vmem:[%s0 + $0xb8] sm:$0xff]
  %v41 = vld [vmem:[%s0 + $0xc0] sm:$0xff]
  %v42 = vld [vmem:[%s0 + $0xc8] sm:$0xff]
  %v43 = vld [vmem:[%s0 + $0xd0] sm:$0xff]
  %v44 = vld [vmem:[%s0 + $0xd8] sm:$0xff]
  %v45 = vld [vmem:[%s0 + $0xe0] sm:$0xff]
  %v46 = vld [vmem:[%s0 + $0xe8] sm:$0xff]
  %v47 = vld [vmem:[%s0 + $0xf0] sm:$0xff]
  %v48 = vld [vmem:[%s0 + $0xf8] sm:$0xff]
  %v49 = vld [vmem:[%s0 + $0x100] sm:$0xff]
  %v50 = vld [vmem:[%s0 + $0x108] sm:$0xff]
  %v51 = vld [vmem:[%s0 + $0x110] sm:$0xff]
  %v52 = vld [vmem:[%s0 + $0x118] sm:$0xff]
  %v53 = vld [vmem:[%s0 + $0x120] sm:$0xff]
  %v54 = vld [vmem:[%s0 + $0x128] sm:$0xff]
  %v55 = vld [vmem:[%s0 + $0x130] sm:$0xff]
  %v56 = vld [vmem:[%s0 + $0x138] sm:$0xff]
  %v57 = vld [vmem:[%s0 + $0x140] sm:$0xff]
  %v58 = vld [vmem:[%s0 + $0x148] sm:$0xff]
  %v59 = vld [vmem:[%s0 + $0x150] sm:$0xff]
  %v60 = vld [vmem:[%s0 + $0x158] sm:$0xff]
  %v61 = vld [vmem:[%s0 + $0x160] sm:$0xff]
  %v62 = vld [vmem:[%s0 + $0x168] sm:$0xff]
  %v63 = vld [vmem:[%s0 + $0x170] sm:$0xff]
  %v64 = vld [vmem:[%s0 + $0x178] sm:$0xff]
  %v65 = vld [vmem:[%s0 + $0x180] sm:$0xff]
  %v66 = vld [vmem:[%s1] sm:$0xff]
  %v67 = vld [vmem:[%s1 + $0x8] sm:$0xff]
  %v68 = vld [vmem:[%s1 + $0x10] sm:$0xff]
  %v69 = vld [vmem:[%s1 + $0x18] sm:$0xff]
  %v70 = vld [vmem:[%s1 + $0x20] sm:$0xff]
  %v71 = vld [vmem:[%s1 + $0x28] sm:$0xff]
  %v72 = vld [vmem:[%s1 + $0x30] sm:$0xff]
  %v73 = vld [vmem:[%s1 + $0x38] sm:$0xff]
  %v74 = vld [vmem:[%s1 + $0x40] sm:$0xff]
  %v75 = vld [vmem:[%s1 + $0x48] sm:$0xff]
  %v76 = vld [vmem:[%s1 + $0x50] sm:$0xff]
  %v77 = vld [vmem:[%s1 + $0x58] sm:$0xff]
  %v78 = vld [vmem:[%s1 + $0x60] sm:$0xff]
  %v79 = vld [vmem:[%s1 + $0x68] sm:$0xff]
  %v80 = vld [vmem:[%s1 + $0x70] sm:$0xff]
  %v81 = vld [vmem:[%s1 + $0x78] sm:$0xff]
  %v82 = vld [vmem:[%s1 + $0x80] sm:$0xff]
  %v83 = vld [vmem:[%s1 + $0x88] sm:$0xff]
  %v84 = vld [vmem:[%s1 + $0x90] sm:$0xff]
  %v85 = vld [vmem:[%s1 + $0x98] sm:$0xff]
  %v86 = vld [vmem:[%s1 + $0xa0] sm:$0xff]
  %v87 = vld [vmem:[%s1 + $0xa8] sm:$0xff]
  %v88 = vld [vmem:[%s1 + $0xb0] sm:$0xff]
  %v89 = vld [vmem:[%s1 + $0xb8] sm:$0xff]
  %v90 = vld [vmem:[%s1 + $0xc0] sm:$0xff]
  %v91 = vld [vmem:[%s1 + $0xc8] sm:$0xff]
  %v92 = vld [vmem:[%s1 + $0xd0] sm:$0xff]
  %v93 = vld [vmem:[%s1 + $0xd8] sm:$0xff]
  %v94 = vld [vmem:[%s1 + $0xe0] sm:$0xff]
  %v95 = vld [vmem:[%s1 + $0xe8] sm:$0xff]
  %v96 = vld [vmem:[%s1 + $0xf0] sm:$0xff]
  %v97 = vld [vmem:[%s1 + $0xf8] sm:$0xff]
  %v98 = vld [vmem:[%s1 + $0x100] sm:$0xff]
  %v99 = vld [vmem:[%s1 + $0x108] sm:$0xff]
  %v100 = vld [vmem:[%s1 + $0x110] sm:$0xff]
  %v101 = vld [vmem:[%s1 + $0x118] sm:$0xff]
  %v102 = vld [vmem:[%s1 + $0x120] sm:$0xff]
  %v103 = vld [vmem:[%s1 + $0x128] sm:$0xff]
  %v104 = vld [vmem:[%s1 + $0x130] sm:$0xff]
  %v105 = vld [vmem:[%s1 + $0x138] sm:$0xff]
  %v106 = vld [vmem:[%s1 + $0x140] sm:$0xff]
  %v107 = vld [vmem:[%s1 + $0x148] sm:$0xff]
  %v108 = vld [vmem:[%s1 + $0x150] sm:$0xff]
  %v109 = vld [vmem:[%s1 + $0x158] sm:$0xff]
  %v110 = vld [vmem:[%s1 + $0x160] sm:$0xff]
  %v111 = vld [vmem:[%s1 + $0x168] sm:$0xff]
  %v112 = vld [vmem:[%s1 + $0x170] sm:$0xff]
  %v113 = vld [vmem:[%s1 + $0x178] sm:$0xff]
  %v114 = vld [vmem:[%s1 + $0x180] sm:$0xff]
  %v115 = vmax.f32 %v17, %v66
  %v116 = vmax.f32 %v18, %v67
  %v117 = vmax.f32 %v19, %v68
  %v118 = vmax.f32 %v20, %v69
  %v119 = vmax.f32 %v21, %v70
  %v120 = vmax.f32 %v22, %v71
  %v121 = vmax.f32 %v23, %v72
  %v122 = vmax.f32 %v24, %v73
  %v123 = vmax.f32 %v25, %v74
  %v124 = vmax.f32 %v26, %v75
  %v125 = vmax.f32 %v27, %v76
  %v126 = vmax.f32 %v28, %v77
  %v127 = vmax.f32 %v29, %v78
  %v128 = vmax.f32 %v30, %v79
  %v129 = vmax.f32 %v31, %v80
  %v130 = vmax.f32 %v32, %v81
  %v131 = vmax.f32 %v33, %v82
  %v132 = vmax.f32 %v34, %v83
  %v133 = vmax.f32 %v35, %v84
  %v134 = vmax.f32 %v36, %v85
  %v135 = vmax.f32 %v37, %v86
  %v136 = vmax.f32 %v38, %v87
  %v137 = vmax.f32 %v39, %v88
  %v138 = vmax.f32 %v40, %v89
  %v139 = vmax.f32 %v41, %v90
  %v140 = vmax.f32 %v42, %v91
  %v141 = vmax.f32 %v43, %v92
  %v142 = vmax.f32 %v44, %v93
  %v143 = vmax.f32 %v45, %v94
  %v144 = vmax.f32 %v46, %v95
  %v145 = vmax.f32 %v47, %v96
  %v146 = vmax.f32 %v48, %v97
  %v147 = vmax.f32 %v49, %v98
  %v148 = vmax.f32 %v50, %v99
  %v149 = vmax.f32 %v51, %v100
  %v150 = vmax.f32 %v52, %v101
  %v151 = vmax.f32 %v53, %v102
  %v152 = vmax.f32 %v54, %v103
  %v153 = vmax.f32 %v55, %v104
  %v154 = vmax.f32 %v56, %v105
  %v155 = vmax.f32 %v57, %v106
  %v156 = vmax.f32 %v58, %v107
  %v157 = vmax.f32 %v59, %v108
  %v158 = vmax.f32 %v60, %v109
  %v159 = vmax.f32 %v61, %v110
  %v160 = vmax.f32 %v62, %v111
  %v161 = vmax.f32 %v63, %v112
  %v162 = vmax.f32 %v64, %v113
  %v163 = vmax.f32 %v65, %v114
  %v164 = vld [vmem:[%s2] sm:$0xff]
  %v165 = vld [vmem:[%s2 + $0x8] sm:$0xff]
  %v166 = vld [vmem:[%s2 + $0x10] sm:$0xff]
  %v167 = vld [vmem:[%s2 + $0x18] sm:$0xff]
  %v168 = vld [vmem:[%s2 + $0x20] sm:$0xff]
  %v169 = vld [vmem:[%s2 + $0x28] sm:$0xff]
  %v170 = vld [vmem:[%s2 + $0x30] sm:$0xff]
  %v171 = vld [vmem:[%s2 + $0x38] sm:$0xff]
  %v172 = vld [vmem:[%s2 + $0x40] sm:$0xff]
  %v173 = vld [vmem:[%s2 + $0x48] sm:$0xff]
  %v174 = vld [vmem:[%s2 + $0x50] sm:$0xff]
  %v175 = vld [vmem:[%s2 + $0x58] sm:$0xff]
  %v176 = vld [vmem:[%s2 + $0x60] sm:$0xff]
  %v177 = vld [vmem:[%s2 + $0x68] sm:$0xff]
  %v178 = vld [vmem:[%s2 + $0x70] sm:$0xff]
  %v179 = vld [vmem:[%s2 + $0x78] sm:$0xff]
  %v180 = vld [vmem:[%s2 + $0x80] sm:$0xff]
  %v181 = vld [vmem:[%s2 + $0x88] sm:$0xff]
  %v182 = vld [vmem:[%s2 + $0x90] sm:$0xff]
  %v183 = vld [vmem:[%s2 + $0x98] sm:$0xff]
  %v184 = vld [vmem:[%s2 + $0xa0] sm:$0xff]
  %v185 = vld [vmem:[%s2 + $0xa8] sm:$0xff]
  %v186 = vld [vmem:[%s2 + $0xb0] sm:$0xff]
  %v187 = vld [vmem:[%s2 + $0xb8] sm:$0xff]
  %v188 = vld [vmem:[%s2 + $0xc0] sm:$0xff]
  %v189 = vld [vmem:[%s2 + $0xc8] sm:$0xff]
  %v190 = vld [vmem:[%s2 + $0xd0] sm:$0xff]
  %v191 = vld [vmem:[%s2 + $0xd8] sm:$0xff]
  %v192 = vld [vmem:[%s2 + $0xe0] sm:$0xff]
  %v193 = vld [vmem:[%s2 + $0xe8] sm:$0xff]
  %v194 = vld [vmem:[%s2 + $0xf0] sm:$0xff]
  %v195 = vld [vmem:[%s2 + $0xf8] sm:$0xff]
  %v196 = vld [vmem:[%s2 + $0x100] sm:$0xff]
  %v197 = vld [vmem:[%s2 + $0x108] sm:$0xff]
  %v198 = vld [vmem:[%s2 + $0x110] sm:$0xff]
  %v199 = vld [vmem:[%s2 + $0x118] sm:$0xff]
  %v200 = vld [vmem:[%s2 + $0x120] sm:$0xff]
  %v201 = vld [vmem:[%s2 + $0x128] sm:$0xff]
  %v202 = vld [vmem:[%s2 + $0x130] sm:$0xff]
  %v203 = vld [vmem:[%s2 + $0x138] sm:$0xff]
  %v204 = vld [vmem:[%s2 + $0x140] sm:$0xff]
  %v205 = vld [vmem:[%s2 + $0x148] sm:$0xff]
  %v206 = vld [vmem:[%s2 + $0x150] sm:$0xff]
  %v207 = vld [vmem:[%s2 + $0x158] sm:$0xff]
  %v208 = vld [vmem:[%s2 + $0x160] sm:$0xff]
  %v209 = vld [vmem:[%s2 + $0x168] sm:$0xff]
  %v210 = vld [vmem:[%s2 + $0x170] sm:$0xff]
  %v211 = vld [vmem:[%s2 + $0x178] sm:$0xff]
  %v212 = vld [vmem:[%s2 + $0x180] sm:$0xff]
  %v213 = vld [vmem:[%s3] sm:$0xff]
  %v214 = vld [vmem:[%s3 + $0x8] sm:$0xff]
  %v215 = vld [vmem:[%s3 + $0x10] sm:$0xff]
  %v216 = vld [vmem:[%s3 + $0x18] sm:$0xff]
  %v217 = vld [vmem:[%s3 + $0x20] sm:$0xff]
  %v218 = vld [vmem:[%s3 + $0x28] sm:$0xff]
  %v219 = vld [vmem:[%s3 + $0x30] sm:$0xff]
  %v220 = vld [vmem:[%s3 + $0x38] sm:$0xff]
  %v221 = vld [vmem:[%s3 + $0x40] sm:$0xff]
  %v222 = vld [vmem:[%s3 + $0x48] sm:$0xff]
  %v223 = vld [vmem:[%s3 + $0x50] sm:$0xff]
  %v224 = vld [vmem:[%s3 + $0x58] sm:$0xff]
  %v225 = vld [vmem:[%s3 + $0x60] sm:$0xff]
  %v226 = vld [vmem:[%s3 + $0x68] sm:$0xff]
  %v227 = vld [vmem:[%s3 + $0x70] sm:$0xff]
  %v228 = vld [vmem:[%s3 + $0x78] sm:$0xff]
  %v229 = vld [vmem:[%s3 + $0x80] sm:$0xff]
  %v230 = vld [vmem:[%s3 + $0x88] sm:$0xff]
  %v231 = vld [vmem:[%s3 + $0x90] sm:$0xff]
  %v232 = vld [vmem:[%s3 + $0x98] sm:$0xff]
  %v233 = vld [vmem:[%s3 + $0xa0] sm:$0xff]
  %v234 = vld [vmem:[%s3 + $0xa8] sm:$0xff]
  %v235 = vld [vmem:[%s3 + $0xb0] sm:$0xff]
  %v236 = vld [vmem:[%s3 + $0xb8] sm:$0xff]
  %v237 = vld [vmem:[%s3 + $0xc0] sm:$0xff]
  %v238 = vld [vmem:[%s3 + $0xc8] sm:$0xff]
  %v239 = vld [vmem:[%s3 + $0xd0] sm:$0xff]
  %v240 = vld [vmem:[%s3 + $0xd8] sm:$0xff]
  %v241 = vld [vmem:[%s3 + $0xe0] sm:$0xff]
  %v242 = vld [vmem:[%s3 + $0xe8] sm:$0xff]
  %v243 = vld [vmem:[%s3 + $0xf0] sm:$0xff]
  %v244 = vld [vmem:[%s3 + $0xf8] sm:$0xff]
  %v245 = vld [vmem:[%s3 + $0x100] sm:$0xff]
  %v246 = vld [vmem:[%s3 + $0x108] sm:$0xff]
  %v247 = vld [vmem:[%s3 + $0x110] sm:$0xff]
  %v248 = vld [vmem:[%s3 + $0x118] sm:$0xff]
  %v249 = vld [vmem:[%s3 + $0x120] sm:$0xff]
  %v250 = vld [vmem:[%s3 + $0x128] sm:$0xff]
  %v251 = vld [vmem:[%s3 + $0x130] sm:$0xff]
  %v252 = vld [vmem:[%s3 + $0x138] sm:$0xff]
  %v253 = vld [vmem:[%s3 + $0x140] sm:$0xff]
  %v254 = vld [vmem:[%s3 + $0x148] sm:$0xff]
  %v255 = vld [vmem:[%s3 + $0x150] sm:$0xff]
  %v256 = vld [vmem:[%s3 + $0x158] sm:$0xff]
  %v257 = vld [vmem:[%s3 + $0x160] sm:$0xff]
  %v258 = vld [vmem:[%s3 + $0x168] sm:$0xff]
  %v259 = vld [vmem:[%s3 + $0x170] sm:$0xff]
  %v260 = vld [vmem:[%s3 + $0x178] sm:$0xff]
  %v261 = vld [vmem:[%s3 + $0x180] sm:$0xff]
  %v262 = vmax.f32 %v164, %v213
  %v263 = vmax.f32 %v165, %v214
  %v264 = vmax.f32 %v166, %v215
  %v265 = vmax.f32 %v167, %v216
  %v266 = vmax.f32 %v168, %v217
  %v267 = vmax.f32 %v169, %v218
  %v268 = vmax.f32 %v170, %v219
  %v269 = vmax.f32 %v171, %v220
  %v270 = vmax.f32 %v172, %v221
  %v271 = vmax.f32 %v173, %v222
  %v272 = vmax.f32 %v174, %v223
  %v273 = vmax.f32 %v175, %v224
  %v274 = vmax.f32 %v176, %v225
  %v275 = vmax.f32 %v177, %v226
  %v276 = vmax.f32 %v178, %v227
  %v277 = vmax.f32 %v179, %v228
  %v278 = vmax.f32 %v180, %v229
  %v279 = vmax.f32 %v181, %v230
  %v280 = vmax.f32 %v182, %v231
  %v281 = vmax.f32 %v183, %v232
  %v282 = vmax.f32 %v184, %v233
  %v283 = vmax.f32 %v185, %v234
  %v284 = vmax.f32 %v186, %v235
  %v285 = vmax.f32 %v187, %v236
  %v286 = vmax.f32 %v188, %v237
  %v287 = vmax.f32 %v189, %v238
  %v288 = vmax.f32 %v190, %v239
  %v289 = vmax.f32 %v191, %v240
  %v290 = vmax.f32 %v192, %v241
  %v291 = vmax.f32 %v193, %v242
  %v292 = vmax.f32 %v194, %v243
  %v293 = vmax.f32 %v195, %v244
  %v294 = vmax.f32 %v196, %v245
  %v295 = vmax.f32 %v197, %v246
  %v296 = vmax.f32 %v198, %v247
  %v297 = vmax.f32 %v199, %v248
  %v298 = vmax.f32 %v200, %v249
  %v299 = vmax.f32 %v201, %v250
  %v300 = vmax.f32 %v202, %v251
  %v301 = vmax.f32 %v203, %v252
  %v302 = vmax.f32 %v204, %v253
  %v303 = vmax.f32 %v205, %v254
  %v304 = vmax.f32 %v206, %v255
  %v305 = vmax.f32 %v207, %v256
  %v306 = vmax.f32 %v208, %v257
  %v307 = vmax.f32 %v209, %v258
  %v308 = vmax.f32 %v210, %v259
  %v309 = vmax.f32 %v211, %v260
  %v310 = vmax.f32 %v212, %v261
  %v311 = vmax.f32 %v115, %v262
  %v312 = vmax.f32 %v116, %v263
  %v313 = vmax.f32 %v117, %v264
  %v314 = vmax.f32 %v118, %v265
  %v315 = vmax.f32 %v119, %v266
  %v316 = vmax.f32 %v120, %v267
  %v317 = vmax.f32 %v121, %v268
  %v318 = vmax.f32 %v122, %v269
  %v319 = vmax.f32 %v123, %v270
  %v320 = vmax.f32 %v124, %v271
  %v321 = vmax.f32 %v125, %v272
  %v322 = vmax.f32 %v126, %v273
  %v323 = vmax.f32 %v127, %v274
  %v324 = vmax.f32 %v128, %v275
  %v325 = vmax.f32 %v129, %v276
  %v326 = vmax.f32 %v130, %v277
  %v327 = vmax.f32 %v131, %v278
  %v328 = vmax.f32 %v132, %v279
  %v329 = vmax.f32 %v133, %v280
  %v330 = vmax.f32 %v134, %v281
  %v331 = vmax.f32 %v135, %v282
  %v332 = vmax.f32 %v136, %v283
  %v333 = vmax.f32 %v137, %v284
  %v334 = vmax.f32 %v138, %v285
  %v335 = vmax.f32 %v139, %v286
  %v336 = vmax.f32 %v140, %v287
  %v337 = vmax.f32 %v141, %v288
  %v338 = vmax.f32 %v142, %v289
  %v339 = vmax.f32 %v143, %v290
  %v340 = vmax.f32 %v144, %v291
  %v341 = vmax.f32 %v145, %v292
  %v342 = vmax.f32 %v146, %v293
  %v343 = vmax.f32 %v147, %v294
  %v344 = vmax.f32 %v148, %v295
  %v345 = vmax.f32 %v149, %v296
  %v346 = vmax.f32 %v150, %v297
  %v347 = vmax.f32 %v151, %v298
  %v348 = vmax.f32 %v152, %v299
  %v349 = vmax.f32 %v153, %v300
  %v350 = vmax.f32 %v154, %v301
  %v351 = vmax.f32 %v155, %v302
  %v352 = vmax.f32 %v156, %v303
  %v353 = vmax.f32 %v157, %v304
  %v354 = vmax.f32 %v158, %v305
  %v355 = vmax.f32 %v159, %v306
  %v356 = vmax.f32 %v160, %v307
  %v357 = vmax.f32 %v161, %v308
  %v358 = vmax.f32 %v162, %v309
  %v359 = vmax.f32 %v163, %v310
  %360 = vst [vmem:[%s4] sm:$0xff] %v311
  %361 = vst [vmem:[%s4 + $0x8] sm:$0xff] %v312
  %362 = vst [vmem:[%s4 + $0x10] sm:$0xff] %v313
  %363 = vst [vmem:[%s4 + $0x18] sm:$0xff] %v314
  %364 = vst [vmem:[%s4 + $0x20] sm:$0xff] %v315
  %365 = vst [vmem:[%s4 + $0x28] sm:$0xff] %v316
  %366 = vst [vmem:[%s4 + $0x30] sm:$0xff] %v317
  %367 = vst [vmem:[%s4 + $0x38] sm:$0xff] %v318
  %368 = vst [vmem:[%s4 + $0x40] sm:$0xff] %v319
  %369 = vst [vmem:[%s4 + $0x48] sm:$0xff] %v320
  %370 = vst [vmem:[%s4 + $0x50] sm:$0xff] %v321
  %371 = vst [vmem:[%s4 + $0x58] sm:$0xff] %v322
  %372 = vst [vmem:[%s4 + $0x60] sm:$0xff] %v323
  %373 = vst [vmem:[%s4 + $0x68] sm:$0xff] %v324
  %374 = vst [vmem:[%s4 + $0x70] sm:$0xff] %v325
  %375 = vst [vmem:[%s4 + $0x78] sm:$0xff] %v326
  %376 = vst [vmem:[%s4 + $0x80] sm:$0xff] %v327
  %377 = vst [vmem:[%s4 + $0x88] sm:$0xff] %v328
  %378 = vst [vmem:[%s4 + $0x90] sm:$0xff] %v329
  %379 = vst [vmem:[%s4 + $0x98] sm:$0xff] %v330
  %380 = vst [vmem:[%s4 + $0xa0] sm:$0xff] %v331
  %381 = vst [vmem:[%s4 + $0xa8] sm:$0xff] %v332
  %382 = vst [vmem:[%s4 + $0xb0] sm:$0xff] %v333
  %383 = vst [vmem:[%s4 + $0xb8] sm:$0xff] %v334
  %384 = vst [vmem:[%s4 + $0xc0] sm:$0xff] %v335
  %385 = vst [vmem:[%s4 + $0xc8] sm:$0xff] %v336
  %386 = vst [vmem:[%s4 + $0xd0] sm:$0xff] %v337
  %387 = vst [vmem:[%s4 + $0xd8] sm:$0xff] %v338
  %388 = vst [vmem:[%s4 + $0xe0] sm:$0xff] %v339
  %389 = vst [vmem:[%s4 + $0xe8] sm:$0xff] %v340
  %390 = vst [vmem:[%s4 + $0xf0] sm:$0xff] %v341
  %391 = vst [vmem:[%s4 + $0xf8] sm:$0xff] %v342
  %392 = vst [vmem:[%s4 + $0x100] sm:$0xff] %v343
  %393 = vst [vmem:[%s4 + $0x108] sm:$0xff] %v344
  %394 = vst [vmem:[%s4 + $0x110] sm:$0xff] %v345
  %395 = vst [vmem:[%s4 + $0x118] sm:$0xff] %v346
  %396 = vst [vmem:[%s4 + $0x120] sm:$0xff] %v347
  %397 = vst [vmem:[%s4 + $0x128] sm:$0xff] %v348
  %398 = vst [vmem:[%s4 + $0x130] sm:$0xff] %v349
  %399 = vst [vmem:[%s4 + $0x138] sm:$0xff] %v350
  %400 = vst [vmem:[%s4 + $0x140] sm:$0xff] %v351
  %401 = vst [vmem:[%s4 + $0x148] sm:$0xff] %v352
  %402 = vst [vmem:[%s4 + $0x150] sm:$0xff] %v353
  %403 = vst [vmem:[%s4 + $0x158] sm:$0xff] %v354
  %404 = vst [vmem:[%s4 + $0x160] sm:$0xff] %v355
  %405 = vst [vmem:[%s4 + $0x168] sm:$0xff] %v356
  %406 = vst [vmem:[%s4 + $0x170] sm:$0xff] %v357
  %407 = vst [vmem:[%s4 + $0x178] sm:$0xff] %v358
  %408 = vst [vmem:[%s4 + $0x180] sm:$0xff] %v359
  // Predicated region
  $region18: #{net_forward.7} parent=0 // pred_check
    _
  $region19: #{net_forward.7} parent=0 // pred_check_branch
    %410 = sbr.rel (0) target = $region21
  $region20: #{net_forward.7} parent=0 // pred_region
    _
  $region21: #{net_forward.7} parent=0 // pred_fallthru
    _
  // Predicated region
  $region22: #{net_forward.7} parent=0 // pred_check
    _
  $region23: #{net_forward.7} parent=0 // pred_check_branch
    %412 = sbr.rel (0) target = $region25
  $region24: #{net_forward.7} parent=0 // pred_region
    _
  $region25: #{net_forward.7} parent=0 // pred_fallthru
    _

// kernel: net_forward.8
$region0: #{net_forward.8}
  #allocation0 [shape = 'u32[]', space=smem, size = 0x4, offset = 0x4, fixed_abs, tag = 'smem constant byte address 0x4 - core index']
  #allocation1 [shape = 'u32[144,128]{1,0:T(1,128)}', space=vmem, size = 0x12000, scoped, tag = 'internal scratch']
  %s0 = inlined_call_operand.vmem [shape: f32[200,500], index: 0, kind: input, shape index: {}]
  %s1 = inlined_call_operand.vmem [shape: f32[500,128], index: 1, kind: input, shape index: {}]
  %s2 = inlined_call_operand.vmem [shape: f32[1,128], index: 2, kind: input, shape index: {}]
  %s3 = inlined_call_operand.vmem [shape: f32[200,128], index: 3, kind: output, shape index: {}]
  %s4 = sld [smem:[#allocation0]]
  $region22: #{net_forward.8} parent=0
    _
  %s6 = ssub.s32 1, %s4
  %s7 = scalar_select 0, %s6, %s4
  // Predicated region
  $region2: #{net_forward.8} parent=0 // pred_check
    _
  $region3: #{net_forward.8} parent=0 // pred_check_branch
    %9 = sbr.rel (0) target = $region5
  $region4: #{net_forward.8} parent=0 // pred_region
    _
  $region5: #{net_forward.8} parent=0 // pred_fallthru
    _
  // Predicated region
  $region6: #{net_forward.8} parent=0 // pred_check
    _
  $region7: #{net_forward.8} parent=0 // pred_check_branch
    %11 = sbr.rel (0) target = $region9
  $region8: #{net_forward.8} parent=0 // pred_region
    _
  $region9: #{net_forward.8} parent=0 // pred_fallthru
    _
  // Predicated region
  $region10: #{net_forward.8} parent=0 // pred_check
    _
  $region11: #{net_forward.8} parent=0 // pred_check_branch
    %13 = sbr.rel (0) target = $region13
  $region12: #{net_forward.8} parent=0 // pred_region
    _
  $region13: #{net_forward.8} parent=0 // pred_fallthru
    _
  %v14 = vld [vmem:[%s0] sm:$0xff]
  %v15 = vld [vmem:[%s0 + $0x8] sm:$0xff]
  %v16 = vld [vmem:[%s0 + $0x10] sm:$0xff]
  %v17 = vld [vmem:[%s0 + $0x18] sm:$0xff]
  %v18 = vld [vmem:[%s0 + $0x20] sm:$0xff]
  %v19 = vld [vmem:[%s0 + $0x28] sm:$0xff]
  %v20 = vld [vmem:[%s0 + $0x30] sm:$0xff]
  %v21 = vld [vmem:[%s0 + $0x38] sm:$0xff]
  %v22 = vld [vmem:[%s0 + $0x40] sm:$0xff]
  %v23 = vld [vmem:[%s0 + $0x48] sm:$0xff]
  %v24 = vld [vmem:[%s0 + $0x50] sm:$0xff]
  %v25 = vld [vmem:[%s0 + $0x58] sm:$0xff]
  %v26 = vld [vmem:[%s0 + $0x60] sm:$0xff]
  %v27 = vld [vmem:[%s0 + $0x68] sm:$0xff]
  %v28 = vld [vmem:[%s0 + $0x70] sm:$0xff]
  %v29 = vld [vmem:[%s0 + $0x78] sm:$0xff]
  %v30 = vld [vmem:[%s0 + $0x80] sm:$0xff]
  %v31 = vld [vmem:[%s0 + $0x88] sm:$0xff]
  %v32 = vld [vmem:[%s0 + $0x90] sm:$0xff]
  %v33 = vld [vmem:[%s0 + $0x98] sm:$0xff]
  %v34 = vld [vmem:[%s0 + $0xa0] sm:$0xff]
  %v35 = vld [vmem:[%s0 + $0xa8] sm:$0xff]
  %v36 = vld [vmem:[%s0 + $0xb0] sm:$0xff]
  %v37 = vld [vmem:[%s0 + $0xb8] sm:$0xff]
  %v38 = vld [vmem:[%s0 + $0xc0] sm:$0xff]
  %v39 = vld [vmem:[%s0 + $0xc8] sm:$0xff]
  %v40 = vld [vmem:[%s0 + $0xd0] sm:$0xff]
  %v41 = vld [vmem:[%s0 + $0xd8] sm:$0xff]
  %v42 = vld [vmem:[%s0 + $0xe0] sm:$0xff]
  %v43 = vld [vmem:[%s0 + $0xe8] sm:$0xff]
  %v44 = vld [vmem:[%s0 + $0xf0] sm:$0xff]
  %v45 = vld [vmem:[%s0 + $0xf8] sm:$0xff]
  %v46 = vld [vmem:[%s0 + $0x100] sm:$0xff]
  %v47 = vld [vmem:[%s0 + $0x108] sm:$0xff]
  %v48 = vld [vmem:[%s0 + $0x110] sm:$0xff]
  %v49 = vld [vmem:[%s0 + $0x118] sm:$0xff]
  %v50 = vld [vmem:[%s0 + $0x120] sm:$0xff]
  %v51 = vld [vmem:[%s0 + $0x128] sm:$0xff]
  %v52 = vld [vmem:[%s0 + $0x130] sm:$0xff]
  %v53 = vld [vmem:[%s0 + $0x138] sm:$0xff]
  %v54 = vld [vmem:[%s0 + $0x140] sm:$0xff]
  %v55 = vld [vmem:[%s0 + $0x148] sm:$0xff]
  %v56 = vld [vmem:[%s0 + $0x150] sm:$0xff]
  %v57 = vld [vmem:[%s0 + $0x158] sm:$0xff]
  %v58 = vld [vmem:[%s0 + $0x160] sm:$0xff]
  %v59 = vld [vmem:[%s0 + $0x168] sm:$0xff]
  %v60 = vld [vmem:[%s0 + $0x170] sm:$0xff]
  %v61 = vld [vmem:[%s0 + $0x178] sm:$0xff]
  %v62 = vld [vmem:[%s0 + $0x180] sm:$0xff]
  %v63 = vld [vmem:[%s0 + $0x188] sm:$0xff]
  %v64 = vld [vmem:[%s0 + $0x190] sm:$0xff]
  %v65 = vld [vmem:[%s0 + $0x198] sm:$0xff]
  %v66 = vld [vmem:[%s0 + $0x1a0] sm:$0xff]
  %v67 = vld [vmem:[%s0 + $0x1a8] sm:$0xff]
  %v68 = vld [vmem:[%s0 + $0x1b0] sm:$0xff]
  %v69 = vld [vmem:[%s0 + $0x1b8] sm:$0xff]
  %v70 = vld [vmem:[%s0 + $0x1c0] sm:$0xff]
  %v71 = vld [vmem:[%s0 + $0x1c8] sm:$0xff]
  %v72 = vld [vmem:[%s0 + $0x1d0] sm:$0xff]
  %v73 = vld [vmem:[%s0 + $0x1d8] sm:$0xff]
  %v74 = vld [vmem:[%s0 + $0x1e0] sm:$0xff]
  %v75 = vld [vmem:[%s0 + $0x1e8] sm:$0xff]
  %v76 = vld [vmem:[%s0 + $0x1f0] sm:$0xff]
  %v77 = vld [vmem:[%s0 + $0x1f8] sm:$0xff]
  %v78 = vld [vmem:[%s0 + $0x200] sm:$0xff]
  %v79 = vld [vmem:[%s0 + $0x208] sm:$0xff]
  %v80 = vld [vmem:[%s0 + $0x210] sm:$0xff]
  %v81 = vld [vmem:[%s0 + $0x218] sm:$0xff]
  %v82 = vld [vmem:[%s0 + $0x220] sm:$0xff]
  %v83 = vld [vmem:[%s0 + $0x228] sm:$0xff]
  %v84 = vld [vmem:[%s0 + $0x230] sm:$0xff]
  %v85 = vld [vmem:[%s0 + $0x238] sm:$0xff]
  %v86 = vld [vmem:[%s0 + $0x240] sm:$0xff]
  %v87 = vld [vmem:[%s0 + $0x248] sm:$0xff]
  %v88 = vld [vmem:[%s0 + $0x250] sm:$0xff]
  %v89 = vld [vmem:[%s0 + $0x258] sm:$0xff]
  %v90 = vld [vmem:[%s0 + $0x260] sm:$0xff]
  %v91 = vld [vmem:[%s0 + $0x268] sm:$0xff]
  %v92 = vld [vmem:[%s0 + $0x270] sm:$0xff]
  %v93 = vld [vmem:[%s0 + $0x278] sm:$0xff]
  %v94 = vld [vmem:[%s0 + $0x280] sm:$0xff]
  %v95 = vld [vmem:[%s0 + $0x288] sm:$0xff]
  %v96 = vld [vmem:[%s0 + $0x290] sm:$0xff]
  %v97 = vld [vmem:[%s0 + $0x298] sm:$0xff]
  %v98 = vld [vmem:[%s0 + $0x2a0] sm:$0xff]
  %v99 = vld [vmem:[%s0 + $0x2a8] sm:$0xff]
  %v100 = vld [vmem:[%s0 + $0x2b0] sm:$0xff]
  %v101 = vld [vmem:[%s0 + $0x2b8] sm:$0xff]
  %v102 = vld [vmem:[%s0 + $0x2c0] sm:$0xff]
  %v103 = vld [vmem:[%s0 + $0x2c8] sm:$0xff]
  %v104 = vld [vmem:[%s0 + $0x2d0] sm:$0xff]
  %v105 = vld [vmem:[%s0 + $0x2d8] sm:$0xff]
  %v106 = vld [vmem:[%s0 + $0x2e0] sm:$0xff]
  %v107 = vld [vmem:[%s0 + $0x2e8] sm:$0xff]
  %v108 = vld [vmem:[%s0 + $0x2f0] sm:$0xff]
  %v109 = vld [vmem:[%s0 + $0x2f8] sm:$0xff]
  %v110 = vld [vmem:[%s0 + $0x300] sm:$0xff]
  %v111 = vld [vmem:[%s0 + $0x308] sm:$0xff]
  %v112 = vld [vmem:[%s0 + $0x310] sm:$0xff]
  %v113 = vld [vmem:[%s0 + $0x318] sm:$0xff]
  %v114 = vld [vmem:[%s1] sm:$0xff]
  %v115 = vld [vmem:[%s1 + $0x8] sm:$0xff]
  %v116 = vld [vmem:[%s1 + $0x10] sm:$0xff]
  %v117 = vld [vmem:[%s1 + $0x18] sm:$0xff]
  %v118 = vld [vmem:[%s1 + $0x20] sm:$0xff]
  %v119 = vld [vmem:[%s1 + $0x28] sm:$0xff]
  %v120 = vld [vmem:[%s1 + $0x30] sm:$0xff]
  %v121 = vld [vmem:[%s1 + $0x38] sm:$0xff]
  %v122 = vld [vmem:[%s1 + $0x40] sm:$0xff]
  %v123 = vld [vmem:[%s1 + $0x48] sm:$0xff]
  %v124 = vld [vmem:[%s1 + $0x50] sm:$0xff]
  %v125 = vld [vmem:[%s1 + $0x58] sm:$0xff]
  %v126 = vld [vmem:[%s1 + $0x60] sm:$0xff]
  %v127 = vld [vmem:[%s1 + $0x68] sm:$0xff]
  %v128 = vld [vmem:[%s1 + $0x70] sm:$0xff]
  %v129 = vld [vmem:[%s1 + $0x78] sm:$0xff]
  %v130 = vld [vmem:[%s1 + $0x80] sm:$0xff]
  %v131 = vld [vmem:[%s1 + $0x88] sm:$0xff]
  %v132 = vld [vmem:[%s1 + $0x90] sm:$0xff]
  %v133 = vld [vmem:[%s1 + $0x98] sm:$0xff]
  %v134 = vld [vmem:[%s1 + $0xa0] sm:$0xff]
  %v135 = vld [vmem:[%s1 + $0xa8] sm:$0xff]
  %v136 = vld [vmem:[%s1 + $0xb0] sm:$0xff]
  %v137 = vld [vmem:[%s1 + $0xb8] sm:$0xff]
  %v138 = vld [vmem:[%s1 + $0xc0] sm:$0xff]
  %v139 = vld [vmem:[%s1 + $0xc8] sm:$0xff]
  %v140 = vld [vmem:[%s1 + $0xd0] sm:$0xff]
  %v141 = vld [vmem:[%s1 + $0xd8] sm:$0xff]
  %v142 = vld [vmem:[%s1 + $0xe0] sm:$0xff]
  %v143 = vld [vmem:[%s1 + $0xe8] sm:$0xff]
  %v144 = vld [vmem:[%s1 + $0xf0] sm:$0xff]
  %v145 = vld [vmem:[%s1 + $0xf8] sm:$0xff]
  %v146 = vld [vmem:[%s1 + $0x100] sm:$0xff]
  %v147 = vld [vmem:[%s1 + $0x108] sm:$0xff]
  %v148 = vld [vmem:[%s1 + $0x110] sm:$0xff]
  %v149 = vld [vmem:[%s1 + $0x118] sm:$0xff]
  %v150 = vld [vmem:[%s1 + $0x120] sm:$0xff]
  %v151 = vld [vmem:[%s1 + $0x128] sm:$0xff]
  %v152 = vld [vmem:[%s1 + $0x130] sm:$0xff]
  %v153 = vld [vmem:[%s1 + $0x138] sm:$0xff]
  %v154 = vld [vmem:[%s1 + $0x140] sm:$0xff]
  %v155 = vld [vmem:[%s1 + $0x148] sm:$0xff]
  %v156 = vld [vmem:[%s1 + $0x150] sm:$0xff]
  %v157 = vld [vmem:[%s1 + $0x158] sm:$0xff]
  %v158 = vld [vmem:[%s1 + $0x160] sm:$0xff]
  %v159 = vld [vmem:[%s1 + $0x168] sm:$0xff]
  %v160 = vld [vmem:[%s1 + $0x170] sm:$0xff]
  %v161 = vld [vmem:[%s1 + $0x178] sm:$0xff]
  %v162 = vld [vmem:[%s1 + $0x180] sm:$0xff]
  %v163 = vld [vmem:[%s1 + $0x188] sm:$0xff]
  %v164 = vld [vmem:[%s1 + $0x190] sm:$0xff]
  %v165 = vld [vmem:[%s1 + $0x198] sm:$0xff]
  %v166 = vld [vmem:[%s1 + $0x1a0] sm:$0xff]
  %v167 = vld [vmem:[%s1 + $0x1a8] sm:$0xff]
  %v168 = vld [vmem:[%s1 + $0x1b0] sm:$0xff]
  %v169 = vld [vmem:[%s1 + $0x1b8] sm:$0xff]
  %v170 = vld [vmem:[%s1 + $0x1c0] sm:$0xff]
  %v171 = vld [vmem:[%s1 + $0x1c8] sm:$0xff]
  %v172 = vld [vmem:[%s1 + $0x1d0] sm:$0xff]
  %v173 = vld [vmem:[%s1 + $0x1d8] sm:$0xff]
  %v174 = vld [vmem:[%s1 + $0x1e0] sm:$0xff]
  %v175 = vld [vmem:[%s1 + $0x1e8] sm:$0xff]
  %v176 = vld [vmem:[%s1 + $0x1f0] sm:$0xf]
  %v177 = vld [vmem:[%s2] sm:$0x1]
  %v179 = vlaneseq
  %v180 = vshrl.u32 %v179, 7
  %v181 = vsub.s32 0, %v180
  %v182 = vrot.slane %v177, %v181
  %vm184 = vcmask 949248
  %v186 = vsel %vm184, %v17, 0
  %v189 = vsel %vm184, %v21, 0
  %v192 = vsel %vm184, %v25, 0
  %v195 = vsel %vm184, %v29, 0
  %v198 = vsel %vm184, %v33, 0
  %v201 = vsel %vm184, %v37, 0
  %v204 = vsel %vm184, %v41, 0
  %v207 = vsel %vm184, %v45, 0
  %v210 = vsel %vm184, %v49, 0
  %v213 = vsel %vm184, %v53, 0
  %v216 = vsel %vm184, %v57, 0
  %v219 = vsel %vm184, %v61, 0
  %v222 = vsel %vm184, %v65, 0
  %v225 = vsel %vm184, %v69, 0
  %v228 = vsel %vm184, %v73, 0
  %v231 = vsel %vm184, %v77, 0
  %v234 = vsel %vm184, %v81, 0
  %v237 = vsel %vm184, %v85, 0
  %v240 = vsel %vm184, %v89, 0
  %v243 = vsel %vm184, %v93, 0
  %v246 = vsel %vm184, %v97, 0
  %v249 = vsel %vm184, %v101, 0
  %v252 = vsel %vm184, %v105, 0
  %v255 = vsel %vm184, %v109, 0
  %v258 = vsel %vm184, %v113, 0
  %vm260 = vcmask 1043456
  %v262 = vsel %vm260, %v176, 0
  %264 = vmatprep.subr.mxu0 0.0
  %265 = vmatpush1.msra.mxu0 %v129
  %266 = vmatprep.subr.mxu0 0.0
  %267 = vmatpush1.msra.mxu0 %v128
  %268 = vmatprep.subr.mxu0 0.0
  %269 = vmatpush1.msra.mxu0 %v127
  %270 = vmatprep.subr.mxu0 0.0
  %271 = vmatpush1.msra.mxu0 %v126
  %272 = vmatprep.subr.mxu0 0.0
  %273 = vmatpush1.msra.mxu0 %v125
  %274 = vmatprep.subr.mxu0 0.0
  %275 = vmatpush1.msra.mxu0 %v124
  %276 = vmatprep.subr.mxu0 0.0
  %277 = vmatpush1.msra.mxu0 %v123
  %278 = vmatprep.subr.mxu0 0.0
  %279 = vmatpush1.msra.mxu0 %v122
  %280 = vmatprep.subr.mxu0 0.0
  %281 = vmatpush1.msra.mxu0 %v121
  %282 = vmatprep.subr.mxu0 0.0
  %283 = vmatpush1.msra.mxu0 %v120
  %284 = vmatprep.subr.mxu0 0.0
  %285 = vmatpush1.msra.mxu0 %v119
  %286 = vmatprep.subr.mxu0 0.0
  %287 = vmatpush1.msra.mxu0 %v118
  %288 = vmatprep.subr.mxu0 0.0
  %289 = vmatpush1.msra.mxu0 %v117
  %290 = vmatprep.subr.mxu0 0.0
  %291 = vmatpush1.msra.mxu0 %v116
  %292 = vmatprep.subr.mxu0 0.0
  %293 = vmatpush1.msra.mxu0 %v115
  %294 = vmatprep.subr.mxu0 0.0
  %295 = vmatpush1.msra.mxu0 %v114
  %296 = vmatprep.subr.mxu0 0.0
  %297 = vmatpush2.msra.mxu0 %v145
  %298 = vmatprep.subr.mxu0 0.0
  %299 = vmatpush2.msra.mxu0 %v144
  %300 = vmatprep.subr.mxu0 0.0
  %301 = vmatpush2.msra.mxu0 %v143
  %302 = vmatprep.subr.mxu0 0.0
  %303 = vmatpush2.msra.mxu0 %v142
  %304 = vmatprep.subr.mxu0 0.0
  %305 = vmatpush2.msra.mxu0 %v141
  %306 = vmatprep.subr.mxu0 0.0
  %307 = vmatpush2.msra.mxu0 %v140
  %308 = vmatprep.subr.mxu0 0.0
  %309 = vmatpush2.msra.mxu0 %v139
  %310 = vmatprep.subr.mxu0 0.0
  %311 = vmatpush2.msra.mxu0 %v138
  %312 = vmatprep.subr.mxu0 0.0
  %313 = vmatpush2.msra.mxu0 %v137
  %314 = vmatprep.subr.mxu0 0.0
  %315 = vmatpush2.msra.mxu0 %v136
  %316 = vmatprep.subr.mxu0 0.0
  %317 = vmatpush2.msra.mxu0 %v135
  %318 = vmatprep.subr.mxu0 0.0
  %319 = vmatpush2.msra.mxu0 %v134
  %320 = vmatprep.subr.mxu0 0.0
  %321 = vmatpush2.msra.mxu0 %v133
  %322 = vmatprep.subr.mxu0 0.0
  %323 = vmatpush2.msra.mxu0 %v132
  %324 = vmatprep.subr.mxu0 0.0
  %325 = vmatpush2.msra.mxu0 %v131
  %326 = vmatprep.subr.mxu0 0.0
  %327 = vmatpush2.msra.mxu0 %v130
  %328 = vmatprep.mubr.f32.mxu0 %v15
  %329 = vmatmul.mubr.f32.gmra.mxu0 %v14
  %v330 = vpop.f32.mrf.mxu0
  %v331 = vadd.f32 %v182, %v330
  %v332 = vpop.f32.mrf.mxu0
  %333 = vmatprep.mubr.f32.mxu0 %v19
  %334 = vmatmul.mubr.f32.gmra.mxu0 %v18
  %v335 = vpop.f32.mrf.mxu0
  %v336 = vadd.f32 %v182, %v335
  %v337 = vpop.f32.mrf.mxu0
  %338 = vmatprep.mubr.f32.mxu0 %v23
  %339 = vmatmul.mubr.f32.gmra.mxu0 %v22
  %v340 = vpop.f32.mrf.mxu0
  %v341 = vadd.f32 %v182, %v340
  %v342 = vpop.f32.mrf.mxu0
  %343 = vmatprep.mubr.f32.mxu0 %v27
  %344 = vmatmul.mubr.f32.gmra.mxu0 %v26
  %v345 = vpop.f32.mrf.mxu0
  %v346 = vadd.f32 %v182, %v345
  %v347 = vpop.f32.mrf.mxu0
  %348 = vmatprep.mubr.f32.mxu0 %v31
  %349 = vmatmul.mubr.f32.gmra.mxu0 %v30
  %v350 = vpop.f32.mrf.mxu0
  %v351 = vadd.f32 %v182, %v350
  %v352 = vpop.f32.mrf.mxu0
  %353 = vmatprep.mubr.f32.mxu0 %v35
  %354 = vmatmul.mubr.f32.gmra.mxu0 %v34
  %v355 = vpop.f32.mrf.mxu0
  %v356 = vadd.f32 %v182, %v355
  %v357 = vpop.f32.mrf.mxu0
  %358 = vmatprep.mubr.f32.mxu0 %v39
  %359 = vmatmul.mubr.f32.gmra.mxu0 %v38
  %v360 = vpop.f32.mrf.mxu0
  %v361 = vadd.f32 %v182, %v360
  %v362 = vpop.f32.mrf.mxu0
  %363 = vmatprep.mubr.f32.mxu0 %v43
  %364 = vmatmul.mubr.f32.gmra.mxu0 %v42
  %v365 = vpop.f32.mrf.mxu0
  %v366 = vadd.f32 %v182, %v365
  %v367 = vpop.f32.mrf.mxu0
  %368 = vmatprep.mubr.f32.mxu0 %v47
  %369 = vmatmul.mubr.f32.gmra.mxu0 %v46
  %v370 = vpop.f32.mrf.mxu0
  %v371 = vadd.f32 %v182, %v370
  %v372 = vpop.f32.mrf.mxu0
  %373 = vmatprep.mubr.f32.mxu0 %v51
  %374 = vmatmul.mubr.f32.gmra.mxu0 %v50
  %v375 = vpop.f32.mrf.mxu0
  %v376 = vadd.f32 %v182, %v375
  %v377 = vpop.f32.mrf.mxu0
  %378 = vmatprep.mubr.f32.mxu0 %v55
  %379 = vmatmul.mubr.f32.gmra.mxu0 %v54
  %v380 = vpop.f32.mrf.mxu0
  %v381 = vadd.f32 %v182, %v380
  %v382 = vpop.f32.mrf.mxu0
  %383 = vmatprep.mubr.f32.mxu0 %v59
  %384 = vmatmul.mubr.f32.gmra.mxu0 %v58
  %v385 = vpop.f32.mrf.mxu0
  %v386 = vadd.f32 %v182, %v385
  %v387 = vpop.f32.mrf.mxu0
  %388 = vmatprep.mubr.f32.mxu0 %v63
  %389 = vmatmul.mubr.f32.gmra.mxu0 %v62
  %v390 = vpop.f32.mrf.mxu0
  %v391 = vadd.f32 %v182, %v390
  %v392 = vpop.f32.mrf.mxu0
  %393 = vmatprep.mubr.f32.mxu0 %v67
  %394 = vmatmul.mubr.f32.gmra.mxu0 %v66
  %v395 = vpop.f32.mrf.mxu0
  %v396 = vadd.f32 %v182, %v395
  %v397 = vpop.f32.mrf.mxu0
  %398 = vmatprep.mubr.f32.mxu0 %v71
  %399 = vmatmul.mubr.f32.gmra.mxu0 %v70
  %v400 = vpop.f32.mrf.mxu0
  %v401 = vadd.f32 %v182, %v400
  %v402 = vpop.f32.mrf.mxu0
  %403 = vmatprep.mubr.f32.mxu0 %v75
  %404 = vmatmul.mubr.f32.gmra.mxu0 %v74
  %v405 = vpop.f32.mrf.mxu0
  %v406 = vadd.f32 %v182, %v405
  %v407 = vpop.f32.mrf.mxu0
  %408 = vmatprep.mubr.f32.mxu0 %v79
  %409 = vmatmul.mubr.f32.gmra.mxu0 %v78
  %v410 = vpop.f32.mrf.mxu0
  %v411 = vadd.f32 %v182, %v410
  %v412 = vpop.f32.mrf.mxu0
  %413 = vmatprep.mubr.f32.mxu0 %v83
  %414 = vmatmul.mubr.f32.gmra.mxu0 %v82
  %v415 = vpop.f32.mrf.mxu0
  %v416 = vadd.f32 %v182, %v415
  %v417 = vpop.f32.mrf.mxu0
  %418 = vmatprep.mubr.f32.mxu0 %v87
  %419 = vmatmul.mubr.f32.gmra.mxu0 %v86
  %v420 = vpop.f32.mrf.mxu0
  %v421 = vadd.f32 %v182, %v420
  %v422 = vpop.f32.mrf.mxu0
  %423 = vmatprep.mubr.f32.mxu0 %v91
  %424 = vmatmul.mubr.f32.gmra.mxu0 %v90
  %v425 = vpop.f32.mrf.mxu0
  %v426 = vadd.f32 %v182, %v425
  %v427 = vpop.f32.mrf.mxu0
  %428 = vmatprep.mubr.f32.mxu0 %v95
  %429 = vmatmul.mubr.f32.gmra.mxu0 %v94
  %v430 = vpop.f32.mrf.mxu0
  %v431 = vadd.f32 %v182, %v430
  %v432 = vpop.f32.mrf.mxu0
  %433 = vmatprep.mubr.f32.mxu0 %v99
  %434 = vmatmul.mubr.f32.gmra.mxu0 %v98
  %v435 = vpop.f32.mrf.mxu0
  %v436 = vadd.f32 %v182, %v435
  %v437 = vpop.f32.mrf.mxu0
  %438 = vmatprep.mubr.f32.mxu0 %v103
  %439 = vmatmul.mubr.f32.gmra.mxu0 %v102
  %v440 = vpop.f32.mrf.mxu0
  %v441 = vadd.f32 %v182, %v440
  %v442 = vpop.f32.mrf.mxu0
  %443 = vmatprep.mubr.f32.mxu0 %v107
  %444 = vmatmul.mubr.f32.gmra.mxu0 %v106
  %v445 = vpop.f32.mrf.mxu0
  %v446 = vadd.f32 %v182, %v445
  %v447 = vpop.f32.mrf.mxu0
  %448 = vmatprep.mubr.f32.mxu0 %v111
  %449 = vmatmul.mubr.f32.gmra.mxu0 %v110
  %v450 = vpop.f32.mrf.mxu0
  %v451 = vadd.f32 %v182, %v450
  %v452 = vpop.f32.mrf.mxu0
  %453 = vdwg.mxu0
  %454 = vmatprep.subr.mxu0 0.0
  %455 = vmatpush1.msra.mxu0 %v161
  %456 = vmatprep.subr.mxu0 0.0
  %457 = vmatpush1.msra.mxu0 %v160
  %458 = vmatprep.subr.mxu0 0.0
  %459 = vmatpush1.msra.mxu0 %v159
  %460 = vmatprep.subr.mxu0 0.0
  %461 = vmatpush1.msra.mxu0 %v158
  %462 = vmatprep.subr.mxu0 0.0
  %463 = vmatpush1.msra.mxu0 %v157
  %464 = vmatprep.subr.mxu0 0.0
  %465 = vmatpush1.msra.mxu0 %v156
  %466 = vmatprep.subr.mxu0 0.0
  %467 = vmatpush1.msra.mxu0 %v155
  %468 = vmatprep.subr.mxu0 0.0
  %469 = vmatpush1.msra.mxu0 %v154
  %470 = vmatprep.subr.mxu0 0.0
  %471 = vmatpush1.msra.mxu0 %v153
  %472 = vmatprep.subr.mxu0 0.0
  %473 = vmatpush1.msra.mxu0 %v152
  %474 = vmatprep.subr.mxu0 0.0
  %475 = vmatpush1.msra.mxu0 %v151
  %476 = vmatprep.subr.mxu0 0.0
  %477 = vmatpush1.msra.mxu0 %v150
  %478 = vmatprep.subr.mxu0 0.0
  %479 = vmatpush1.msra.mxu0 %v149
  %480 = vmatprep.subr.mxu0 0.0
  %481 = vmatpush1.msra.mxu0 %v148
  %482 = vmatprep.subr.mxu0 0.0
  %483 = vmatpush1.msra.mxu0 %v147
  %484 = vmatprep.subr.mxu0 0.0
  %485 = vmatpush1.msra.mxu0 %v146
  %486 = vmatprep.subr.mxu0 0.0
  %487 = vmatpush2.msra.mxu0 0.0
  %488 = vmatprep.subr.mxu0 0.0
  %489 = vmatpush2.msra.mxu0 %v262
  %490 = vmatprep.subr.mxu0 0.0
  %491 = vmatpush2.msra.mxu0 %v175
  %492 = vmatprep.subr.mxu0 0.0
  %493 = vmatpush2.msra.mxu0 %v174
  %494 = vmatprep.subr.mxu0 0.0
  %495 = vmatpush2.msra.mxu0 %v173
  %496 = vmatprep.subr.mxu0 0.0
  %497 = vmatpush2.msra.mxu0 %v172
  %498 = vmatprep.subr.mxu0 0.0
  %499 = vmatpush2.msra.mxu0 %v171
  %500 = vmatprep.subr.mxu0 0.0
  %501 = vmatpush2.msra.mxu0 %v170
  %502 = vmatprep.subr.mxu0 0.0
  %503 = vmatpush2.msra.mxu0 %v169
  %504 = vmatprep.subr.mxu0 0.0
  %505 = vmatpush2.msra.mxu0 %v168
  %506 = vmatprep.subr.mxu0 0.0
  %507 = vmatpush2.msra.mxu0 %v167
  %508 = vmatprep.subr.mxu0 0.0
  %509 = vmatpush2.msra.mxu0 %v166
  %510 = vmatprep.subr.mxu0 0.0
  %511 = vmatpush2.msra.mxu0 %v165
  %512 = vmatprep.subr.mxu0 0.0
  %513 = vmatpush2.msra.mxu0 %v164
  %514 = vmatprep.subr.mxu0 0.0
  %515 = vmatpush2.msra.mxu0 %v163
  %516 = vmatprep.subr.mxu0 0.0
  %517 = vmatpush2.msra.mxu0 %v162
  %518 = vmatprep.mubr.f32.mxu0 %v186
  %519 = vmatmul.mubr.f32.gmra.mxu0 %v16
  %v520 = vpop.f32.mrf.mxu0
  %v521 = vadd.f32 %v331, %v520
  %v522 = vpop.f32.mrf.mxu0
  %523 = vmatprep.mubr.f32.mxu0 %v189
  %524 = vmatmul.mubr.f32.gmra.mxu0 %v20
  %v525 = vpop.f32.mrf.mxu0
  %v526 = vadd.f32 %v336, %v525
  %v527 = vpop.f32.mrf.mxu0
  %528 = vmatprep.mubr.f32.mxu0 %v192
  %529 = vmatmul.mubr.f32.gmra.mxu0 %v24
  %v530 = vpop.f32.mrf.mxu0
  %v531 = vadd.f32 %v341, %v530
  %v532 = vpop.f32.mrf.mxu0
  %533 = vmatprep.mubr.f32.mxu0 %v195
  %534 = vmatmul.mubr.f32.gmra.mxu0 %v28
  %v535 = vpop.f32.mrf.mxu0
  %v536 = vadd.f32 %v346, %v535
  %v537 = vpop.f32.mrf.mxu0
  %538 = vmatprep.mubr.f32.mxu0 %v198
  %539 = vmatmul.mubr.f32.gmra.mxu0 %v32
  %v540 = vpop.f32.mrf.mxu0
  %v541 = vadd.f32 %v351, %v540
  %v542 = vpop.f32.mrf.mxu0
  %543 = vmatprep.mubr.f32.mxu0 %v201
  %544 = vmatmul.mubr.f32.gmra.mxu0 %v36
  %v545 = vpop.f32.mrf.mxu0
  %v546 = vadd.f32 %v356, %v545
  %v547 = vpop.f32.mrf.mxu0
  %548 = vmatprep.mubr.f32.mxu0 %v204
  %549 = vmatmul.mubr.f32.gmra.mxu0 %v40
  %v550 = vpop.f32.mrf.mxu0
  %v551 = vadd.f32 %v361, %v550
  %v552 = vpop.f32.mrf.mxu0
  %553 = vmatprep.mubr.f32.mxu0 %v207
  %554 = vmatmul.mubr.f32.gmra.mxu0 %v44
  %v555 = vpop.f32.mrf.mxu0
  %v556 = vadd.f32 %v366, %v555
  %v557 = vpop.f32.mrf.mxu0
  %558 = vmatprep.mubr.f32.mxu0 %v210
  %559 = vmatmul.mubr.f32.gmra.mxu0 %v48
  %v560 = vpop.f32.mrf.mxu0
  %v561 = vadd.f32 %v371, %v560
  %v562 = vpop.f32.mrf.mxu0
  %563 = vmatprep.mubr.f32.mxu0 %v213
  %564 = vmatmul.mubr.f32.gmra.mxu0 %v52
  %v565 = vpop.f32.mrf.mxu0
  %v566 = vadd.f32 %v376, %v565
  %v567 = vpop.f32.mrf.mxu0
  %568 = vmatprep.mubr.f32.mxu0 %v216
  %569 = vmatmul.mubr.f32.gmra.mxu0 %v56
  %v570 = vpop.f32.mrf.mxu0
  %v571 = vadd.f32 %v381, %v570
  %v572 = vpop.f32.mrf.mxu0
  %573 = vmatprep.mubr.f32.mxu0 %v219
  %574 = vmatmul.mubr.f32.gmra.mxu0 %v60
  %v575 = vpop.f32.mrf.mxu0
  %v576 = vadd.f32 %v386, %v575
  %v577 = vpop.f32.mrf.mxu0
  %578 = vmatprep.mubr.f32.mxu0 %v222
  %579 = vmatmul.mubr.f32.gmra.mxu0 %v64
  %v580 = vpop.f32.mrf.mxu0
  %v581 = vadd.f32 %v391, %v580
  %v582 = vpop.f32.mrf.mxu0
  %583 = vmatprep.mubr.f32.mxu0 %v225
  %584 = vmatmul.mubr.f32.gmra.mxu0 %v68
  %v585 = vpop.f32.mrf.mxu0
  %v586 = vadd.f32 %v396, %v585
  %v587 = vpop.f32.mrf.mxu0
  %588 = vmatprep.mubr.f32.mxu0 %v228
  %589 = vmatmul.mubr.f32.gmra.mxu0 %v72
  %v590 = vpop.f32.mrf.mxu0
  %v591 = vadd.f32 %v401, %v590
  %v592 = vpop.f32.mrf.mxu0
  %593 = vmatprep.mubr.f32.mxu0 %v231
  %594 = vmatmul.mubr.f32.gmra.mxu0 %v76
  %v595 = vpop.f32.mrf.mxu0
  %v596 = vadd.f32 %v406, %v595
  %v597 = vpop.f32.mrf.mxu0
  %598 = vmatprep.mubr.f32.mxu0 %v234
  %599 = vmatmul.mubr.f32.gmra.mxu0 %v80
  %v600 = vpop.f32.mrf.mxu0
  %v601 = vadd.f32 %v411, %v600
  %v602 = vpop.f32.mrf.mxu0
  %603 = vmatprep.mubr.f32.mxu0 %v237
  %604 = vmatmul.mubr.f32.gmra.mxu0 %v84
  %v605 = vpop.f32.mrf.mxu0
  %v606 = vadd.f32 %v416, %v605
  %v607 = vpop.f32.mrf.mxu0
  %608 = vmatprep.mubr.f32.mxu0 %v240
  %609 = vmatmul.mubr.f32.gmra.mxu0 %v88
  %v610 = vpop.f32.mrf.mxu0
  %v611 = vadd.f32 %v421, %v610
  %v612 = vpop.f32.mrf.mxu0
  %613 = vmatprep.mubr.f32.mxu0 %v243
  %614 = vmatmul.mubr.f32.gmra.mxu0 %v92
  %v615 = vpop.f32.mrf.mxu0
  %v616 = vadd.f32 %v426, %v615
  %v617 = vpop.f32.mrf.mxu0
  %618 = vmatprep.mubr.f32.mxu0 %v246
  %619 = vmatmul.mubr.f32.gmra.mxu0 %v96
  %v620 = vpop.f32.mrf.mxu0
  %v621 = vadd.f32 %v431, %v620
  %v622 = vpop.f32.mrf.mxu0
  %623 = vmatprep.mubr.f32.mxu0 %v249
  %624 = vmatmul.mubr.f32.gmra.mxu0 %v100
  %v625 = vpop.f32.mrf.mxu0
  %v626 = vadd.f32 %v436, %v625
  %v627 = vpop.f32.mrf.mxu0
  %628 = vmatprep.mubr.f32.mxu0 %v252
  %629 = vmatmul.mubr.f32.gmra.mxu0 %v104
  %v630 = vpop.f32.mrf.mxu0
  %v631 = vadd.f32 %v441, %v630
  %v632 = vpop.f32.mrf.mxu0
  %633 = vmatprep.mubr.f32.mxu0 %v255
  %634 = vmatmul.mubr.f32.gmra.mxu0 %v108
  %v635 = vpop.f32.mrf.mxu0
  %v636 = vadd.f32 %v446, %v635
  %v637 = vpop.f32.mrf.mxu0
  %638 = vmatprep.mubr.f32.mxu0 %v258
  %639 = vmatmul.mubr.f32.gmra.mxu0 %v112
  %v640 = vpop.f32.mrf.mxu0
  %v641 = vadd.f32 %v451, %v640
  %v642 = vpop.f32.mrf.mxu0
  %643 = vdwg.mxu0
  %v644 = vmax.f32 %v521, 0.0
  %v645 = vmax.f32 %v526, 0.0
  %v646 = vmax.f32 %v531, 0.0
  %v647 = vmax.f32 %v536, 0.0
  %v648 = vmax.f32 %v541, 0.0
  %v649 = vmax.f32 %v546, 0.0
  %v650 = vmax.f32 %v551, 0.0
  %v651 = vmax.f32 %v556, 0.0
  %v652 = vmax.f32 %v561, 0.0
  %v653 = vmax.f32 %v566, 0.0
  %v654 = vmax.f32 %v571, 0.0
  %v655 = vmax.f32 %v576, 0.0
  %v656 = vmax.f32 %v581, 0.0
  %v657 = vmax.f32 %v586, 0.0
  %v658 = vmax.f32 %v591, 0.0
  %v659 = vmax.f32 %v596, 0.0
  %v660 = vmax.f32 %v601, 0.0
  %v661 = vmax.f32 %v606, 0.0
  %v662 = vmax.f32 %v611, 0.0
  %v663 = vmax.f32 %v616, 0.0
  %v664 = vmax.f32 %v621, 0.0
  %v665 = vmax.f32 %v626, 0.0
  %v666 = vmax.f32 %v631, 0.0
  %v667 = vmax.f32 %v636, 0.0
  %v668 = vmax.f32 %v641, 0.0
  %669 = vst [vmem:[%s3] sm:$0xff] %v644
  %670 = vst [vmem:[%s3 + $0x8] sm:$0xff] %v645
  %671 = vst [vmem:[%s3 + $0x10] sm:$0xff] %v646
  %672 = vst [vmem:[%s3 + $0x18] sm:$0xff] %v647
  %673 = vst [vmem:[%s3 + $0x20] sm:$0xff] %v648
  %674 = vst [vmem:[%s3 + $0x28] sm:$0xff] %v649
  %675 = vst [vmem:[%s3 + $0x30] sm:$0xff] %v650
  %676 = vst [vmem:[%s3 + $0x38] sm:$0xff] %v651
  %677 = vst [vmem:[%s3 + $0x40] sm:$0xff] %v652
  %678 = vst [vmem:[%s3 + $0x48] sm:$0xff] %v653
  %679 = vst [vmem:[%s3 + $0x50] sm:$0xff] %v654
  %680 = vst [vmem:[%s3 + $0x58] sm:$0xff] %v655
  %681 = vst [vmem:[%s3 + $0x60] sm:$0xff] %v656
  %682 = vst [vmem:[%s3 + $0x68] sm:$0xff] %v657
  %683 = vst [vmem:[%s3 + $0x70] sm:$0xff] %v658
  %684 = vst [vmem:[%s3 + $0x78] sm:$0xff] %v659
  %685 = vst [vmem:[%s3 + $0x80] sm:$0xff] %v660
  %686 = vst [vmem:[%s3 + $0x88] sm:$0xff] %v661
  %687 = vst [vmem:[%s3 + $0x90] sm:$0xff] %v662
  %688 = vst [vmem:[%s3 + $0x98] sm:$0xff] %v663
  %689 = vst [vmem:[%s3 + $0xa0] sm:$0xff] %v664
  %690 = vst [vmem:[%s3 + $0xa8] sm:$0xff] %v665
  %691 = vst [vmem:[%s3 + $0xb0] sm:$0xff] %v666
  %692 = vst [vmem:[%s3 + $0xb8] sm:$0xff] %v667
  %693 = vst [vmem:[%s3 + $0xc0] sm:$0xff] %v668
  // Predicated region
  $region14: #{net_forward.8} parent=0 // pred_check
    _
  $region15: #{net_forward.8} parent=0 // pred_check_branch
    %695 = sbr.rel (0) target = $region17
  $region16: #{net_forward.8} parent=0 // pred_region
    _
  $region17: #{net_forward.8} parent=0 // pred_fallthru
    _
  // Predicated region
  $region18: #{net_forward.8} parent=0 // pred_check
    _
  $region19: #{net_forward.8} parent=0 // pred_check_branch
    %697 = sbr.rel (0) target = $region21
  $region20: #{net_forward.8} parent=0 // pred_region
    _
  $region21: #{net_forward.8} parent=0 // pred_fallthru
    _

// kernel: net_forward.9
$region0: #{net_forward.9}
  #allocation0 [shape = 'u32[]', space=smem, size = 0x4, offset = 0x4, fixed_abs, tag = 'smem constant byte address 0x4 - core index']
  #allocation1 [shape = 'u32[144,128]{1,0:T(1,128)}', space=vmem, size = 0x12000, scoped, tag = 'internal scratch']
  %s0 = inlined_call_operand.vmem [shape: f32[50,128], index: 0, kind: input, shape index: {}]
  %s1 = inlined_call_operand.vmem [shape: f32[50,128], index: 1, kind: input, shape index: {}]
  %s2 = inlined_call_operand.vmem [shape: f32[50,128], index: 2, kind: input, shape index: {}]
  %s3 = inlined_call_operand.vmem [shape: f32[50,128], index: 3, kind: input, shape index: {}]
  %s4 = inlined_call_operand.vmem [shape: f32[50,128], index: 4, kind: output, shape index: {}]
  %s5 = sld [smem:[#allocation0]]
  $region26: #{net_forward.9} parent=0
    _
  %s7 = ssub.s32 1, %s5
  %s8 = scalar_select 0, %s7, %s5
  // Predicated region
  $region2: #{net_forward.9} parent=0 // pred_check
    _
  $region3: #{net_forward.9} parent=0 // pred_check_branch
    %10 = sbr.rel (0) target = $region5
  $region4: #{net_forward.9} parent=0 // pred_region
    _
  $region5: #{net_forward.9} parent=0 // pred_fallthru
    _
  // Predicated region
  $region6: #{net_forward.9} parent=0 // pred_check
    _
  $region7: #{net_forward.9} parent=0 // pred_check_branch
    %12 = sbr.rel (0) target = $region9
  $region8: #{net_forward.9} parent=0 // pred_region
    _
  $region9: #{net_forward.9} parent=0 // pred_fallthru
    _
  // Predicated region
  $region10: #{net_forward.9} parent=0 // pred_check
    _
  $region11: #{net_forward.9} parent=0 // pred_check_branch
    %14 = sbr.rel (0) target = $region13
  $region12: #{net_forward.9} parent=0 // pred_region
    _
  $region13: #{net_forward.9} parent=0 // pred_fallthru
    _
  // Predicated region
  $region14: #{net_forward.9} parent=0 // pred_check
    _
  $region15: #{net_forward.9} parent=0 // pred_check_branch
    %16 = sbr.rel (0) target = $region17
  $region16: #{net_forward.9} parent=0 // pred_region
    _
  $region17: #{net_forward.9} parent=0 // pred_fallthru
    _
  %v17 = vld [vmem:[%s0] sm:$0xff]
  %v18 = vld [vmem:[%s0 + $0x8] sm:$0xff]
  %v19 = vld [vmem:[%s0 + $0x10] sm:$0xff]
  %v20 = vld [vmem:[%s0 + $0x18] sm:$0xff]
  %v21 = vld [vmem:[%s0 + $0x20] sm:$0xff]
  %v22 = vld [vmem:[%s0 + $0x28] sm:$0xff]
  %v23 = vld [vmem:[%s0 + $0x30] sm:$0xff]
  %v24 = vld [vmem:[%s1] sm:$0xff]
  %v25 = vld [vmem:[%s1 + $0x8] sm:$0xff]
  %v26 = vld [vmem:[%s1 + $0x10] sm:$0xff]
  %v27 = vld [vmem:[%s1 + $0x18] sm:$0xff]
  %v28 = vld [vmem:[%s1 + $0x20] sm:$0xff]
  %v29 = vld [vmem:[%s1 + $0x28] sm:$0xff]
  %v30 = vld [vmem:[%s1 + $0x30] sm:$0xff]
  %v31 = vmax.f32 %v17, %v24
  %v32 = vmax.f32 %v18, %v25
  %v33 = vmax.f32 %v19, %v26
  %v34 = vmax.f32 %v20, %v27
  %v35 = vmax.f32 %v21, %v28
  %v36 = vmax.f32 %v22, %v29
  %v37 = vmax.f32 %v23, %v30
  %v38 = vld [vmem:[%s2] sm:$0xff]
  %v39 = vld [vmem:[%s2 + $0x8] sm:$0xff]
  %v40 = vld [vmem:[%s2 + $0x10] sm:$0xff]
  %v41 = vld [vmem:[%s2 + $0x18] sm:$0xff]
  %v42 = vld [vmem:[%s2 + $0x20] sm:$0xff]
  %v43 = vld [vmem:[%s2 + $0x28] sm:$0xff]
  %v44 = vld [vmem:[%s2 + $0x30] sm:$0xff]
  %v45 = vld [vmem:[%s3] sm:$0xff]
  %v46 = vld [vmem:[%s3 + $0x8] sm:$0xff]
  %v47 = vld [vmem:[%s3 + $0x10] sm:$0xff]
  %v48 = vld [vmem:[%s3 + $0x18] sm:$0xff]
  %v49 = vld [vmem:[%s3 + $0x20] sm:$0xff]
  %v50 = vld [vmem:[%s3 + $0x28] sm:$0xff]
  %v51 = vld [vmem:[%s3 + $0x30] sm:$0xff]
  %v52 = vmax.f32 %v38, %v45
  %v53 = vmax.f32 %v39, %v46
  %v54 = vmax.f32 %v40, %v47
  %v55 = vmax.f32 %v41, %v48
  %v56 = vmax.f32 %v42, %v49
  %v57 = vmax.f32 %v43, %v50
  %v58 = vmax.f32 %v44, %v51
  %v59 = vmax.f32 %v31, %v52
  %v60 = vmax.f32 %v32, %v53
  %v61 = vmax.f32 %v33, %v54
  %v62 = vmax.f32 %v34, %v55
  %v63 = vmax.f32 %v35, %v56
  %v64 = vmax.f32 %v36, %v57
  %v65 = vmax.f32 %v37, %v58
  %66 = vst [vmem:[%s4] sm:$0xff] %v59
  %67 = vst [vmem:[%s4 + $0x8] sm:$0xff] %v60
  %68 = vst [vmem:[%s4 + $0x10] sm:$0xff] %v61
  %69 = vst [vmem:[%s4 + $0x18] sm:$0xff] %v62
  %70 = vst [vmem:[%s4 + $0x20] sm:$0xff] %v63
  %71 = vst [vmem:[%s4 + $0x28] sm:$0xff] %v64
  %72 = vst [vmem:[%s4 + $0x30] sm:$0xff] %v65
  // Predicated region
  $region18: #{net_forward.9} parent=0 // pred_check
    _
  $region19: #{net_forward.9} parent=0 // pred_check_branch
    %74 = sbr.rel (0) target = $region21
  $region20: #{net_forward.9} parent=0 // pred_region
    _
  $region21: #{net_forward.9} parent=0 // pred_fallthru
    _
  // Predicated region
  $region22: #{net_forward.9} parent=0 // pred_check
    _
  $region23: #{net_forward.9} parent=0 // pred_check_branch
    %76 = sbr.rel (0) target = $region25
  $region24: #{net_forward.9} parent=0 // pred_region
    _
  $region25: #{net_forward.9} parent=0 // pred_fallthru
    _

// kernel: net_forward.10
$region0: #{net_forward.10}
  #allocation0 [shape = 'u32[]', space=smem, size = 0x4, offset = 0x4, fixed_abs, tag = 'smem constant byte address 0x4 - core index']
  #allocation1 [shape = 'u32[144,128]{1,0:T(1,128)}', space=vmem, size = 0x12000, scoped, tag = 'internal scratch']
  %s0 = inlined_call_operand.vmem [shape: f32[2,1280], index: 0, kind: input, shape index: {}]
  %s1 = inlined_call_operand.vmem [shape: f32[1280,512], index: 1, kind: input, shape index: {}]
  %s2 = inlined_call_operand.vmem [shape: f32[1,512], index: 2, kind: input, shape index: {}]
  %s3 = inlined_call_operand.vmem [shape: f32[2,512], index: 3, kind: output, shape index: {}]
  %s4 = sld [smem:[#allocation0]]
  $region56: #{net_forward.10} parent=0
    _
  %s6 = ssub.s32 1, %s4
  %s7 = scalar_select 0, %s6, %s4
  $region1: #{net_forward.10} parent=0
    #allocation2 [shape = 'u8[16384]{0}', space=vmem, size = 0x4000, scoped, tag = 'output window, operand 0, single buffered']
    // Predicated region
    $region2: #{net_forward.10} parent=1 // pred_check
      _
    $region3: #{net_forward.10} parent=1 // pred_check_branch
      %9 = sbr.rel (0) target = $region5
    $region4: #{net_forward.10} parent=1 // pred_region
      _
    $region5: #{net_forward.10} parent=1 // pred_fallthru
      _
    // Predicated region
    $region6: #{net_forward.10} parent=1 // pred_check
      _
    $region7: #{net_forward.10} parent=1 // pred_check_branch
      %11 = sbr.rel (0) target = $region9
    $region8: #{net_forward.10} parent=1 // pred_region
      _
    $region9: #{net_forward.10} parent=1 // pred_fallthru
      _
    // Predicated region
    $region10: #{net_forward.10} parent=1 // pred_check
      _
    $region11: #{net_forward.10} parent=1 // pred_check_branch
      %13 = sbr.rel (0) target = $region13
    $region12: #{net_forward.10} parent=1 // pred_region
      _
    $region13: #{net_forward.10} parent=1 // pred_fallthru
      _
    %v14 = vld [vmem:[%s0] sm:$0xff]
    %v15 = vld [vmem:[%s0 + $0x8] sm:$0xff]
    %v16 = vld [vmem:[%s0 + $0x10] sm:$0xf]
    %v17 = vld [vmem:[%s0 + $0x14] sm:$0xff]
    %v18 = vld [vmem:[%s0 + $0x1c] sm:$0xff]
    %v19 = vld [vmem:[%s0 + $0x24] sm:$0xf]
    %v20 = vld [vmem:[%s0 + $0x28] sm:$0xff]
    %v21 = vld [vmem:[%s0 + $0x30] sm:$0xff]
    %v22 = vld [vmem:[%s0 + $0x38] sm:$0xf]
    %v23 = vld [vmem:[%s0 + $0x3c] sm:$0xff]
    %v24 = vld [vmem:[%s0 + $0x44] sm:$0xff]
    %v25 = vld [vmem:[%s0 + $0x4c] sm:$0xf]
    %v26 = vld [vmem:[%s1] sm:$0xff]
    %v27 = vld [vmem:[%s1 + $0x8] sm:$0xff]
    %v28 = vld [vmem:[%s1 + $0x10] sm:$0xff]
    %v29 = vld [vmem:[%s1 + $0x18] sm:$0xff]
    %v30 = vld [vmem:[%s1 + $0x20] sm:$0xff]
    %v31 = vld [vmem:[%s1 + $0x28] sm:$0xff]
    %v32 = vld [vmem:[%s1 + $0x30] sm:$0xff]
    %v33 = vld [vmem:[%s1 + $0x38] sm:$0xff]
    %v34 = vld [vmem:[%s1 + $0x40] sm:$0xff]
    %v35 = vld [vmem:[%s1 + $0x48] sm:$0xff]
    %v36 = vld [vmem:[%s1 + $0x50] sm:$0xff]
    %v37 = vld [vmem:[%s1 + $0x58] sm:$0xff]
    %v38 = vld [vmem:[%s1 + $0x60] sm:$0xff]
    %v39 = vld [vmem:[%s1 + $0x68] sm:$0xff]
    %v40 = vld [vmem:[%s1 + $0x70] sm:$0xff]
    %v41 = vld [vmem:[%s1 + $0x78] sm:$0xff]
    %v42 = vld [vmem:[%s1 + $0x80] sm:$0xff]
    %v43 = vld [vmem:[%s1 + $0x88] sm:$0xff]
    %v44 = vld [vmem:[%s1 + $0x90] sm:$0xff]
    %v45 = vld [vmem:[%s1 + $0x98] sm:$0xff]
    %v46 = vld [vmem:[%s1 + $0xa0] sm:$0xff]
    %v47 = vld [vmem:[%s1 + $0xa8] sm:$0xff]
    %v48 = vld [vmem:[%s1 + $0xb0] sm:$0xff]
    %v49 = vld [vmem:[%s1 + $0xb8] sm:$0xff]
    %v50 = vld [vmem:[%s1 + $0xc0] sm:$0xff]
    %v51 = vld [vmem:[%s1 + $0xc8] sm:$0xff]
    %v52 = vld [vmem:[%s1 + $0xd0] sm:$0xff]
    %v53 = vld [vmem:[%s1 + $0xd8] sm:$0xff]
    %v54 = vld [vmem:[%s1 + $0xe0] sm:$0xff]
    %v55 = vld [vmem:[%s1 + $0xe8] sm:$0xff]
    %v56 = vld [vmem:[%s1 + $0xf0] sm:$0xff]
    %v57 = vld [vmem:[%s1 + $0xf8] sm:$0xff]
    %v58 = vld [vmem:[%s1 + $0x100] sm:$0xff]
    %v59 = vld [vmem:[%s1 + $0x108] sm:$0xff]
    %v60 = vld [vmem:[%s1 + $0x110] sm:$0xff]
    %v61 = vld [vmem:[%s1 + $0x118] sm:$0xff]
    %v62 = vld [vmem:[%s1 + $0x120] sm:$0xff]
    %v63 = vld [vmem:[%s1 + $0x128] sm:$0xff]
    %v64 = vld [vmem:[%s1 + $0x130] sm:$0xff]
    %v65 = vld [vmem:[%s1 + $0x138] sm:$0xff]
    %v66 = vld [vmem:[%s1 + $0x140] sm:$0xff]
    %v67 = vld [vmem:[%s1 + $0x148] sm:$0xff]
    %v68 = vld [vmem:[%s1 + $0x150] sm:$0xff]
    %v69 = vld [vmem:[%s1 + $0x158] sm:$0xff]
    %v70 = vld [vmem:[%s1 + $0x160] sm:$0xff]
    %v71 = vld [vmem:[%s1 + $0x168] sm:$0xff]
    %v72 = vld [vmem:[%s1 + $0x170] sm:$0xff]
    %v73 = vld [vmem:[%s1 + $0x178] sm:$0xff]
    %v74 = vld [vmem:[%s1 + $0x180] sm:$0xff]
    %v75 = vld [vmem:[%s1 + $0x188] sm:$0xff]
    %v76 = vld [vmem:[%s1 + $0x190] sm:$0xff]
    %v77 = vld [vmem:[%s1 + $0x198] sm:$0xff]
    %v78 = vld [vmem:[%s1 + $0x1a0] sm:$0xff]
    %v79 = vld [vmem:[%s1 + $0x1a8] sm:$0xff]
    %v80 = vld [vmem:[%s1 + $0x1b0] sm:$0xff]
    %v81 = vld [vmem:[%s1 + $0x1b8] sm:$0xff]
    %v82 = vld [vmem:[%s1 + $0x1c0] sm:$0xff]
    %v83 = vld [vmem:[%s1 + $0x1c8] sm:$0xff]
    %v84 = vld [vmem:[%s1 + $0x1d0] sm:$0xff]
    %v85 = vld [vmem:[%s1 + $0x1d8] sm:$0xff]
    %v86 = vld [vmem:[%s1 + $0x1e0] sm:$0xff]
    %v87 = vld [vmem:[%s1 + $0x1e8] sm:$0xff]
    %v88 = vld [vmem:[%s1 + $0x1f0] sm:$0xff]
    %v89 = vld [vmem:[%s1 + $0x1f8] sm:$0xff]
    %v90 = vld [vmem:[%s1 + $0x200] sm:$0xff]
    %v91 = vld [vmem:[%s1 + $0x208] sm:$0xff]
    %v92 = vld [vmem:[%s1 + $0x210] sm:$0xff]
    %v93 = vld [vmem:[%s1 + $0x218] sm:$0xff]
    %v94 = vld [vmem:[%s1 + $0x220] sm:$0xff]
    %v95 = vld [vmem:[%s1 + $0x228] sm:$0xff]
    %v96 = vld [vmem:[%s1 + $0x230] sm:$0xff]
    %v97 = vld [vmem:[%s1 + $0x238] sm:$0xff]
    %v98 = vld [vmem:[%s1 + $0x240] sm:$0xff]
    %v99 = vld [vmem:[%s1 + $0x248] sm:$0xff]
    %v100 = vld [vmem:[%s1 + $0x250] sm:$0xff]
    %v101 = vld [vmem:[%s1 + $0x258] sm:$0xff]
    %v102 = vld [vmem:[%s1 + $0x260] sm:$0xff]
    %v103 = vld [vmem:[%s1 + $0x268] sm:$0xff]
    %v104 = vld [vmem:[%s1 + $0x270] sm:$0xff]
    %v105 = vld [vmem:[%s1 + $0x278] sm:$0xff]
    %v106 = vld [vmem:[%s1 + $0x280] sm:$0xff]
    %v107 = vld [vmem:[%s1 + $0x288] sm:$0xff]
    %v108 = vld [vmem:[%s1 + $0x290] sm:$0xff]
    %v109 = vld [vmem:[%s1 + $0x298] sm:$0xff]
    %v110 = vld [vmem:[%s1 + $0x2a0] sm:$0xff]
    %v111 = vld [vmem:[%s1 + $0x2a8] sm:$0xff]
    %v112 = vld [vmem:[%s1 + $0x2b0] sm:$0xff]
    %v113 = vld [vmem:[%s1 + $0x2b8] sm:$0xff]
    %v114 = vld [vmem:[%s1 + $0x2c0] sm:$0xff]
    %v115 = vld [vmem:[%s1 + $0x2c8] sm:$0xff]
    %v116 = vld [vmem:[%s1 + $0x2d0] sm:$0xff]
    %v117 = vld [vmem:[%s1 + $0x2d8] sm:$0xff]
    %v118 = vld [vmem:[%s1 + $0x2e0] sm:$0xff]
    %v119 = vld [vmem:[%s1 + $0x2e8] sm:$0xff]
    %v120 = vld [vmem:[%s1 + $0x2f0] sm:$0xff]
    %v121 = vld [vmem:[%s1 + $0x2f8] sm:$0xff]
    %v122 = vld [vmem:[%s1 + $0x300] sm:$0xff]
    %v123 = vld [vmem:[%s1 + $0x308] sm:$0xff]
    %v124 = vld [vmem:[%s1 + $0x310] sm:$0xff]
    %v125 = vld [vmem:[%s1 + $0x318] sm:$0xff]
    %v126 = vld [vmem:[%s1 + $0x320] sm:$0xff]
    %v127 = vld [vmem:[%s1 + $0x328] sm:$0xff]
    %v128 = vld [vmem:[%s1 + $0x330] sm:$0xff]
    %v129 = vld [vmem:[%s1 + $0x338] sm:$0xff]
    %v130 = vld [vmem:[%s1 + $0x340] sm:$0xff]
    %v131 = vld [vmem:[%s1 + $0x348] sm:$0xff]
    %v132 = vld [vmem:[%s1 + $0x350] sm:$0xff]
    %v133 = vld [vmem:[%s1 + $0x358] sm:$0xff]
    %v134 = vld [vmem:[%s1 + $0x360] sm:$0xff]
    %v135 = vld [vmem:[%s1 + $0x368] sm:$0xff]
    %v136 = vld [vmem:[%s1 + $0x370] sm:$0xff]
    %v137 = vld [vmem:[%s1 + $0x378] sm:$0xff]
    %v138 = vld [vmem:[%s1 + $0x380] sm:$0xff]
    %v139 = vld [vmem:[%s1 + $0x388] sm:$0xff]
    %v140 = vld [vmem:[%s1 + $0x390] sm:$0xff]
    %v141 = vld [vmem:[%s1 + $0x398] sm:$0xff]
    %v142 = vld [vmem:[%s1 + $0x3a0] sm:$0xff]
    %v143 = vld [vmem:[%s1 + $0x3a8] sm:$0xff]
    %v144 = vld [vmem:[%s1 + $0x3b0] sm:$0xff]
    %v145 = vld [vmem:[%s1 + $0x3b8] sm:$0xff]
    %v146 = vld [vmem:[%s1 + $0x3c0] sm:$0xff]
    %v147 = vld [vmem:[%s1 + $0x3c8] sm:$0xff]
    %v148 = vld [vmem:[%s1 + $0x3d0] sm:$0xff]
    %v149 = vld [vmem:[%s1 + $0x3d8] sm:$0xff]
    %v150 = vld [vmem:[%s1 + $0x3e0] sm:$0xff]
    %v151 = vld [vmem:[%s1 + $0x3e8] sm:$0xff]
    %v152 = vld [vmem:[%s1 + $0x3f0] sm:$0xff]
    %v153 = vld [vmem:[%s1 + $0x3f8] sm:$0xff]
    %v154 = vld [vmem:[%s1 + $0x400] sm:$0xff]
    %v155 = vld [vmem:[%s1 + $0x408] sm:$0xff]
    %v156 = vld [vmem:[%s1 + $0x410] sm:$0xff]
    %v157 = vld [vmem:[%s1 + $0x418] sm:$0xff]
    %v158 = vld [vmem:[%s1 + $0x420] sm:$0xff]
    %v159 = vld [vmem:[%s1 + $0x428] sm:$0xff]
    %v160 = vld [vmem:[%s1 + $0x430] sm:$0xff]
    %v161 = vld [vmem:[%s1 + $0x438] sm:$0xff]
    %v162 = vld [vmem:[%s1 + $0x440] sm:$0xff]
    %v163 = vld [vmem:[%s1 + $0x448] sm:$0xff]
    %v164 = vld [vmem:[%s1 + $0x450] sm:$0xff]
    %v165 = vld [vmem:[%s1 + $0x458] sm:$0xff]
    %v166 = vld [vmem:[%s1 + $0x460] sm:$0xff]
    %v167 = vld [vmem:[%s1 + $0x468] sm:$0xff]
    %v168 = vld [vmem:[%s1 + $0x470] sm:$0xff]
    %v169 = vld [vmem:[%s1 + $0x478] sm:$0xff]
    %v170 = vld [vmem:[%s1 + $0x480] sm:$0xff]
    %v171 = vld [vmem:[%s1 + $0x488] sm:$0xff]
    %v172 = vld [vmem:[%s1 + $0x490] sm:$0xff]
    %v173 = vld [vmem:[%s1 + $0x498] sm:$0xff]
    %v174 = vld [vmem:[%s1 + $0x4a0] sm:$0xff]
    %v175 = vld [vmem:[%s1 + $0x4a8] sm:$0xff]
    %v176 = vld [vmem:[%s1 + $0x4b0] sm:$0xff]
    %v177 = vld [vmem:[%s1 + $0x4b8] sm:$0xff]
    %v178 = vld [vmem:[%s1 + $0x4c0] sm:$0xff]
    %v179 = vld [vmem:[%s1 + $0x4c8] sm:$0xff]
    %v180 = vld [vmem:[%s1 + $0x4d0] sm:$0xff]
    %v181 = vld [vmem:[%s1 + $0x4d8] sm:$0xff]
    %v182 = vld [vmem:[%s1 + $0x4e0] sm:$0xff]
    %v183 = vld [vmem:[%s1 + $0x4e8] sm:$0xff]
    %v184 = vld [vmem:[%s1 + $0x4f0] sm:$0xff]
    %v185 = vld [vmem:[%s1 + $0x4f8] sm:$0xff]
    %v186 = vld [vmem:[%s1 + $0x500] sm:$0xff]
    %v187 = vld [vmem:[%s1 + $0x508] sm:$0xff]
    %v188 = vld [vmem:[%s1 + $0x510] sm:$0xff]
    %v189 = vld [vmem:[%s1 + $0x518] sm:$0xff]
    %v190 = vld [vmem:[%s1 + $0x520] sm:$0xff]
    %v191 = vld [vmem:[%s1 + $0x528] sm:$0xff]
    %v192 = vld [vmem:[%s1 + $0x530] sm:$0xff]
    %v193 = vld [vmem:[%s1 + $0x538] sm:$0xff]
    %v194 = vld [vmem:[%s1 + $0x540] sm:$0xff]
    %v195 = vld [vmem:[%s1 + $0x548] sm:$0xff]
    %v196 = vld [vmem:[%s1 + $0x550] sm:$0xff]
    %v197 = vld [vmem:[%s1 + $0x558] sm:$0xff]
    %v198 = vld [vmem:[%s1 + $0x560] sm:$0xff]
    %v199 = vld [vmem:[%s1 + $0x568] sm:$0xff]
    %v200 = vld [vmem:[%s1 + $0x570] sm:$0xff]
    %v201 = vld [vmem:[%s1 + $0x578] sm:$0xff]
    %v202 = vld [vmem:[%s1 + $0x580] sm:$0xff]
    %v203 = vld [vmem:[%s1 + $0x588] sm:$0xff]
    %v204 = vld [vmem:[%s1 + $0x590] sm:$0xff]
    %v205 = vld [vmem:[%s1 + $0x598] sm:$0xff]
    %v206 = vld [vmem:[%s1 + $0x5a0] sm:$0xff]
    %v207 = vld [vmem:[%s1 + $0x5a8] sm:$0xff]
    %v208 = vld [vmem:[%s1 + $0x5b0] sm:$0xff]
    %v209 = vld [vmem:[%s1 + $0x5b8] sm:$0xff]
    %v210 = vld [vmem:[%s1 + $0x5c0] sm:$0xff]
    %v211 = vld [vmem:[%s1 + $0x5c8] sm:$0xff]
    %v212 = vld [vmem:[%s1 + $0x5d0] sm:$0xff]
    %v213 = vld [vmem:[%s1 + $0x5d8] sm:$0xff]
    %v214 = vld [vmem:[%s1 + $0x5e0] sm:$0xff]
    %v215 = vld [vmem:[%s1 + $0x5e8] sm:$0xff]
    %v216 = vld [vmem:[%s1 + $0x5f0] sm:$0xff]
    %v217 = vld [vmem:[%s1 + $0x5f8] sm:$0xff]
    %v218 = vld [vmem:[%s1 + $0x600] sm:$0xff]
    %v219 = vld [vmem:[%s1 + $0x608] sm:$0xff]
    %v220 = vld [vmem:[%s1 + $0x610] sm:$0xff]
    %v221 = vld [vmem:[%s1 + $0x618] sm:$0xff]
    %v222 = vld [vmem:[%s1 + $0x620] sm:$0xff]
    %v223 = vld [vmem:[%s1 + $0x628] sm:$0xff]
    %v224 = vld [vmem:[%s1 + $0x630] sm:$0xff]
    %v225 = vld [vmem:[%s1 + $0x638] sm:$0xff]
    %v226 = vld [vmem:[%s1 + $0x640] sm:$0xff]
    %v227 = vld [vmem:[%s1 + $0x648] sm:$0xff]
    %v228 = vld [vmem:[%s1 + $0x650] sm:$0xff]
    %v229 = vld [vmem:[%s1 + $0x658] sm:$0xff]
    %v230 = vld [vmem:[%s1 + $0x660] sm:$0xff]
    %v231 = vld [vmem:[%s1 + $0x668] sm:$0xff]
    %v232 = vld [vmem:[%s1 + $0x670] sm:$0xff]
    %v233 = vld [vmem:[%s1 + $0x678] sm:$0xff]
    %v234 = vld [vmem:[%s1 + $0x680] sm:$0xff]
    %v235 = vld [vmem:[%s1 + $0x688] sm:$0xff]
    %v236 = vld [vmem:[%s1 + $0x690] sm:$0xff]
    %v237 = vld [vmem:[%s1 + $0x698] sm:$0xff]
    %v238 = vld [vmem:[%s1 + $0x6a0] sm:$0xff]
    %v239 = vld [vmem:[%s1 + $0x6a8] sm:$0xff]
    %v240 = vld [vmem:[%s1 + $0x6b0] sm:$0xff]
    %v241 = vld [vmem:[%s1 + $0x6b8] sm:$0xff]
    %v242 = vld [vmem:[%s1 + $0x6c0] sm:$0xff]
    %v243 = vld [vmem:[%s1 + $0x6c8] sm:$0xff]
    %v244 = vld [vmem:[%s1 + $0x6d0] sm:$0xff]
    %v245 = vld [vmem:[%s1 + $0x6d8] sm:$0xff]
    %v246 = vld [vmem:[%s1 + $0x6e0] sm:$0xff]
    %v247 = vld [vmem:[%s1 + $0x6e8] sm:$0xff]
    %v248 = vld [vmem:[%s1 + $0x6f0] sm:$0xff]
    %v249 = vld [vmem:[%s1 + $0x6f8] sm:$0xff]
    %v250 = vld [vmem:[%s1 + $0x700] sm:$0xff]
    %v251 = vld [vmem:[%s1 + $0x708] sm:$0xff]
    %v252 = vld [vmem:[%s1 + $0x710] sm:$0xff]
    %v253 = vld [vmem:[%s1 + $0x718] sm:$0xff]
    %v254 = vld [vmem:[%s1 + $0x720] sm:$0xff]
    %v255 = vld [vmem:[%s1 + $0x728] sm:$0xff]
    %v256 = vld [vmem:[%s1 + $0x730] sm:$0xff]
    %v257 = vld [vmem:[%s1 + $0x738] sm:$0xff]
    %v258 = vld [vmem:[%s1 + $0x740] sm:$0xff]
    %v259 = vld [vmem:[%s1 + $0x748] sm:$0xff]
    %v260 = vld [vmem:[%s1 + $0x750] sm:$0xff]
    %v261 = vld [vmem:[%s1 + $0x758] sm:$0xff]
    %v262 = vld [vmem:[%s1 + $0x760] sm:$0xff]
    %v263 = vld [vmem:[%s1 + $0x768] sm:$0xff]
    %v264 = vld [vmem:[%s1 + $0x770] sm:$0xff]
    %v265 = vld [vmem:[%s1 + $0x778] sm:$0xff]
    %v266 = vld [vmem:[%s1 + $0x780] sm:$0xff]
    %v267 = vld [vmem:[%s1 + $0x788] sm:$0xff]
    %v268 = vld [vmem:[%s1 + $0x790] sm:$0xff]
    %v269 = vld [vmem:[%s1 + $0x798] sm:$0xff]
    %v270 = vld [vmem:[%s1 + $0x7a0] sm:$0xff]
    %v271 = vld [vmem:[%s1 + $0x7a8] sm:$0xff]
    %v272 = vld [vmem:[%s1 + $0x7b0] sm:$0xff]
    %v273 = vld [vmem:[%s1 + $0x7b8] sm:$0xff]
    %v274 = vld [vmem:[%s1 + $0x7c0] sm:$0xff]
    %v275 = vld [vmem:[%s1 + $0x7c8] sm:$0xff]
    %v276 = vld [vmem:[%s1 + $0x7d0] sm:$0xff]
    %v277 = vld [vmem:[%s1 + $0x7d8] sm:$0xff]
    %v278 = vld [vmem:[%s1 + $0x7e0] sm:$0xff]
    %v279 = vld [vmem:[%s1 + $0x7e8] sm:$0xff]
    %v280 = vld [vmem:[%s1 + $0x7f0] sm:$0xff]
    %v281 = vld [vmem:[%s1 + $0x7f8] sm:$0xff]
    %v282 = vld [vmem:[%s1 + $0x800] sm:$0xff]
    %v283 = vld [vmem:[%s1 + $0x808] sm:$0xff]
    %v284 = vld [vmem:[%s1 + $0x810] sm:$0xff]
    %v285 = vld [vmem:[%s1 + $0x818] sm:$0xff]
    %v286 = vld [vmem:[%s1 + $0x820] sm:$0xff]
    %v287 = vld [vmem:[%s1 + $0x828] sm:$0xff]
    %v288 = vld [vmem:[%s1 + $0x830] sm:$0xff]
    %v289 = vld [vmem:[%s1 + $0x838] sm:$0xff]
    %v290 = vld [vmem:[%s1 + $0x840] sm:$0xff]
    %v291 = vld [vmem:[%s1 + $0x848] sm:$0xff]
    %v292 = vld [vmem:[%s1 + $0x850] sm:$0xff]
    %v293 = vld [vmem:[%s1 + $0x858] sm:$0xff]
    %v294 = vld [vmem:[%s1 + $0x860] sm:$0xff]
    %v295 = vld [vmem:[%s1 + $0x868] sm:$0xff]
    %v296 = vld [vmem:[%s1 + $0x870] sm:$0xff]
    %v297 = vld [vmem:[%s1 + $0x878] sm:$0xff]
    %v298 = vld [vmem:[%s1 + $0x880] sm:$0xff]
    %v299 = vld [vmem:[%s1 + $0x888] sm:$0xff]
    %v300 = vld [vmem:[%s1 + $0x890] sm:$0xff]
    %v301 = vld [vmem:[%s1 + $0x898] sm:$0xff]
    %v302 = vld [vmem:[%s1 + $0x8a0] sm:$0xff]
    %v303 = vld [vmem:[%s1 + $0x8a8] sm:$0xff]
    %v304 = vld [vmem:[%s1 + $0x8b0] sm:$0xff]
    %v305 = vld [vmem:[%s1 + $0x8b8] sm:$0xff]
    %v306 = vld [vmem:[%s1 + $0x8c0] sm:$0xff]
    %v307 = vld [vmem:[%s1 + $0x8c8] sm:$0xff]
    %v308 = vld [vmem:[%s1 + $0x8d0] sm:$0xff]
    %v309 = vld [vmem:[%s1 + $0x8d8] sm:$0xff]
    %v310 = vld [vmem:[%s1 + $0x8e0] sm:$0xff]
    %v311 = vld [vmem:[%s1 + $0x8e8] sm:$0xff]
    %v312 = vld [vmem:[%s1 + $0x8f0] sm:$0xff]
    %v313 = vld [vmem:[%s1 + $0x8f8] sm:$0xff]
    %v314 = vld [vmem:[%s1 + $0x900] sm:$0xff]
    %v315 = vld [vmem:[%s1 + $0x908] sm:$0xff]
    %v316 = vld [vmem:[%s1 + $0x910] sm:$0xff]
    %v317 = vld [vmem:[%s1 + $0x918] sm:$0xff]
    %v318 = vld [vmem:[%s1 + $0x920] sm:$0xff]
    %v319 = vld [vmem:[%s1 + $0x928] sm:$0xff]
    %v320 = vld [vmem:[%s1 + $0x930] sm:$0xff]
    %v321 = vld [vmem:[%s1 + $0x938] sm:$0xff]
    %v322 = vld [vmem:[%s1 + $0x940] sm:$0xff]
    %v323 = vld [vmem:[%s1 + $0x948] sm:$0xff]
    %v324 = vld [vmem:[%s1 + $0x950] sm:$0xff]
    %v325 = vld [vmem:[%s1 + $0x958] sm:$0xff]
    %v326 = vld [vmem:[%s1 + $0x960] sm:$0xff]
    %v327 = vld [vmem:[%s1 + $0x968] sm:$0xff]
    %v328 = vld [vmem:[%s1 + $0x970] sm:$0xff]
    %v329 = vld [vmem:[%s1 + $0x978] sm:$0xff]
    %v330 = vld [vmem:[%s1 + $0x980] sm:$0xff]
    %v331 = vld [vmem:[%s1 + $0x988] sm:$0xff]
    %v332 = vld [vmem:[%s1 + $0x990] sm:$0xff]
    %v333 = vld [vmem:[%s1 + $0x998] sm:$0xff]
    %v334 = vld [vmem:[%s1 + $0x9a0] sm:$0xff]
    %v335 = vld [vmem:[%s1 + $0x9a8] sm:$0xff]
    %v336 = vld [vmem:[%s1 + $0x9b0] sm:$0xff]
    %v337 = vld [vmem:[%s1 + $0x9b8] sm:$0xff]
    %v338 = vld [vmem:[%s1 + $0x9c0] sm:$0xff]
    %v339 = vld [vmem:[%s1 + $0x9c8] sm:$0xff]
    %v340 = vld [vmem:[%s1 + $0x9d0] sm:$0xff]
    %v341 = vld [vmem:[%s1 + $0x9d8] sm:$0xff]
    %v342 = vld [vmem:[%s1 + $0x9e0] sm:$0xff]
    %v343 = vld [vmem:[%s1 + $0x9e8] sm:$0xff]
    %v344 = vld [vmem:[%s1 + $0x9f0] sm:$0xff]
    %v345 = vld [vmem:[%s1 + $0x9f8] sm:$0xff]
    %v346 = vld [vmem:[%s1 + $0xa00] sm:$0xff]
    %v347 = vld [vmem:[%s1 + $0xa08] sm:$0xff]
    %v348 = vld [vmem:[%s1 + $0xa10] sm:$0xff]
    %v349 = vld [vmem:[%s1 + $0xa18] sm:$0xff]
    %v350 = vld [vmem:[%s1 + $0xa20] sm:$0xff]
    %v351 = vld [vmem:[%s1 + $0xa28] sm:$0xff]
    %v352 = vld [vmem:[%s1 + $0xa30] sm:$0xff]
    %v353 = vld [vmem:[%s1 + $0xa38] sm:$0xff]
    %v354 = vld [vmem:[%s1 + $0xa40] sm:$0xff]
    %v355 = vld [vmem:[%s1 + $0xa48] sm:$0xff]
    %v356 = vld [vmem:[%s1 + $0xa50] sm:$0xff]
    %v357 = vld [vmem:[%s1 + $0xa58] sm:$0xff]
    %v358 = vld [vmem:[%s1 + $0xa60] sm:$0xff]
    %v359 = vld [vmem:[%s1 + $0xa68] sm:$0xff]
    %v360 = vld [vmem:[%s1 + $0xa70] sm:$0xff]
    %v361 = vld [vmem:[%s1 + $0xa78] sm:$0xff]
    %v362 = vld [vmem:[%s1 + $0xa80] sm:$0xff]
    %v363 = vld [vmem:[%s1 + $0xa88] sm:$0xff]
    %v364 = vld [vmem:[%s1 + $0xa90] sm:$0xff]
    %v365 = vld [vmem:[%s1 + $0xa98] sm:$0xff]
    %v366 = vld [vmem:[%s1 + $0xaa0] sm:$0xff]
    %v367 = vld [vmem:[%s1 + $0xaa8] sm:$0xff]
    %v368 = vld [vmem:[%s1 + $0xab0] sm:$0xff]
    %v369 = vld [vmem:[%s1 + $0xab8] sm:$0xff]
    %v370 = vld [vmem:[%s1 + $0xac0] sm:$0xff]
    %v371 = vld [vmem:[%s1 + $0xac8] sm:$0xff]
    %v372 = vld [vmem:[%s1 + $0xad0] sm:$0xff]
    %v373 = vld [vmem:[%s1 + $0xad8] sm:$0xff]
    %v374 = vld [vmem:[%s1 + $0xae0] sm:$0xff]
    %v375 = vld [vmem:[%s1 + $0xae8] sm:$0xff]
    %v376 = vld [vmem:[%s1 + $0xaf0] sm:$0xff]
    %v377 = vld [vmem:[%s1 + $0xaf8] sm:$0xff]
    %v378 = vld [vmem:[%s1 + $0xb00] sm:$0xff]
    %v379 = vld [vmem:[%s1 + $0xb08] sm:$0xff]
    %v380 = vld [vmem:[%s1 + $0xb10] sm:$0xff]
    %v381 = vld [vmem:[%s1 + $0xb18] sm:$0xff]
    %v382 = vld [vmem:[%s1 + $0xb20] sm:$0xff]
    %v383 = vld [vmem:[%s1 + $0xb28] sm:$0xff]
    %v384 = vld [vmem:[%s1 + $0xb30] sm:$0xff]
    %v385 = vld [vmem:[%s1 + $0xb38] sm:$0xff]
    %v386 = vld [vmem:[%s1 + $0xb40] sm:$0xff]
    %v387 = vld [vmem:[%s1 + $0xb48] sm:$0xff]
    %v388 = vld [vmem:[%s1 + $0xb50] sm:$0xff]
    %v389 = vld [vmem:[%s1 + $0xb58] sm:$0xff]
    %v390 = vld [vmem:[%s1 + $0xb60] sm:$0xff]
    %v391 = vld [vmem:[%s1 + $0xb68] sm:$0xff]
    %v392 = vld [vmem:[%s1 + $0xb70] sm:$0xff]
    %v393 = vld [vmem:[%s1 + $0xb78] sm:$0xff]
    %v394 = vld [vmem:[%s1 + $0xb80] sm:$0xff]
    %v395 = vld [vmem:[%s1 + $0xb88] sm:$0xff]
    %v396 = vld [vmem:[%s1 + $0xb90] sm:$0xff]
    %v397 = vld [vmem:[%s1 + $0xb98] sm:$0xff]
    %v398 = vld [vmem:[%s1 + $0xba0] sm:$0xff]
    %v399 = vld [vmem:[%s1 + $0xba8] sm:$0xff]
    %v400 = vld [vmem:[%s1 + $0xbb0] sm:$0xff]
    %v401 = vld [vmem:[%s1 + $0xbb8] sm:$0xff]
    %v402 = vld [vmem:[%s1 + $0xbc0] sm:$0xff]
    %v403 = vld [vmem:[%s1 + $0xbc8] sm:$0xff]
    %v404 = vld [vmem:[%s1 + $0xbd0] sm:$0xff]
    %v405 = vld [vmem:[%s1 + $0xbd8] sm:$0xff]
    %v406 = vld [vmem:[%s1 + $0xbe0] sm:$0xff]
    %v407 = vld [vmem:[%s1 + $0xbe8] sm:$0xff]
    %v408 = vld [vmem:[%s1 + $0xbf0] sm:$0xff]
    %v409 = vld [vmem:[%s1 + $0xbf8] sm:$0xff]
    %v410 = vld [vmem:[%s1 + $0xc00] sm:$0xff]
    %v411 = vld [vmem:[%s1 + $0xc08] sm:$0xff]
    %v412 = vld [vmem:[%s1 + $0xc10] sm:$0xff]
    %v413 = vld [vmem:[%s1 + $0xc18] sm:$0xff]
    %v414 = vld [vmem:[%s1 + $0xc20] sm:$0xff]
    %v415 = vld [vmem:[%s1 + $0xc28] sm:$0xff]
    %v416 = vld [vmem:[%s1 + $0xc30] sm:$0xff]
    %v417 = vld [vmem:[%s1 + $0xc38] sm:$0xff]
    %v418 = vld [vmem:[%s1 + $0xc40] sm:$0xff]
    %v419 = vld [vmem:[%s1 + $0xc48] sm:$0xff]
    %v420 = vld [vmem:[%s1 + $0xc50] sm:$0xff]
    %v421 = vld [vmem:[%s1 + $0xc58] sm:$0xff]
    %v422 = vld [vmem:[%s1 + $0xc60] sm:$0xff]
    %v423 = vld [vmem:[%s1 + $0xc68] sm:$0xff]
    %v424 = vld [vmem:[%s1 + $0xc70] sm:$0xff]
    %v425 = vld [vmem:[%s1 + $0xc78] sm:$0xff]
    %v426 = vld [vmem:[%s1 + $0xc80] sm:$0xff]
    %v427 = vld [vmem:[%s1 + $0xc88] sm:$0xff]
    %v428 = vld [vmem:[%s1 + $0xc90] sm:$0xff]
    %v429 = vld [vmem:[%s1 + $0xc98] sm:$0xff]
    %v430 = vld [vmem:[%s1 + $0xca0] sm:$0xff]
    %v431 = vld [vmem:[%s1 + $0xca8] sm:$0xff]
    %v432 = vld [vmem:[%s1 + $0xcb0] sm:$0xff]
    %v433 = vld [vmem:[%s1 + $0xcb8] sm:$0xff]
    %v434 = vld [vmem:[%s1 + $0xcc0] sm:$0xff]
    %v435 = vld [vmem:[%s1 + $0xcc8] sm:$0xff]
    %v436 = vld [vmem:[%s1 + $0xcd0] sm:$0xff]
    %v437 = vld [vmem:[%s1 + $0xcd8] sm:$0xff]
    %v438 = vld [vmem:[%s1 + $0xce0] sm:$0xff]
    %v439 = vld [vmem:[%s1 + $0xce8] sm:$0xff]
    %v440 = vld [vmem:[%s1 + $0xcf0] sm:$0xff]
    %v441 = vld [vmem:[%s1 + $0xcf8] sm:$0xff]
    %v442 = vld [vmem:[%s1 + $0xd00] sm:$0xff]
    %v443 = vld [vmem:[%s1 + $0xd08] sm:$0xff]
    %v444 = vld [vmem:[%s1 + $0xd10] sm:$0xff]
    %v445 = vld [vmem:[%s1 + $0xd18] sm:$0xff]
    %v446 = vld [vmem:[%s1 + $0xd20] sm:$0xff]
    %v447 = vld [vmem:[%s1 + $0xd28] sm:$0xff]
    %v448 = vld [vmem:[%s1 + $0xd30] sm:$0xff]
    %v449 = vld [vmem:[%s1 + $0xd38] sm:$0xff]
    %v450 = vld [vmem:[%s1 + $0xd40] sm:$0xff]
    %v451 = vld [vmem:[%s1 + $0xd48] sm:$0xff]
    %v452 = vld [vmem:[%s1 + $0xd50] sm:$0xff]
    %v453 = vld [vmem:[%s1 + $0xd58] sm:$0xff]
    %v454 = vld [vmem:[%s1 + $0xd60] sm:$0xff]
    %v455 = vld [vmem:[%s1 + $0xd68] sm:$0xff]
    %v456 = vld [vmem:[%s1 + $0xd70] sm:$0xff]
    %v457 = vld [vmem:[%s1 + $0xd78] sm:$0xff]
    %v458 = vld [vmem:[%s1 + $0xd80] sm:$0xff]
    %v459 = vld [vmem:[%s1 + $0xd88] sm:$0xff]
    %v460 = vld [vmem:[%s1 + $0xd90] sm:$0xff]
    %v461 = vld [vmem:[%s1 + $0xd98] sm:$0xff]
    %v462 = vld [vmem:[%s1 + $0xda0] sm:$0xff]
    %v463 = vld [vmem:[%s1 + $0xda8] sm:$0xff]
    %v464 = vld [vmem:[%s1 + $0xdb0] sm:$0xff]
    %v465 = vld [vmem:[%s1 + $0xdb8] sm:$0xff]
    %v466 = vld [vmem:[%s1 + $0xdc0] sm:$0xff]
    %v467 = vld [vmem:[%s1 + $0xdc8] sm:$0xff]
    %v468 = vld [vmem:[%s1 + $0xdd0] sm:$0xff]
    %v469 = vld [vmem:[%s1 + $0xdd8] sm:$0xff]
    %v470 = vld [vmem:[%s1 + $0xde0] sm:$0xff]
    %v471 = vld [vmem:[%s1 + $0xde8] sm:$0xff]
    %v472 = vld [vmem:[%s1 + $0xdf0] sm:$0xff]
    %v473 = vld [vmem:[%s1 + $0xdf8] sm:$0xff]
    %v474 = vld [vmem:[%s1 + $0xe00] sm:$0xff]
    %v475 = vld [vmem:[%s1 + $0xe08] sm:$0xff]
    %v476 = vld [vmem:[%s1 + $0xe10] sm:$0xff]
    %v477 = vld [vmem:[%s1 + $0xe18] sm:$0xff]
    %v478 = vld [vmem:[%s1 + $0xe20] sm:$0xff]
    %v479 = vld [vmem:[%s1 + $0xe28] sm:$0xff]
    %v480 = vld [vmem:[%s1 + $0xe30] sm:$0xff]
    %v481 = vld [vmem:[%s1 + $0xe38] sm:$0xff]
    %v482 = vld [vmem:[%s1 + $0xe40] sm:$0xff]
    %v483 = vld [vmem:[%s1 + $0xe48] sm:$0xff]
    %v484 = vld [vmem:[%s1 + $0xe50] sm:$0xff]
    %v485 = vld [vmem:[%s1 + $0xe58] sm:$0xff]
    %v486 = vld [vmem:[%s1 + $0xe60] sm:$0xff]
    %v487 = vld [vmem:[%s1 + $0xe68] sm:$0xff]
    %v488 = vld [vmem:[%s1 + $0xe70] sm:$0xff]
    %v489 = vld [vmem:[%s1 + $0xe78] sm:$0xff]
    %v490 = vld [vmem:[%s1 + $0xe80] sm:$0xff]
    %v491 = vld [vmem:[%s1 + $0xe88] sm:$0xff]
    %v492 = vld [vmem:[%s1 + $0xe90] sm:$0xff]
    %v493 = vld [vmem:[%s1 + $0xe98] sm:$0xff]
    %v494 = vld [vmem:[%s1 + $0xea0] sm:$0xff]
    %v495 = vld [vmem:[%s1 + $0xea8] sm:$0xff]
    %v496 = vld [vmem:[%s1 + $0xeb0] sm:$0xff]
    %v497 = vld [vmem:[%s1 + $0xeb8] sm:$0xff]
    %v498 = vld [vmem:[%s1 + $0xec0] sm:$0xff]
    %v499 = vld [vmem:[%s1 + $0xec8] sm:$0xff]
    %v500 = vld [vmem:[%s1 + $0xed0] sm:$0xff]
    %v501 = vld [vmem:[%s1 + $0xed8] sm:$0xff]
    %v502 = vld [vmem:[%s1 + $0xee0] sm:$0xff]
    %v503 = vld [vmem:[%s1 + $0xee8] sm:$0xff]
    %v504 = vld [vmem:[%s1 + $0xef0] sm:$0xff]
    %v505 = vld [vmem:[%s1 + $0xef8] sm:$0xff]
    %v506 = vld [vmem:[%s1 + $0xf00] sm:$0xff]
    %v507 = vld [vmem:[%s1 + $0xf08] sm:$0xff]
    %v508 = vld [vmem:[%s1 + $0xf10] sm:$0xff]
    %v509 = vld [vmem:[%s1 + $0xf18] sm:$0xff]
    %v510 = vld [vmem:[%s1 + $0xf20] sm:$0xff]
    %v511 = vld [vmem:[%s1 + $0xf28] sm:$0xff]
    %v512 = vld [vmem:[%s1 + $0xf30] sm:$0xff]
    %v513 = vld [vmem:[%s1 + $0xf38] sm:$0xff]
    %v514 = vld [vmem:[%s1 + $0xf40] sm:$0xff]
    %v515 = vld [vmem:[%s1 + $0xf48] sm:$0xff]
    %v516 = vld [vmem:[%s1 + $0xf50] sm:$0xff]
    %v517 = vld [vmem:[%s1 + $0xf58] sm:$0xff]
    %v518 = vld [vmem:[%s1 + $0xf60] sm:$0xff]
    %v519 = vld [vmem:[%s1 + $0xf68] sm:$0xff]
    %v520 = vld [vmem:[%s1 + $0xf70] sm:$0xff]
    %v521 = vld [vmem:[%s1 + $0xf78] sm:$0xff]
    %v522 = vld [vmem:[%s1 + $0xf80] sm:$0xff]
    %v523 = vld [vmem:[%s1 + $0xf88] sm:$0xff]
    %v524 = vld [vmem:[%s1 + $0xf90] sm:$0xff]
    %v525 = vld [vmem:[%s1 + $0xf98] sm:$0xff]
    %v526 = vld [vmem:[%s1 + $0xfa0] sm:$0xff]
    %v527 = vld [vmem:[%s1 + $0xfa8] sm:$0xff]
    %v528 = vld [vmem:[%s1 + $0xfb0] sm:$0xff]
    %v529 = vld [vmem:[%s1 + $0xfb8] sm:$0xff]
    %v530 = vld [vmem:[%s1 + $0xfc0] sm:$0xff]
    %v531 = vld [vmem:[%s1 + $0xfc8] sm:$0xff]
    %v532 = vld [vmem:[%s1 + $0xfd0] sm:$0xff]
    %v533 = vld [vmem:[%s1 + $0xfd8] sm:$0xff]
    %v534 = vld [vmem:[%s1 + $0xfe0] sm:$0xff]
    %v535 = vld [vmem:[%s1 + $0xfe8] sm:$0xff]
    %v536 = vld [vmem:[%s1 + $0xff0] sm:$0xff]
    %v537 = vld [vmem:[%s1 + $0xff8] sm:$0xff]
    %v538 = vld [vmem:[%s1 + $0x1000] sm:$0xff]
    %v539 = vld [vmem:[%s1 + $0x1008] sm:$0xff]
    %v540 = vld [vmem:[%s1 + $0x1010] sm:$0xff]
    %v541 = vld [vmem:[%s1 + $0x1018] sm:$0xff]
    %v542 = vld [vmem:[%s1 + $0x1020] sm:$0xff]
    %v543 = vld [vmem:[%s1 + $0x1028] sm:$0xff]
    %v544 = vld [vmem:[%s1 + $0x1030] sm:$0xff]
    %v545 = vld [vmem:[%s1 + $0x1038] sm:$0xff]
    %v546 = vld [vmem:[%s1 + $0x1040] sm:$0xff]
    %v547 = vld [vmem:[%s1 + $0x1048] sm:$0xff]
    %v548 = vld [vmem:[%s1 + $0x1050] sm:$0xff]
    %v549 = vld [vmem:[%s1 + $0x1058] sm:$0xff]
    %v550 = vld [vmem:[%s1 + $0x1060] sm:$0xff]
    %v551 = vld [vmem:[%s1 + $0x1068] sm:$0xff]
    %v552 = vld [vmem:[%s1 + $0x1070] sm:$0xff]
    %v553 = vld [vmem:[%s1 + $0x1078] sm:$0xff]
    %v554 = vld [vmem:[%s1 + $0x1080] sm:$0xff]
    %v555 = vld [vmem:[%s1 + $0x1088] sm:$0xff]
    %v556 = vld [vmem:[%s1 + $0x1090] sm:$0xff]
    %v557 = vld [vmem:[%s1 + $0x1098] sm:$0xff]
    %v558 = vld [vmem:[%s1 + $0x10a0] sm:$0xff]
    %v559 = vld [vmem:[%s1 + $0x10a8] sm:$0xff]
    %v560 = vld [vmem:[%s1 + $0x10b0] sm:$0xff]
    %v561 = vld [vmem:[%s1 + $0x10b8] sm:$0xff]
    %v562 = vld [vmem:[%s1 + $0x10c0] sm:$0xff]
    %v563 = vld [vmem:[%s1 + $0x10c8] sm:$0xff]
    %v564 = vld [vmem:[%s1 + $0x10d0] sm:$0xff]
    %v565 = vld [vmem:[%s1 + $0x10d8] sm:$0xff]
    %v566 = vld [vmem:[%s1 + $0x10e0] sm:$0xff]
    %v567 = vld [vmem:[%s1 + $0x10e8] sm:$0xff]
    %v568 = vld [vmem:[%s1 + $0x10f0] sm:$0xff]
    %v569 = vld [vmem:[%s1 + $0x10f8] sm:$0xff]
    %v570 = vld [vmem:[%s1 + $0x1100] sm:$0xff]
    %v571 = vld [vmem:[%s1 + $0x1108] sm:$0xff]
    %v572 = vld [vmem:[%s1 + $0x1110] sm:$0xff]
    %v573 = vld [vmem:[%s1 + $0x1118] sm:$0xff]
    %v574 = vld [vmem:[%s1 + $0x1120] sm:$0xff]
    %v575 = vld [vmem:[%s1 + $0x1128] sm:$0xff]
    %v576 = vld [vmem:[%s1 + $0x1130] sm:$0xff]
    %v577 = vld [vmem:[%s1 + $0x1138] sm:$0xff]
    %v578 = vld [vmem:[%s1 + $0x1140] sm:$0xff]
    %v579 = vld [vmem:[%s1 + $0x1148] sm:$0xff]
    %v580 = vld [vmem:[%s1 + $0x1150] sm:$0xff]
    %v581 = vld [vmem:[%s1 + $0x1158] sm:$0xff]
    %v582 = vld [vmem:[%s1 + $0x1160] sm:$0xff]
    %v583 = vld [vmem:[%s1 + $0x1168] sm:$0xff]
    %v584 = vld [vmem:[%s1 + $0x1170] sm:$0xff]
    %v585 = vld [vmem:[%s1 + $0x1178] sm:$0xff]
    %v586 = vld [vmem:[%s1 + $0x1180] sm:$0xff]
    %v587 = vld [vmem:[%s1 + $0x1188] sm:$0xff]
    %v588 = vld [vmem:[%s1 + $0x1190] sm:$0xff]
    %v589 = vld [vmem:[%s1 + $0x1198] sm:$0xff]
    %v590 = vld [vmem:[%s1 + $0x11a0] sm:$0xff]
    %v591 = vld [vmem:[%s1 + $0x11a8] sm:$0xff]
    %v592 = vld [vmem:[%s1 + $0x11b0] sm:$0xff]
    %v593 = vld [vmem:[%s1 + $0x11b8] sm:$0xff]
    %v594 = vld [vmem:[%s1 + $0x11c0] sm:$0xff]
    %v595 = vld [vmem:[%s1 + $0x11c8] sm:$0xff]
    %v596 = vld [vmem:[%s1 + $0x11d0] sm:$0xff]
    %v597 = vld [vmem:[%s1 + $0x11d8] sm:$0xff]
    %v598 = vld [vmem:[%s1 + $0x11e0] sm:$0xff]
    %v599 = vld [vmem:[%s1 + $0x11e8] sm:$0xff]
    %v600 = vld [vmem:[%s1 + $0x11f0] sm:$0xff]
    %v601 = vld [vmem:[%s1 + $0x11f8] sm:$0xff]
    %v602 = vld [vmem:[%s1 + $0x1200] sm:$0xff]
    %v603 = vld [vmem:[%s1 + $0x1208] sm:$0xff]
    %v604 = vld [vmem:[%s1 + $0x1210] sm:$0xff]
    %v605 = vld [vmem:[%s1 + $0x1218] sm:$0xff]
    %v606 = vld [vmem:[%s1 + $0x1220] sm:$0xff]
    %v607 = vld [vmem:[%s1 + $0x1228] sm:$0xff]
    %v608 = vld [vmem:[%s1 + $0x1230] sm:$0xff]
    %v609 = vld [vmem:[%s1 + $0x1238] sm:$0xff]
    %v610 = vld [vmem:[%s1 + $0x1240] sm:$0xff]
    %v611 = vld [vmem:[%s1 + $0x1248] sm:$0xff]
    %v612 = vld [vmem:[%s1 + $0x1250] sm:$0xff]
    %v613 = vld [vmem:[%s1 + $0x1258] sm:$0xff]
    %v614 = vld [vmem:[%s1 + $0x1260] sm:$0xff]
    %v615 = vld [vmem:[%s1 + $0x1268] sm:$0xff]
    %v616 = vld [vmem:[%s1 + $0x1270] sm:$0xff]
    %v617 = vld [vmem:[%s1 + $0x1278] sm:$0xff]
    %v618 = vld [vmem:[%s1 + $0x1280] sm:$0xff]
    %v619 = vld [vmem:[%s1 + $0x1288] sm:$0xff]
    %v620 = vld [vmem:[%s1 + $0x1290] sm:$0xff]
    %v621 = vld [vmem:[%s1 + $0x1298] sm:$0xff]
    %v622 = vld [vmem:[%s1 + $0x12a0] sm:$0xff]
    %v623 = vld [vmem:[%s1 + $0x12a8] sm:$0xff]
    %v624 = vld [vmem:[%s1 + $0x12b0] sm:$0xff]
    %v625 = vld [vmem:[%s1 + $0x12b8] sm:$0xff]
    %v626 = vld [vmem:[%s1 + $0x12c0] sm:$0xff]
    %v627 = vld [vmem:[%s1 + $0x12c8] sm:$0xff]
    %v628 = vld [vmem:[%s1 + $0x12d0] sm:$0xff]
    %v629 = vld [vmem:[%s1 + $0x12d8] sm:$0xff]
    %v630 = vld [vmem:[%s1 + $0x12e0] sm:$0xff]
    %v631 = vld [vmem:[%s1 + $0x12e8] sm:$0xff]
    %v632 = vld [vmem:[%s1 + $0x12f0] sm:$0xff]
    %v633 = vld [vmem:[%s1 + $0x12f8] sm:$0xff]
    %v634 = vld [vmem:[%s1 + $0x1300] sm:$0xff]
    %v635 = vld [vmem:[%s1 + $0x1308] sm:$0xff]
    %v636 = vld [vmem:[%s1 + $0x1310] sm:$0xff]
    %v637 = vld [vmem:[%s1 + $0x1318] sm:$0xff]
    %v638 = vld [vmem:[%s1 + $0x1320] sm:$0xff]
    %v639 = vld [vmem:[%s1 + $0x1328] sm:$0xff]
    %v640 = vld [vmem:[%s1 + $0x1330] sm:$0xff]
    %v641 = vld [vmem:[%s1 + $0x1338] sm:$0xff]
    %v642 = vld [vmem:[%s1 + $0x1340] sm:$0xff]
    %v643 = vld [vmem:[%s1 + $0x1348] sm:$0xff]
    %v644 = vld [vmem:[%s1 + $0x1350] sm:$0xff]
    %v645 = vld [vmem:[%s1 + $0x1358] sm:$0xff]
    %v646 = vld [vmem:[%s1 + $0x1360] sm:$0xff]
    %v647 = vld [vmem:[%s1 + $0x1368] sm:$0xff]
    %v648 = vld [vmem:[%s1 + $0x1370] sm:$0xff]
    %v649 = vld [vmem:[%s1 + $0x1378] sm:$0xff]
    %v650 = vld [vmem:[%s1 + $0x1380] sm:$0xff]
    %v651 = vld [vmem:[%s1 + $0x1388] sm:$0xff]
    %v652 = vld [vmem:[%s1 + $0x1390] sm:$0xff]
    %v653 = vld [vmem:[%s1 + $0x1398] sm:$0xff]
    %v654 = vld [vmem:[%s1 + $0x13a0] sm:$0xff]
    %v655 = vld [vmem:[%s1 + $0x13a8] sm:$0xff]
    %v656 = vld [vmem:[%s1 + $0x13b0] sm:$0xff]
    %v657 = vld [vmem:[%s1 + $0x13b8] sm:$0xff]
    %v658 = vld [vmem:[%s1 + $0x13c0] sm:$0xff]
    %v659 = vld [vmem:[%s1 + $0x13c8] sm:$0xff]
    %v660 = vld [vmem:[%s1 + $0x13d0] sm:$0xff]
    %v661 = vld [vmem:[%s1 + $0x13d8] sm:$0xff]
    %v662 = vld [vmem:[%s1 + $0x13e0] sm:$0xff]
    %v663 = vld [vmem:[%s1 + $0x13e8] sm:$0xff]
    %v664 = vld [vmem:[%s1 + $0x13f0] sm:$0xff]
    %v665 = vld [vmem:[%s1 + $0x13f8] sm:$0xff]
    %v666 = vld [vmem:[%s2] sm:$0xf]
    %v668 = vlaneseq
    %v669 = vshrl.u32 %v668, 7
    %v670 = vsub.s32 0, %v669
    %v671 = vrot.slane %v666, %v670
    %v672 = vlaneseq
    %v673 = vshrl.u32 %v672, 7
    %v674 = vsub.s32 1, %v673
    %v675 = vrot.slane %v666, %v674
    %v676 = vlaneseq
    %v677 = vshrl.u32 %v676, 7
    %v678 = vsub.s32 2, %v677
    %v679 = vrot.slane %v666, %v678
    %v680 = vlaneseq
    %v681 = vshrl.u32 %v680, 7
    %v682 = vsub.s32 3, %v681
    %v683 = vrot.slane %v666, %v682
    %v700 = vcombine.low %v14, %v17
    %v701 = vcombine.high %v14, %v17
    %v702 = vcombine.low %v20, %v23
    %v703 = vcombine.high %v20, %v23
    %v705 = vunpack.c.l.s4 1983009808
    %v706 = vunpack.c.0.s8 %v705
    %v707 = vlaneseq
    %v708 = vshrl.u32 %v707, 7
    %v709 = vsub.s32 %v706, %v708
    %v710 = vrot.slane %v700, %v709
    %v712 = vunpack.c.l.s4 1983009808
    %v713 = vunpack.c.0.s8 %v712
    %v714 = vlaneseq
    %v715 = vshrl.u32 %v714, 7
    %v716 = vsub.s32 %v713, %v715
    %v717 = vrot.slane %v701, %v716
    %v719 = vunpack.c.l.s4 1983009808
    %v720 = vunpack.c.0.s8 %v719
    %v721 = vlaneseq
    %v722 = vshrl.u32 %v721, 7
    %v723 = vsub.s32 %v720, %v722
    %v724 = vrot.slane %v702, %v723
    %v726 = vunpack.c.l.s4 1983009808
    %v727 = vunpack.c.0.s8 %v726
    %v728 = vlaneseq
    %v729 = vshrl.u32 %v728, 7
    %v730 = vsub.s32 %v727, %v729
    %v731 = vrot.slane %v703, %v730
    %v732 = vcombine.low %v710, %v724
    %v733 = vcombine.high %v710, %v724
    %v734 = vcombine.low %v717, %v731
    %v735 = vcombine.high %v717, %v731
    %v736 = vcombine.low %v15, %v18
    %v737 = vcombine.high %v15, %v18
    %v738 = vcombine.low %v21, %v24
    %v739 = vcombine.high %v21, %v24
    %v741 = vunpack.c.l.s4 1983009808
    %v742 = vunpack.c.0.s8 %v741
    %v743 = vlaneseq
    %v744 = vshrl.u32 %v743, 7
    %v745 = vsub.s32 %v742, %v744
    %v746 = vrot.slane %v736, %v745
    %v748 = vunpack.c.l.s4 1983009808
    %v749 = vunpack.c.0.s8 %v748
    %v750 = vlaneseq
    %v751 = vshrl.u32 %v750, 7
    %v752 = vsub.s32 %v749, %v751
    %v753 = vrot.slane %v737, %v752
    %v755 = vunpack.c.l.s4 1983009808
    %v756 = vunpack.c.0.s8 %v755
    %v757 = vlaneseq
    %v758 = vshrl.u32 %v757, 7
    %v759 = vsub.s32 %v756, %v758
    %v760 = vrot.slane %v738, %v759
    %v762 = vunpack.c.l.s4 1983009808
    %v763 = vunpack.c.0.s8 %v762
    %v764 = vlaneseq
    %v765 = vshrl.u32 %v764, 7
    %v766 = vsub.s32 %v763, %v765
    %v767 = vrot.slane %v739, %v766
    %v768 = vcombine.low %v746, %v760
    %v769 = vcombine.high %v746, %v760
    %v770 = vcombine.low %v753, %v767
    %v771 = vcombine.high %v753, %v767
    %v772 = vcombine.low %v16, %v19
    %v773 = vcombine.low %v22, %v25
    %v775 = vunpack.c.l.s4 1983009808
    %v776 = vunpack.c.0.s8 %v775
    %v777 = vlaneseq
    %v778 = vshrl.u32 %v777, 7
    %v779 = vsub.s32 %v776, %v778
    %v780 = vrot.slane %v772, %v779
    %v782 = vunpack.c.l.s4 1983009808
    %v783 = vunpack.c.0.s8 %v782
    %v784 = vlaneseq
    %v785 = vshrl.u32 %v784, 7
    %v786 = vsub.s32 %v783, %v785
    %v787 = vrot.slane %v773, %v786
    %v788 = vcombine.low %v780, %v787
    %v789 = vcombine.high %v780, %v787
    %800 = vmatprep.subr.mxu0 %v87
    %801 = vmatpush1.msra.mxu0 %v86
    %802 = vmatprep.subr.mxu0 %v83
    %803 = vmatpush1.msra.mxu0 %v82
    %804 = vmatprep.subr.mxu0 %v79
    %805 = vmatpush1.msra.mxu0 %v78
    %806 = vmatprep.subr.mxu0 %v75
    %807 = vmatpush1.msra.mxu0 %v74
    %808 = vmatprep.subr.mxu0 %v71
    %809 = vmatpush1.msra.mxu0 %v70
    %810 = vmatprep.subr.mxu0 %v67
    %811 = vmatpush1.msra.mxu0 %v66
    %812 = vmatprep.subr.mxu0 %v63
    %813 = vmatpush1.msra.mxu0 %v62
    %814 = vmatprep.subr.mxu0 %v59
    %815 = vmatpush1.msra.mxu0 %v58
    %816 = vmatprep.subr.mxu0 %v55
    %817 = vmatpush1.msra.mxu0 %v54
    %818 = vmatprep.subr.mxu0 %v51
    %819 = vmatpush1.msra.mxu0 %v50
    %820 = vmatprep.subr.mxu0 %v47
    %821 = vmatpush1.msra.mxu0 %v46
    %822 = vmatprep.subr.mxu0 %v43
    %823 = vmatpush1.msra.mxu0 %v42
    %824 = vmatprep.subr.mxu0 %v39
    %825 = vmatpush1.msra.mxu0 %v38
    %826 = vmatprep.subr.mxu0 %v35
    %827 = vmatpush1.msra.mxu0 %v34
    %828 = vmatprep.subr.mxu0 %v31
    %829 = vmatpush1.msra.mxu0 %v30
    %830 = vmatprep.subr.mxu0 %v27
    %831 = vmatpush1.msra.mxu0 %v26
    %832 = vmatprep.subr.mxu0 %v151
    %833 = vmatpush2.msra.mxu0 %v150
    %834 = vmatprep.subr.mxu0 %v147
    %835 = vmatpush2.msra.mxu0 %v146
    %836 = vmatprep.subr.mxu0 %v143
    %837 = vmatpush2.msra.mxu0 %v142
    %838 = vmatprep.subr.mxu0 %v139
    %839 = vmatpush2.msra.mxu0 %v138
    %840 = vmatprep.subr.mxu0 %v135
    %841 = vmatpush2.msra.mxu0 %v134
    %842 = vmatprep.subr.mxu0 %v131
    %843 = vmatpush2.msra.mxu0 %v130
    %844 = vmatprep.subr.mxu0 %v127
    %845 = vmatpush2.msra.mxu0 %v126
    %846 = vmatprep.subr.mxu0 %v123
    %847 = vmatpush2.msra.mxu0 %v122
    %848 = vmatprep.subr.mxu0 %v119
    %849 = vmatpush2.msra.mxu0 %v118
    %850 = vmatprep.subr.mxu0 %v115
    %851 = vmatpush2.msra.mxu0 %v114
    %852 = vmatprep.subr.mxu0 %v111
    %853 = vmatpush2.msra.mxu0 %v110
    %854 = vmatprep.subr.mxu0 %v107
    %855 = vmatpush2.msra.mxu0 %v106
    %856 = vmatprep.subr.mxu0 %v103
    %857 = vmatpush2.msra.mxu0 %v102
    %858 = vmatprep.subr.mxu0 %v99
    %859 = vmatpush2.msra.mxu0 %v98
    %860 = vmatprep.subr.mxu0 %v95
    %861 = vmatpush2.msra.mxu0 %v94
    %862 = vmatprep.subr.mxu0 %v91
    %863 = vmatpush2.msra.mxu0 %v90
    %864 = vmatprep.mubr.f32.mxu0 %v733
    %865 = vmatmul.mubr.f32.gmra.mxu0 %v732
    %v866 = vpop.f32.mrf.mxu0
    %v867 = vadd.f32 %v671, %v866
    %v868 = vpop.f32.mrf.mxu0
    %v869 = vadd.f32 %v675, %v868
    %870 = vdwg.mxu0
    %871 = vmatprep.subr.mxu0 %v215
    %872 = vmatpush1.msra.mxu0 %v214
    %873 = vmatprep.subr.mxu0 %v211
    %874 = vmatpush1.msra.mxu0 %v210
    %875 = vmatprep.subr.mxu0 %v207
    %876 = vmatpush1.msra.mxu0 %v206
    %877 = vmatprep.subr.mxu0 %v203
    %878 = vmatpush1.msra.mxu0 %v202
    %879 = vmatprep.subr.mxu0 %v199
    %880 = vmatpush1.msra.mxu0 %v198
    %881 = vmatprep.subr.mxu0 %v195
    %882 = vmatpush1.msra.mxu0 %v194
    %883 = vmatprep.subr.mxu0 %v191
    %884 = vmatpush1.msra.mxu0 %v190
    %885 = vmatprep.subr.mxu0 %v187
    %886 = vmatpush1.msra.mxu0 %v186
    %887 = vmatprep.subr.mxu0 %v183
    %888 = vmatpush1.msra.mxu0 %v182
    %889 = vmatprep.subr.mxu0 %v179
    %890 = vmatpush1.msra.mxu0 %v178
    %891 = vmatprep.subr.mxu0 %v175
    %892 = vmatpush1.msra.mxu0 %v174
    %893 = vmatprep.subr.mxu0 %v171
    %894 = vmatpush1.msra.mxu0 %v170
    %895 = vmatprep.subr.mxu0 %v167
    %896 = vmatpush1.msra.mxu0 %v166
    %897 = vmatprep.subr.mxu0 %v163
    %898 = vmatpush1.msra.mxu0 %v162
    %899 = vmatprep.subr.mxu0 %v159
    %900 = vmatpush1.msra.mxu0 %v158
    %901 = vmatprep.subr.mxu0 %v155
    %902 = vmatpush1.msra.mxu0 %v154
    %903 = vmatprep.subr.mxu0 %v279
    %904 = vmatpush2.msra.mxu0 %v278
    %905 = vmatprep.subr.mxu0 %v275
    %906 = vmatpush2.msra.mxu0 %v274
    %907 = vmatprep.subr.mxu0 %v271
    %908 = vmatpush2.msra.mxu0 %v270
    %909 = vmatprep.subr.mxu0 %v267
    %910 = vmatpush2.msra.mxu0 %v266
    %911 = vmatprep.subr.mxu0 %v263
    %912 = vmatpush2.msra.mxu0 %v262
    %913 = vmatprep.subr.mxu0 %v259
    %914 = vmatpush2.msra.mxu0 %v258
    %915 = vmatprep.subr.mxu0 %v255
    %916 = vmatpush2.msra.mxu0 %v254
    %917 = vmatprep.subr.mxu0 %v251
    %918 = vmatpush2.msra.mxu0 %v250
    %919 = vmatprep.subr.mxu0 %v247
    %920 = vmatpush2.msra.mxu0 %v246
    %921 = vmatprep.subr.mxu0 %v243
    %922 = vmatpush2.msra.mxu0 %v242
    %923 = vmatprep.subr.mxu0 %v239
    %924 = vmatpush2.msra.mxu0 %v238
    %925 = vmatprep.subr.mxu0 %v235
    %926 = vmatpush2.msra.mxu0 %v234
    %927 = vmatprep.subr.mxu0 %v231
    %928 = vmatpush2.msra.mxu0 %v230
    %929 = vmatprep.subr.mxu0 %v227
    %930 = vmatpush2.msra.mxu0 %v226
    %931 = vmatprep.subr.mxu0 %v223
    %932 = vmatpush2.msra.mxu0 %v222
    %933 = vmatprep.subr.mxu0 %v219
    %934 = vmatpush2.msra.mxu0 %v218
    %935 = vmatprep.mubr.f32.mxu0 %v735
    %936 = vmatmul.mubr.f32.gmra.mxu0 %v734
    %v937 = vpop.f32.mrf.mxu0
    %v938 = vadd.f32 %v867, %v937
    %v939 = vpop.f32.mrf.mxu0
    %v940 = vadd.f32 %v869, %v939
    %941 = vdwg.mxu0
    %942 = vmatprep.subr.mxu0 %v343
    %943 = vmatpush1.msra.mxu0 %v342
    %944 = vmatprep.subr.mxu0 %v339
    %945 = vmatpush1.msra.mxu0 %v338
    %946 = vmatprep.subr.mxu0 %v335
    %947 = vmatpush1.msra.mxu0 %v334
    %948 = vmatprep.subr.mxu0 %v331
    %949 = vmatpush1.msra.mxu0 %v330
    %950 = vmatprep.subr.mxu0 %v327
    %951 = vmatpush1.msra.mxu0 %v326
    %952 = vmatprep.subr.mxu0 %v323
    %953 = vmatpush1.msra.mxu0 %v322
    %954 = vmatprep.subr.mxu0 %v319
    %955 = vmatpush1.msra.mxu0 %v318
    %956 = vmatprep.subr.mxu0 %v315
    %957 = vmatpush1.msra.mxu0 %v314
    %958 = vmatprep.subr.mxu0 %v311
    %959 = vmatpush1.msra.mxu0 %v310
    %960 = vmatprep.subr.mxu0 %v307
    %961 = vmatpush1.msra.mxu0 %v306
    %962 = vmatprep.subr.mxu0 %v303
    %963 = vmatpush1.msra.mxu0 %v302
    %964 = vmatprep.subr.mxu0 %v299
    %965 = vmatpush1.msra.mxu0 %v298
    %966 = vmatprep.subr.mxu0 %v295
    %967 = vmatpush1.msra.mxu0 %v294
    %968 = vmatprep.subr.mxu0 %v291
    %969 = vmatpush1.msra.mxu0 %v290
    %970 = vmatprep.subr.mxu0 %v287
    %971 = vmatpush1.msra.mxu0 %v286
    %972 = vmatprep.subr.mxu0 %v283
    %973 = vmatpush1.msra.mxu0 %v282
    %974 = vmatprep.subr.mxu0 %v407
    %975 = vmatpush2.msra.mxu0 %v406
    %976 = vmatprep.subr.mxu0 %v403
    %977 = vmatpush2.msra.mxu0 %v402
    %978 = vmatprep.subr.mxu0 %v399
    %979 = vmatpush2.msra.mxu0 %v398
    %980 = vmatprep.subr.mxu0 %v395
    %981 = vmatpush2.msra.mxu0 %v394
    %982 = vmatprep.subr.mxu0 %v391
    %983 = vmatpush2.msra.mxu0 %v390
    %984 = vmatprep.subr.mxu0 %v387
    %985 = vmatpush2.msra.mxu0 %v386
    %986 = vmatprep.subr.mxu0 %v383
    %987 = vmatpush2.msra.mxu0 %v382
    %988 = vmatprep.subr.mxu0 %v379
    %989 = vmatpush2.msra.mxu0 %v378
    %990 = vmatprep.subr.mxu0 %v375
    %991 = vmatpush2.msra.mxu0 %v374
    %992 = vmatprep.subr.mxu0 %v371
    %993 = vmatpush2.msra.mxu0 %v370
    %994 = vmatprep.subr.mxu0 %v367
    %995 = vmatpush2.msra.mxu0 %v366
    %996 = vmatprep.subr.mxu0 %v363
    %997 = vmatpush2.msra.mxu0 %v362
    %998 = vmatprep.subr.mxu0 %v359
    %999 = vmatpush2.msra.mxu0 %v358
    %1000 = vmatprep.subr.mxu0 %v355
    %1001 = vmatpush2.msra.mxu0 %v354
    %1002 = vmatprep.subr.mxu0 %v351
    %1003 = vmatpush2.msra.mxu0 %v350
    %1004 = vmatprep.subr.mxu0 %v347
    %1005 = vmatpush2.msra.mxu0 %v346
    %1006 = vmatprep.mubr.f32.mxu0 %v769
    %1007 = vmatmul.mubr.f32.gmra.mxu0 %v768
    %v1008 = vpop.f32.mrf.mxu0
    %v1009 = vadd.f32 %v938, %v1008
    %v1010 = vpop.f32.mrf.mxu0
    %v1011 = vadd.f32 %v940, %v1010
    %1012 = vdwg.mxu0
    %1013 = vmatprep.subr.mxu0 %v471
    %1014 = vmatpush1.msra.mxu0 %v470
    %1015 = vmatprep.subr.mxu0 %v467
    %1016 = vmatpush1.msra.mxu0 %v466
    %1017 = vmatprep.subr.mxu0 %v463
    %1018 = vmatpush1.msra.mxu0 %v462
    %1019 = vmatprep.subr.mxu0 %v459
    %1020 = vmatpush1.msra.mxu0 %v458
    %1021 = vmatprep.subr.mxu0 %v455
    %1022 = vmatpush1.msra.mxu0 %v454
    %1023 = vmatprep.subr.mxu0 %v451
    %1024 = vmatpush1.msra.mxu0 %v450
    %1025 = vmatprep.subr.mxu0 %v447
    %1026 = vmatpush1.msra.mxu0 %v446
    %1027 = vmatprep.subr.mxu0 %v443
    %1028 = vmatpush1.msra.mxu0 %v442
    %1029 = vmatprep.subr.mxu0 %v439
    %1030 = vmatpush1.msra.mxu0 %v438
    %1031 = vmatprep.subr.mxu0 %v435
    %1032 = vmatpush1.msra.mxu0 %v434
    %1033 = vmatprep.subr.mxu0 %v431
    %1034 = vmatpush1.msra.mxu0 %v430
    %1035 = vmatprep.subr.mxu0 %v427
    %1036 = vmatpush1.msra.mxu0 %v426
    %1037 = vmatprep.subr.mxu0 %v423
    %1038 = vmatpush1.msra.mxu0 %v422
    %1039 = vmatprep.subr.mxu0 %v419
    %1040 = vmatpush1.msra.mxu0 %v418
    %1041 = vmatprep.subr.mxu0 %v415
    %1042 = vmatpush1.msra.mxu0 %v414
    %1043 = vmatprep.subr.mxu0 %v411
    %1044 = vmatpush1.msra.mxu0 %v410
    %1045 = vmatprep.subr.mxu0 %v535
    %1046 = vmatpush2.msra.mxu0 %v534
    %1047 = vmatprep.subr.mxu0 %v531
    %1048 = vmatpush2.msra.mxu0 %v530
    %1049 = vmatprep.subr.mxu0 %v527
    %1050 = vmatpush2.msra.mxu0 %v526
    %1051 = vmatprep.subr.mxu0 %v523
    %1052 = vmatpush2.msra.mxu0 %v522
    %1053 = vmatprep.subr.mxu0 %v519
    %1054 = vmatpush2.msra.mxu0 %v518
    %1055 = vmatprep.subr.mxu0 %v515
    %1056 = vmatpush2.msra.mxu0 %v514
    %1057 = vmatprep.subr.mxu0 %v511
    %1058 = vmatpush2.msra.mxu0 %v510
    %1059 = vmatprep.subr.mxu0 %v507
    %1060 = vmatpush2.msra.mxu0 %v506
    %1061 = vmatprep.subr.mxu0 %v503
    %1062 = vmatpush2.msra.mxu0 %v502
    %1063 = vmatprep.subr.mxu0 %v499
    %1064 = vmatpush2.msra.mxu0 %v498
    %1065 = vmatprep.subr.mxu0 %v495
    %1066 = vmatpush2.msra.mxu0 %v494
    %1067 = vmatprep.subr.mxu0 %v491
    %1068 = vmatpush2.msra.mxu0 %v490
    %1069 = vmatprep.subr.mxu0 %v487
    %1070 = vmatpush2.msra.mxu0 %v486
    %1071 = vmatprep.subr.mxu0 %v483
    %1072 = vmatpush2.msra.mxu0 %v482
    %1073 = vmatprep.subr.mxu0 %v479
    %1074 = vmatpush2.msra.mxu0 %v478
    %1075 = vmatprep.subr.mxu0 %v475
    %1076 = vmatpush2.msra.mxu0 %v474
    %1077 = vmatprep.mubr.f32.mxu0 %v771
    %1078 = vmatmul.mubr.f32.gmra.mxu0 %v770
    %v1079 = vpop.f32.mrf.mxu0
    %v1080 = vadd.f32 %v1009, %v1079
    %v1081 = vpop.f32.mrf.mxu0
    %v1082 = vadd.f32 %v1011, %v1081
    %1083 = vdwg.mxu0
    %1084 = vmatprep.subr.mxu0 %v599
    %1085 = vmatpush1.msra.mxu0 %v598
    %1086 = vmatprep.subr.mxu0 %v595
    %1087 = vmatpush1.msra.mxu0 %v594
    %1088 = vmatprep.subr.mxu0 %v591
    %1089 = vmatpush1.msra.mxu0 %v590
    %1090 = vmatprep.subr.mxu0 %v587
    %1091 = vmatpush1.msra.mxu0 %v586
    %1092 = vmatprep.subr.mxu0 %v583
    %1093 = vmatpush1.msra.mxu0 %v582
    %1094 = vmatprep.subr.mxu0 %v579
    %1095 = vmatpush1.msra.mxu0 %v578
    %1096 = vmatprep.subr.mxu0 %v575
    %1097 = vmatpush1.msra.mxu0 %v574
    %1098 = vmatprep.subr.mxu0 %v571
    %1099 = vmatpush1.msra.mxu0 %v570
    %1100 = vmatprep.subr.mxu0 %v567
    %1101 = vmatpush1.msra.mxu0 %v566
    %1102 = vmatprep.subr.mxu0 %v563
    %1103 = vmatpush1.msra.mxu0 %v562
    %1104 = vmatprep.subr.mxu0 %v559
    %1105 = vmatpush1.msra.mxu0 %v558
    %1106 = vmatprep.subr.mxu0 %v555
    %1107 = vmatpush1.msra.mxu0 %v554
    %1108 = vmatprep.subr.mxu0 %v551
    %1109 = vmatpush1.msra.mxu0 %v550
    %1110 = vmatprep.subr.mxu0 %v547
    %1111 = vmatpush1.msra.mxu0 %v546
    %1112 = vmatprep.subr.mxu0 %v543
    %1113 = vmatpush1.msra.mxu0 %v542
    %1114 = vmatprep.subr.mxu0 %v539
    %1115 = vmatpush1.msra.mxu0 %v538
    %1116 = vmatprep.subr.mxu0 %v663
    %1117 = vmatpush2.msra.mxu0 %v662
    %1118 = vmatprep.subr.mxu0 %v659
    %1119 = vmatpush2.msra.mxu0 %v658
    %1120 = vmatprep.subr.mxu0 %v655
    %1121 = vmatpush2.msra.mxu0 %v654
    %1122 = vmatprep.subr.mxu0 %v651
    %1123 = vmatpush2.msra.mxu0 %v650
    %1124 = vmatprep.subr.mxu0 %v647
    %1125 = vmatpush2.msra.mxu0 %v646
    %1126 = vmatprep.subr.mxu0 %v643
    %1127 = vmatpush2.msra.mxu0 %v642
    %1128 = vmatprep.subr.mxu0 %v639
    %1129 = vmatpush2.msra.mxu0 %v638
    %1130 = vmatprep.subr.mxu0 %v635
    %1131 = vmatpush2.msra.mxu0 %v634
    %1132 = vmatprep.subr.mxu0 %v631
    %1133 = vmatpush2.msra.mxu0 %v630
    %1134 = vmatprep.subr.mxu0 %v627
    %1135 = vmatpush2.msra.mxu0 %v626
    %1136 = vmatprep.subr.mxu0 %v623
    %1137 = vmatpush2.msra.mxu0 %v622
    %1138 = vmatprep.subr.mxu0 %v619
    %1139 = vmatpush2.msra.mxu0 %v618
    %1140 = vmatprep.subr.mxu0 %v615
    %1141 = vmatpush2.msra.mxu0 %v614
    %1142 = vmatprep.subr.mxu0 %v611
    %1143 = vmatpush2.msra.mxu0 %v610
    %1144 = vmatprep.subr.mxu0 %v607
    %1145 = vmatpush2.msra.mxu0 %v606
    %1146 = vmatprep.subr.mxu0 %v603
    %1147 = vmatpush2.msra.mxu0 %v602
    %1148 = vmatprep.mubr.f32.mxu0 %v789
    %1149 = vmatmul.mubr.f32.gmra.mxu0 %v788
    %v1150 = vpop.f32.mrf.mxu0
    %v1151 = vadd.f32 %v1080, %v1150
    %v1152 = vpop.f32.mrf.mxu0
    %v1153 = vadd.f32 %v1082, %v1152
    %1154 = vdwg.mxu0
    %1155 = vmatprep.subr.mxu0 %v89
    %1156 = vmatpush1.msra.mxu0 %v88
    %1157 = vmatprep.subr.mxu0 %v85
    %1158 = vmatpush1.msra.mxu0 %v84
    %1159 = vmatprep.subr.mxu0 %v81
    %1160 = vmatpush1.msra.mxu0 %v80
    %1161 = vmatprep.subr.mxu0 %v77
    %1162 = vmatpush1.msra.mxu0 %v76
    %1163 = vmatprep.subr.mxu0 %v73
    %1164 = vmatpush1.msra.mxu0 %v72
    %1165 = vmatprep.subr.mxu0 %v69
    %1166 = vmatpush1.msra.mxu0 %v68
    %1167 = vmatprep.subr.mxu0 %v65
    %1168 = vmatpush1.msra.mxu0 %v64
    %1169 = vmatprep.subr.mxu0 %v61
    %1170 = vmatpush1.msra.mxu0 %v60
    %1171 = vmatprep.subr.mxu0 %v57
    %1172 = vmatpush1.msra.mxu0 %v56
    %1173 = vmatprep.subr.mxu0 %v53
    %1174 = vmatpush1.msra.mxu0 %v52
    %1175 = vmatprep.subr.mxu0 %v49
    %1176 = vmatpush1.msra.mxu0 %v48
    %1177 = vmatprep.subr.mxu0 %v45
    %1178 = vmatpush1.msra.mxu0 %v44
    %1179 = vmatprep.subr.mxu0 %v41
    %1180 = vmatpush1.msra.mxu0 %v40
    %1181 = vmatprep.subr.mxu0 %v37
    %1182 = vmatpush1.msra.mxu0 %v36
    %1183 = vmatprep.subr.mxu0 %v33
    %1184 = vmatpush1.msra.mxu0 %v32
    %1185 = vmatprep.subr.mxu0 %v29
    %1186 = vmatpush1.msra.mxu0 %v28
    %1187 = vmatprep.subr.mxu0 %v153
    %1188 = vmatpush2.msra.mxu0 %v152
    %1189 = vmatprep.subr.mxu0 %v149
    %1190 = vmatpush2.msra.mxu0 %v148
    %1191 = vmatprep.subr.mxu0 %v145
    %1192 = vmatpush2.msra.mxu0 %v144
    %1193 = vmatprep.subr.mxu0 %v141
    %1194 = vmatpush2.msra.mxu0 %v140
    %1195 = vmatprep.subr.mxu0 %v137
    %1196 = vmatpush2.msra.mxu0 %v136
    %1197 = vmatprep.subr.mxu0 %v133
    %1198 = vmatpush2.msra.mxu0 %v132
    %1199 = vmatprep.subr.mxu0 %v129
    %1200 = vmatpush2.msra.mxu0 %v128
    %1201 = vmatprep.subr.mxu0 %v125
    %1202 = vmatpush2.msra.mxu0 %v124
    %1203 = vmatprep.subr.mxu0 %v121
    %1204 = vmatpush2.msra.mxu0 %v120
    %1205 = vmatprep.subr.mxu0 %v117
    %1206 = vmatpush2.msra.mxu0 %v116
    %1207 = vmatprep.subr.mxu0 %v113
    %1208 = vmatpush2.msra.mxu0 %v112
    %1209 = vmatprep.subr.mxu0 %v109
    %1210 = vmatpush2.msra.mxu0 %v108
    %1211 = vmatprep.subr.mxu0 %v105
    %1212 = vmatpush2.msra.mxu0 %v104
    %1213 = vmatprep.subr.mxu0 %v101
    %1214 = vmatpush2.msra.mxu0 %v100
    %1215 = vmatprep.subr.mxu0 %v97
    %1216 = vmatpush2.msra.mxu0 %v96
    %1217 = vmatprep.subr.mxu0 %v93
    %1218 = vmatpush2.msra.mxu0 %v92
    %1219 = vmatprep.mubr.f32.mxu0 %v733
    %1220 = vmatmul.mubr.f32.gmra.mxu0 %v732
    %v1221 = vpop.f32.mrf.mxu0
    %v1222 = vadd.f32 %v679, %v1221
    %v1223 = vpop.f32.mrf.mxu0
    %v1224 = vadd.f32 %v683, %v1223
    %1225 = vdwg.mxu0
    %1226 = vmatprep.subr.mxu0 %v217
    %1227 = vmatpush1.msra.mxu0 %v216
    %1228 = vmatprep.subr.mxu0 %v213
    %1229 = vmatpush1.msra.mxu0 %v212
    %1230 = vmatprep.subr.mxu0 %v209
    %1231 = vmatpush1.msra.mxu0 %v208
    %1232 = vmatprep.subr.mxu0 %v205
    %1233 = vmatpush1.msra.mxu0 %v204
    %1234 = vmatprep.subr.mxu0 %v201
    %1235 = vmatpush1.msra.mxu0 %v200
    %1236 = vmatprep.subr.mxu0 %v197
    %1237 = vmatpush1.msra.mxu0 %v196
    %1238 = vmatprep.subr.mxu0 %v193
    %1239 = vmatpush1.msra.mxu0 %v192
    %1240 = vmatprep.subr.mxu0 %v189
    %1241 = vmatpush1.msra.mxu0 %v188
    %1242 = vmatprep.subr.mxu0 %v185
    %1243 = vmatpush1.msra.mxu0 %v184
    %1244 = vmatprep.subr.mxu0 %v181
    %1245 = vmatpush1.msra.mxu0 %v180
    %1246 = vmatprep.subr.mxu0 %v177
    %1247 = vmatpush1.msra.mxu0 %v176
    %1248 = vmatprep.subr.mxu0 %v173
    %1249 = vmatpush1.msra.mxu0 %v172
    %1250 = vmatprep.subr.mxu0 %v169
    %1251 = vmatpush1.msra.mxu0 %v168
    %1252 = vmatprep.subr.mxu0 %v165
    %1253 = vmatpush1.msra.mxu0 %v164
    %1254 = vmatprep.subr.mxu0 %v161
    %1255 = vmatpush1.msra.mxu0 %v160
    %1256 = vmatprep.subr.mxu0 %v157
    %1257 = vmatpush1.msra.mxu0 %v156
    %1258 = vmatprep.subr.mxu0 %v281
    %1259 = vmatpush2.msra.mxu0 %v280
    %1260 = vmatprep.subr.mxu0 %v277
    %1261 = vmatpush2.msra.mxu0 %v276
    %1262 = vmatprep.subr.mxu0 %v273
    %1263 = vmatpush2.msra.mxu0 %v272
    %1264 = vmatprep.subr.mxu0 %v269
    %1265 = vmatpush2.msra.mxu0 %v268
    %1266 = vmatprep.subr.mxu0 %v265
    %1267 = vmatpush2.msra.mxu0 %v264
    %1268 = vmatprep.subr.mxu0 %v261
    %1269 = vmatpush2.msra.mxu0 %v260
    %1270 = vmatprep.subr.mxu0 %v257
    %1271 = vmatpush2.msra.mxu0 %v256
    %1272 = vmatprep.subr.mxu0 %v253
    %1273 = vmatpush2.msra.mxu0 %v252
    %1274 = vmatprep.subr.mxu0 %v249
    %1275 = vmatpush2.msra.mxu0 %v248
    %1276 = vmatprep.subr.mxu0 %v245
    %1277 = vmatpush2.msra.mxu0 %v244
    %1278 = vmatprep.subr.mxu0 %v241
    %1279 = vmatpush2.msra.mxu0 %v240
    %1280 = vmatprep.subr.mxu0 %v237
    %1281 = vmatpush2.msra.mxu0 %v236
    %1282 = vmatprep.subr.mxu0 %v233
    %1283 = vmatpush2.msra.mxu0 %v232
    %1284 = vmatprep.subr.mxu0 %v229
    %1285 = vmatpush2.msra.mxu0 %v228
    %1286 = vmatprep.subr.mxu0 %v225
    %1287 = vmatpush2.msra.mxu0 %v224
    %1288 = vmatprep.subr.mxu0 %v221
    %1289 = vmatpush2.msra.mxu0 %v220
    %1290 = vmatprep.mubr.f32.mxu0 %v735
    %1291 = vmatmul.mubr.f32.gmra.mxu0 %v734
    %v1292 = vpop.f32.mrf.mxu0
    %v1293 = vadd.f32 %v1222, %v1292
    %v1294 = vpop.f32.mrf.mxu0
    %v1295 = vadd.f32 %v1224, %v1294
    %1296 = vdwg.mxu0
    %1297 = vmatprep.subr.mxu0 %v345
    %1298 = vmatpush1.msra.mxu0 %v344
    %1299 = vmatprep.subr.mxu0 %v341
    %1300 = vmatpush1.msra.mxu0 %v340
    %1301 = vmatprep.subr.mxu0 %v337
    %1302 = vmatpush1.msra.mxu0 %v336
    %1303 = vmatprep.subr.mxu0 %v333
    %1304 = vmatpush1.msra.mxu0 %v332
    %1305 = vmatprep.subr.mxu0 %v329
    %1306 = vmatpush1.msra.mxu0 %v328
    %1307 = vmatprep.subr.mxu0 %v325
    %1308 = vmatpush1.msra.mxu0 %v324
    %1309 = vmatprep.subr.mxu0 %v321
    %1310 = vmatpush1.msra.mxu0 %v320
    %1311 = vmatprep.subr.mxu0 %v317
    %1312 = vmatpush1.msra.mxu0 %v316
    %1313 = vmatprep.subr.mxu0 %v313
    %1314 = vmatpush1.msra.mxu0 %v312
    %1315 = vmatprep.subr.mxu0 %v309
    %1316 = vmatpush1.msra.mxu0 %v308
    %1317 = vmatprep.subr.mxu0 %v305
    %1318 = vmatpush1.msra.mxu0 %v304
    %1319 = vmatprep.subr.mxu0 %v301
    %1320 = vmatpush1.msra.mxu0 %v300
    %1321 = vmatprep.subr.mxu0 %v297
    %1322 = vmatpush1.msra.mxu0 %v296
    %1323 = vmatprep.subr.mxu0 %v293
    %1324 = vmatpush1.msra.mxu0 %v292
    %1325 = vmatprep.subr.mxu0 %v289
    %1326 = vmatpush1.msra.mxu0 %v288
    %1327 = vmatprep.subr.mxu0 %v285
    %1328 = vmatpush1.msra.mxu0 %v284
    %1329 = vmatprep.subr.mxu0 %v409
    %1330 = vmatpush2.msra.mxu0 %v408
    %1331 = vmatprep.subr.mxu0 %v405
    %1332 = vmatpush2.msra.mxu0 %v404
    %1333 = vmatprep.subr.mxu0 %v401
    %1334 = vmatpush2.msra.mxu0 %v400
    %1335 = vmatprep.subr.mxu0 %v397
    %1336 = vmatpush2.msra.mxu0 %v396
    %1337 = vmatprep.subr.mxu0 %v393
    %1338 = vmatpush2.msra.mxu0 %v392
    %1339 = vmatprep.subr.mxu0 %v389
    %1340 = vmatpush2.msra.mxu0 %v388
    %1341 = vmatprep.subr.mxu0 %v385
    %1342 = vmatpush2.msra.mxu0 %v384
    %1343 = vmatprep.subr.mxu0 %v381
    %1344 = vmatpush2.msra.mxu0 %v380
    %1345 = vmatprep.subr.mxu0 %v377
    %1346 = vmatpush2.msra.mxu0 %v376
    %1347 = vmatprep.subr.mxu0 %v373
    %1348 = vmatpush2.msra.mxu0 %v372
    %1349 = vmatprep.subr.mxu0 %v369
    %1350 = vmatpush2.msra.mxu0 %v368
    %1351 = vmatprep.subr.mxu0 %v365
    %1352 = vmatpush2.msra.mxu0 %v364
    %1353 = vmatprep.subr.mxu0 %v361
    %1354 = vmatpush2.msra.mxu0 %v360
    %1355 = vmatprep.subr.mxu0 %v357
    %1356 = vmatpush2.msra.mxu0 %v356
    %1357 = vmatprep.subr.mxu0 %v353
    %1358 = vmatpush2.msra.mxu0 %v352
    %1359 = vmatprep.subr.mxu0 %v349
    %1360 = vmatpush2.msra.mxu0 %v348
    %1361 = vmatprep.mubr.f32.mxu0 %v769
    %1362 = vmatmul.mubr.f32.gmra.mxu0 %v768
    %v1363 = vpop.f32.mrf.mxu0
    %v1364 = vadd.f32 %v1293, %v1363
    %v1365 = vpop.f32.mrf.mxu0
    %v1366 = vadd.f32 %v1295, %v1365
    %1367 = vdwg.mxu0
    %1368 = vmatprep.subr.mxu0 %v473
    %1369 = vmatpush1.msra.mxu0 %v472
    %1370 = vmatprep.subr.mxu0 %v469
    %1371 = vmatpush1.msra.mxu0 %v468
    %1372 = vmatprep.subr.mxu0 %v465
    %1373 = vmatpush1.msra.mxu0 %v464
    %1374 = vmatprep.subr.mxu0 %v461
    %1375 = vmatpush1.msra.mxu0 %v460
    %1376 = vmatprep.subr.mxu0 %v457
    %1377 = vmatpush1.msra.mxu0 %v456
    %1378 = vmatprep.subr.mxu0 %v453
    %1379 = vmatpush1.msra.mxu0 %v452
    %1380 = vmatprep.subr.mxu0 %v449
    %1381 = vmatpush1.msra.mxu0 %v448
    %1382 = vmatprep.subr.mxu0 %v445
    %1383 = vmatpush1.msra.mxu0 %v444
    %1384 = vmatprep.subr.mxu0 %v441
    %1385 = vmatpush1.msra.mxu0 %v440
    %1386 = vmatprep.subr.mxu0 %v437
    %1387 = vmatpush1.msra.mxu0 %v436
    %1388 = vmatprep.subr.mxu0 %v433
    %1389 = vmatpush1.msra.mxu0 %v432
    %1390 = vmatprep.subr.mxu0 %v429
    %1391 = vmatpush1.msra.mxu0 %v428
    %1392 = vmatprep.subr.mxu0 %v425
    %1393 = vmatpush1.msra.mxu0 %v424
    %1394 = vmatprep.subr.mxu0 %v421
    %1395 = vmatpush1.msra.mxu0 %v420
    %1396 = vmatprep.subr.mxu0 %v417
    %1397 = vmatpush1.msra.mxu0 %v416
    %1398 = vmatprep.subr.mxu0 %v413
    %1399 = vmatpush1.msra.mxu0 %v412
    %1400 = vmatprep.subr.mxu0 %v537
    %1401 = vmatpush2.msra.mxu0 %v536
    %1402 = vmatprep.subr.mxu0 %v533
    %1403 = vmatpush2.msra.mxu0 %v532
    %1404 = vmatprep.subr.mxu0 %v529
    %1405 = vmatpush2.msra.mxu0 %v528
    %1406 = vmatprep.subr.mxu0 %v525
    %1407 = vmatpush2.msra.mxu0 %v524
    %1408 = vmatprep.subr.mxu0 %v521
    %1409 = vmatpush2.msra.mxu0 %v520
    %1410 = vmatprep.subr.mxu0 %v517
    %1411 = vmatpush2.msra.mxu0 %v516
    %1412 = vmatprep.subr.mxu0 %v513
    %1413 = vmatpush2.msra.mxu0 %v512
    %1414 = vmatprep.subr.mxu0 %v509
    %1415 = vmatpush2.msra.mxu0 %v508
    %1416 = vmatprep.subr.mxu0 %v505
    %1417 = vmatpush2.msra.mxu0 %v504
    %1418 = vmatprep.subr.mxu0 %v501
    %1419 = vmatpush2.msra.mxu0 %v500
    %1420 = vmatprep.subr.mxu0 %v497
    %1421 = vmatpush2.msra.mxu0 %v496
    %1422 = vmatprep.subr.mxu0 %v493
    %1423 = vmatpush2.msra.mxu0 %v492
    %1424 = vmatprep.subr.mxu0 %v489
    %1425 = vmatpush2.msra.mxu0 %v488
    %1426 = vmatprep.subr.mxu0 %v485
    %1427 = vmatpush2.msra.mxu0 %v484
    %1428 = vmatprep.subr.mxu0 %v481
    %1429 = vmatpush2.msra.mxu0 %v480
    %1430 = vmatprep.subr.mxu0 %v477
    %1431 = vmatpush2.msra.mxu0 %v476
    %1432 = vmatprep.mubr.f32.mxu0 %v771
    %1433 = vmatmul.mubr.f32.gmra.mxu0 %v770
    %v1434 = vpop.f32.mrf.mxu0
    %v1435 = vadd.f32 %v1364, %v1434
    %v1436 = vpop.f32.mrf.mxu0
    %v1437 = vadd.f32 %v1366, %v1436
    %1438 = vdwg.mxu0
    %1439 = vmatprep.subr.mxu0 %v601
    %1440 = vmatpush1.msra.mxu0 %v600
    %1441 = vmatprep.subr.mxu0 %v597
    %1442 = vmatpush1.msra.mxu0 %v596
    %1443 = vmatprep.subr.mxu0 %v593
    %1444 = vmatpush1.msra.mxu0 %v592
    %1445 = vmatprep.subr.mxu0 %v589
    %1446 = vmatpush1.msra.mxu0 %v588
    %1447 = vmatprep.subr.mxu0 %v585
    %1448 = vmatpush1.msra.mxu0 %v584
    %1449 = vmatprep.subr.mxu0 %v581
    %1450 = vmatpush1.msra.mxu0 %v580
    %1451 = vmatprep.subr.mxu0 %v577
    %1452 = vmatpush1.msra.mxu0 %v576
    %1453 = vmatprep.subr.mxu0 %v573
    %1454 = vmatpush1.msra.mxu0 %v572
    %1455 = vmatprep.subr.mxu0 %v569
    %1456 = vmatpush1.msra.mxu0 %v568
    %1457 = vmatprep.subr.mxu0 %v565
    %1458 = vmatpush1.msra.mxu0 %v564
    %1459 = vmatprep.subr.mxu0 %v561
    %1460 = vmatpush1.msra.mxu0 %v560
    %1461 = vmatprep.subr.mxu0 %v557
    %1462 = vmatpush1.msra.mxu0 %v556
    %1463 = vmatprep.subr.mxu0 %v553
    %1464 = vmatpush1.msra.mxu0 %v552
    %1465 = vmatprep.subr.mxu0 %v549
    %1466 = vmatpush1.msra.mxu0 %v548
    %1467 = vmatprep.subr.mxu0 %v545
    %1468 = vmatpush1.msra.mxu0 %v544
    %1469 = vmatprep.subr.mxu0 %v541
    %1470 = vmatpush1.msra.mxu0 %v540
    %1471 = vmatprep.subr.mxu0 %v665
    %1472 = vmatpush2.msra.mxu0 %v664
    %1473 = vmatprep.subr.mxu0 %v661
    %1474 = vmatpush2.msra.mxu0 %v660
    %1475 = vmatprep.subr.mxu0 %v657
    %1476 = vmatpush2.msra.mxu0 %v656
    %1477 = vmatprep.subr.mxu0 %v653
    %1478 = vmatpush2.msra.mxu0 %v652
    %1479 = vmatprep.subr.mxu0 %v649
    %1480 = vmatpush2.msra.mxu0 %v648
    %1481 = vmatprep.subr.mxu0 %v645
    %1482 = vmatpush2.msra.mxu0 %v644
    %1483 = vmatprep.subr.mxu0 %v641
    %1484 = vmatpush2.msra.mxu0 %v640
    %1485 = vmatprep.subr.mxu0 %v637
    %1486 = vmatpush2.msra.mxu0 %v636
    %1487 = vmatprep.subr.mxu0 %v633
    %1488 = vmatpush2.msra.mxu0 %v632
    %1489 = vmatprep.subr.mxu0 %v629
    %1490 = vmatpush2.msra.mxu0 %v628
    %1491 = vmatprep.subr.mxu0 %v625
    %1492 = vmatpush2.msra.mxu0 %v624
    %1493 = vmatprep.subr.mxu0 %v621
    %1494 = vmatpush2.msra.mxu0 %v620
    %1495 = vmatprep.subr.mxu0 %v617
    %1496 = vmatpush2.msra.mxu0 %v616
    %1497 = vmatprep.subr.mxu0 %v613
    %1498 = vmatpush2.msra.mxu0 %v612
    %1499 = vmatprep.subr.mxu0 %v609
    %1500 = vmatpush2.msra.mxu0 %v608
    %1501 = vmatprep.subr.mxu0 %v605
    %1502 = vmatpush2.msra.mxu0 %v604
    %1503 = vmatprep.mubr.f32.mxu0 %v789
    %1504 = vmatmul.mubr.f32.gmra.mxu0 %v788
    %v1505 = vpop.f32.mrf.mxu0
    %v1506 = vadd.f32 %v1435, %v1505
    %v1507 = vpop.f32.mrf.mxu0
    %v1508 = vadd.f32 %v1437, %v1507
    %1509 = vdwg.mxu0
    %v1510 = vmax.f32 %v1151, 0.0
    %v1511 = vmax.f32 %v1153, 0.0
    %v1512 = vmax.f32 %v1506, 0.0
    %v1513 = vmax.f32 %v1508, 0.0
    %v1518 = vcombine.low %v1510, %v1511
    %v1519 = vcombine.high %v1510, %v1511
    %v1520 = vcombine.low %v1512, %v1513
    %v1521 = vcombine.high %v1512, %v1513
    %v1523 = vunpack.c.l.s4 1983009808
    %v1524 = vunpack.c.0.s8 %v1523
    %v1525 = vlaneseq
    %v1526 = vshrl.u32 %v1525, 7
    %v1527 = vsub.s32 %v1524, %v1526
    %v1528 = vrot.slane %v1518, %v1527
    %v1530 = vunpack.c.l.s4 1983009808
    %v1531 = vunpack.c.0.s8 %v1530
    %v1532 = vlaneseq
    %v1533 = vshrl.u32 %v1532, 7
    %v1534 = vsub.s32 %v1531, %v1533
    %v1535 = vrot.slane %v1519, %v1534
    %v1537 = vunpack.c.l.s4 1983009808
    %v1538 = vunpack.c.0.s8 %v1537
    %v1539 = vlaneseq
    %v1540 = vshrl.u32 %v1539, 7
    %v1541 = vsub.s32 %v1538, %v1540
    %v1542 = vrot.slane %v1520, %v1541
    %v1544 = vunpack.c.l.s4 1983009808
    %v1545 = vunpack.c.0.s8 %v1544
    %v1546 = vlaneseq
    %v1547 = vshrl.u32 %v1546, 7
    %v1548 = vsub.s32 %v1545, %v1547
    %v1549 = vrot.slane %v1521, %v1548
    %v1550 = vcombine.low %v1528, %v1542
    %v1551 = vcombine.high %v1528, %v1542
    %v1552 = vcombine.low %v1535, %v1549
    %v1553 = vcombine.high %v1535, %v1549
    %1558 = vst [vmem:[#allocation2] sm:$0xff] %v1550
    %1559 = vst [vmem:[#allocation2 + $0x8] sm:$0xff] %v1551
    %1560 = vst [vmem:[#allocation2 + $0x10] sm:$0xff] %v1552
    %1561 = vst [vmem:[#allocation2 + $0x18] sm:$0xff] %v1553
    // Predicated region
    $region14: #{net_forward.10} parent=1 // pred_check
      _
    $region15: #{net_forward.10} parent=1 // pred_check_branch
      %1563 = sbr.rel (0) target = $region17
    $region16: #{net_forward.10} parent=1 // pred_region
      // Predicated region
      $region18: #{net_forward.10} parent=16 // pred_check
        _
      $region19: #{net_forward.10} parent=16 // pred_check_branch
        %1565 = sbr.rel (0) target = $region21
      $region20: #{net_forward.10} parent=16 // pred_region
        // Predicated region
        $region22: #{net_forward.10} parent=20 // pred_check
          _
        $region23: #{net_forward.10} parent=20 // pred_check_branch
          %1567 = sbr.rel (0) target = $region25
        $region24: #{net_forward.10} parent=20 // pred_region
          // Predicated region
          $region37: #{net_forward.10} parent=24 // pred_check
            _
          $region38: #{net_forward.10} parent=24 // pred_check_branch
            %1583 = sbr.rel (0) target = $region40
          $region39: #{net_forward.10} parent=24 // pred_region
            loop: start=0, step=1, limit=1
            $region41: #{net_forward.10} parent=39 // loop_pre_header
              _
            $region42: #{net_forward.10} parent=39 // loop_header
              %s1585 = sphi 0, %s1589
              %p1586 = scmp.ge.s32.totalorder %s1585, 1
              %s1590 = sphi [#allocation2], [#allocation2]
              %s1591 = sphi %s3, %s3
            $region43: #{net_forward.10} parent=39 // loop_header_branch
              %1588 = sbr.rel (%p1586) target = $region47
            $region44: #{net_forward.10} parent=39 // loop_body
              %v1592 = vld [vmem:[%s1590] sm:$0xff]
              %1593 = vst [vmem:[%s1591] sm:$0xff] %v1592
            $region45: #{net_forward.10} parent=39 // loop_footer
              %s1589 = sadd.s32 1, %s1585
            $region46: #{net_forward.10} parent=39 // loop_footer_branch
              %1584 = sbr.rel target = $region42
            $region47: #{net_forward.10} parent=39 // loop_exit
              _
          $region40: #{net_forward.10} parent=24 // pred_fallthru
            _
          // Predicated region
          $region48: #{net_forward.10} parent=24 // pred_check
            _
          $region49: #{net_forward.10} parent=24 // pred_check_branch
            %1595 = sbr.rel target = $region51
          $region50: #{net_forward.10} parent=24 // pred_region
            _
          $region51: #{net_forward.10} parent=24 // pred_fallthru
            _
        $region25: #{net_forward.10} parent=20 // pred_fallthru
          _
        // Predicated region
        $region26: #{net_forward.10} parent=20 // pred_check
          _
        $region27: #{net_forward.10} parent=20 // pred_check_branch
          %1569 = sbr.rel target = $region29
        $region28: #{net_forward.10} parent=20 // pred_region
          %s1571 = ssub.s32 256, 1
          loop: start=0, step=1, limit=1
          $region30: #{net_forward.10} parent=28 // loop_pre_header
            _
          $region31: #{net_forward.10} parent=28 // loop_header
            %s1573 = sphi 0, %s1577
            %p1574 = scmp.ge.s32.totalorder %s1573, 1
            %s1578 = sphi [#allocation2], [#allocation2]
            %s1579 = sphi %s3, %s3
          $region32: #{net_forward.10} parent=28 // loop_header_branch
            %1576 = sbr.rel (%p1574) target = $region36
          $region33: #{net_forward.10} parent=28 // loop_body
            %v1580 = vld [vmem:[%s1578] sm:%s1571]
            %1581 = vst [vmem:[%s1579] sm:%s1571] %v1580
          $region34: #{net_forward.10} parent=28 // loop_footer
            %s1577 = sadd.s32 1, %s1573
          $region35: #{net_forward.10} parent=28 // loop_footer_branch
            %1572 = sbr.rel target = $region31
          $region36: #{net_forward.10} parent=28 // loop_exit
            _
        $region29: #{net_forward.10} parent=20 // pred_fallthru
          _
      $region21: #{net_forward.10} parent=16 // pred_fallthru
        _
      %1596 = vnop
    $region17: #{net_forward.10} parent=1 // pred_fallthru
      _
    // Predicated region
    $region52: #{net_forward.10} parent=1 // pred_check
      _
    $region53: #{net_forward.10} parent=1 // pred_check_branch
      %1598 = sbr.rel (0) target = $region55
    $region54: #{net_forward.10} parent=1 // pred_region
      _
    $region55: #{net_forward.10} parent=1 // pred_fallthru
      _

// kernel: net_forward.11
$region0: #{net_forward.11}
  #allocation0 [shape = 'u32[]', space=smem, size = 0x4, offset = 0x4, fixed_abs, tag = 'smem constant byte address 0x4 - core index']
  #allocation1 [shape = 'u32[144,128]{1,0:T(1,128)}', space=vmem, size = 0x12000, scoped, tag = 'internal scratch']
  %s0 = inlined_call_operand.vmem [shape: f32[2,512], index: 0, kind: input, shape index: {}]
  %s1 = inlined_call_operand.vmem [shape: f32[512,128], index: 1, kind: input, shape index: {}]
  %s2 = inlined_call_operand.vmem [shape: f32[1,128], index: 2, kind: input, shape index: {}]
  %s3 = inlined_call_operand.hbm [shape: f32[2,128], index: 3, kind: output, shape index: {}]
  %s4 = sld [smem:[#allocation0]]
  $region22: #{net_forward.11} parent=0
    _
  %s6 = ssub.s32 1, %s4
  %s7 = scalar_select 0, %s6, %s4
  $region1: #{net_forward.11} parent=0
    #allocation2 [shape = 'u8[4096]{0}', space=vmem, size = 0x1000, scoped, tag = 'output window, operand 0, single buffered']
    #allocation3 [shape = 's32[1]{0}', space=sflag, size = 0x4, scoped, tag = 'scoped memory for net_forward.11']
    %8 = vsyncpa [#allocation3], 0
    // Predicated region
    $region2: #{net_forward.11} parent=1 // pred_check
      _
    $region3: #{net_forward.11} parent=1 // pred_check_branch
      %10 = sbr.rel (0) target = $region5
    $region4: #{net_forward.11} parent=1 // pred_region
      _
    $region5: #{net_forward.11} parent=1 // pred_fallthru
      _
    // Predicated region
    $region6: #{net_forward.11} parent=1 // pred_check
      _
    $region7: #{net_forward.11} parent=1 // pred_check_branch
      %12 = sbr.rel (0) target = $region9
    $region8: #{net_forward.11} parent=1 // pred_region
      _
    $region9: #{net_forward.11} parent=1 // pred_fallthru
      _
    // Predicated region
    $region10: #{net_forward.11} parent=1 // pred_check
      _
    $region11: #{net_forward.11} parent=1 // pred_check_branch
      %14 = sbr.rel (0) target = $region13
    $region12: #{net_forward.11} parent=1 // pred_region
      _
    $region13: #{net_forward.11} parent=1 // pred_fallthru
      _
    %v15 = vld [vmem:[%s0] sm:$0xff]
    %v16 = vld [vmem:[%s0 + $0x8] sm:$0xff]
    %v17 = vld [vmem:[%s0 + $0x10] sm:$0xff]
    %v18 = vld [vmem:[%s0 + $0x18] sm:$0xff]
    %v19 = vld [vmem:[%s1] sm:$0xff]
    %v20 = vld [vmem:[%s1 + $0x8] sm:$0xff]
    %v21 = vld [vmem:[%s1 + $0x10] sm:$0xff]
    %v22 = vld [vmem:[%s1 + $0x18] sm:$0xff]
    %v23 = vld [vmem:[%s1 + $0x20] sm:$0xff]
    %v24 = vld [vmem:[%s1 + $0x28] sm:$0xff]
    %v25 = vld [vmem:[%s1 + $0x30] sm:$0xff]
    %v26 = vld [vmem:[%s1 + $0x38] sm:$0xff]
    %v27 = vld [vmem:[%s1 + $0x40] sm:$0xff]
    %v28 = vld [vmem:[%s1 + $0x48] sm:$0xff]
    %v29 = vld [vmem:[%s1 + $0x50] sm:$0xff]
    %v30 = vld [vmem:[%s1 + $0x58] sm:$0xff]
    %v31 = vld [vmem:[%s1 + $0x60] sm:$0xff]
    %v32 = vld [vmem:[%s1 + $0x68] sm:$0xff]
    %v33 = vld [vmem:[%s1 + $0x70] sm:$0xff]
    %v34 = vld [vmem:[%s1 + $0x78] sm:$0xff]
    %v35 = vld [vmem:[%s1 + $0x80] sm:$0xff]
    %v36 = vld [vmem:[%s1 + $0x88] sm:$0xff]
    %v37 = vld [vmem:[%s1 + $0x90] sm:$0xff]
    %v38 = vld [vmem:[%s1 + $0x98] sm:$0xff]
    %v39 = vld [vmem:[%s1 + $0xa0] sm:$0xff]
    %v40 = vld [vmem:[%s1 + $0xa8] sm:$0xff]
    %v41 = vld [vmem:[%s1 + $0xb0] sm:$0xff]
    %v42 = vld [vmem:[%s1 + $0xb8] sm:$0xff]
    %v43 = vld [vmem:[%s1 + $0xc0] sm:$0xff]
    %v44 = vld [vmem:[%s1 + $0xc8] sm:$0xff]
    %v45 = vld [vmem:[%s1 + $0xd0] sm:$0xff]
    %v46 = vld [vmem:[%s1 + $0xd8] sm:$0xff]
    %v47 = vld [vmem:[%s1 + $0xe0] sm:$0xff]
    %v48 = vld [vmem:[%s1 + $0xe8] sm:$0xff]
    %v49 = vld [vmem:[%s1 + $0xf0] sm:$0xff]
    %v50 = vld [vmem:[%s1 + $0xf8] sm:$0xff]
    %v51 = vld [vmem:[%s1 + $0x100] sm:$0xff]
    %v52 = vld [vmem:[%s1 + $0x108] sm:$0xff]
    %v53 = vld [vmem:[%s1 + $0x110] sm:$0xff]
    %v54 = vld [vmem:[%s1 + $0x118] sm:$0xff]
    %v55 = vld [vmem:[%s1 + $0x120] sm:$0xff]
    %v56 = vld [vmem:[%s1 + $0x128] sm:$0xff]
    %v57 = vld [vmem:[%s1 + $0x130] sm:$0xff]
    %v58 = vld [vmem:[%s1 + $0x138] sm:$0xff]
    %v59 = vld [vmem:[%s1 + $0x140] sm:$0xff]
    %v60 = vld [vmem:[%s1 + $0x148] sm:$0xff]
    %v61 = vld [vmem:[%s1 + $0x150] sm:$0xff]
    %v62 = vld [vmem:[%s1 + $0x158] sm:$0xff]
    %v63 = vld [vmem:[%s1 + $0x160] sm:$0xff]
    %v64 = vld [vmem:[%s1 + $0x168] sm:$0xff]
    %v65 = vld [vmem:[%s1 + $0x170] sm:$0xff]
    %v66 = vld [vmem:[%s1 + $0x178] sm:$0xff]
    %v67 = vld [vmem:[%s1 + $0x180] sm:$0xff]
    %v68 = vld [vmem:[%s1 + $0x188] sm:$0xff]
    %v69 = vld [vmem:[%s1 + $0x190] sm:$0xff]
    %v70 = vld [vmem:[%s1 + $0x198] sm:$0xff]
    %v71 = vld [vmem:[%s1 + $0x1a0] sm:$0xff]
    %v72 = vld [vmem:[%s1 + $0x1a8] sm:$0xff]
    %v73 = vld [vmem:[%s1 + $0x1b0] sm:$0xff]
    %v74 = vld [vmem:[%s1 + $0x1b8] sm:$0xff]
    %v75 = vld [vmem:[%s1 + $0x1c0] sm:$0xff]
    %v76 = vld [vmem:[%s1 + $0x1c8] sm:$0xff]
    %v77 = vld [vmem:[%s1 + $0x1d0] sm:$0xff]
    %v78 = vld [vmem:[%s1 + $0x1d8] sm:$0xff]
    %v79 = vld [vmem:[%s1 + $0x1e0] sm:$0xff]
    %v80 = vld [vmem:[%s1 + $0x1e8] sm:$0xff]
    %v81 = vld [vmem:[%s1 + $0x1f0] sm:$0xff]
    %v82 = vld [vmem:[%s1 + $0x1f8] sm:$0xff]
    %v83 = vld [vmem:[%s2] sm:$0x1]
    %v85 = vlaneseq
    %v86 = vshrl.u32 %v85, 7
    %v87 = vsub.s32 0, %v86
    %v88 = vrot.slane %v83, %v87
    %v94 = vcombine.low %v15, %v16
    %v95 = vcombine.high %v15, %v16
    %v96 = vcombine.low %v17, %v18
    %v97 = vcombine.high %v17, %v18
    %v99 = vunpack.c.l.s4 1983009808
    %v100 = vunpack.c.0.s8 %v99
    %v101 = vlaneseq
    %v102 = vshrl.u32 %v101, 7
    %v103 = vsub.s32 %v100, %v102
    %v104 = vrot.slane %v94, %v103
    %v106 = vunpack.c.l.s4 1983009808
    %v107 = vunpack.c.0.s8 %v106
    %v108 = vlaneseq
    %v109 = vshrl.u32 %v108, 7
    %v110 = vsub.s32 %v107, %v109
    %v111 = vrot.slane %v95, %v110
    %v113 = vunpack.c.l.s4 1983009808
    %v114 = vunpack.c.0.s8 %v113
    %v115 = vlaneseq
    %v116 = vshrl.u32 %v115, 7
    %v117 = vsub.s32 %v114, %v116
    %v118 = vrot.slane %v96, %v117
    %v120 = vunpack.c.l.s4 1983009808
    %v121 = vunpack.c.0.s8 %v120
    %v122 = vlaneseq
    %v123 = vshrl.u32 %v122, 7
    %v124 = vsub.s32 %v121, %v123
    %v125 = vrot.slane %v97, %v124
    %v126 = vcombine.low %v104, %v118
    %v127 = vcombine.high %v104, %v118
    %v128 = vcombine.low %v111, %v125
    %v129 = vcombine.high %v111, %v125
    %134 = vmatprep.subr.mxu0 0.0
    %135 = vmatpush1.msra.mxu0 %v34
    %136 = vmatprep.subr.mxu0 0.0
    %137 = vmatpush1.msra.mxu0 %v33
    %138 = vmatprep.subr.mxu0 0.0
    %139 = vmatpush1.msra.mxu0 %v32
    %140 = vmatprep.subr.mxu0 0.0
    %141 = vmatpush1.msra.mxu0 %v31
    %142 = vmatprep.subr.mxu0 0.0
    %143 = vmatpush1.msra.mxu0 %v30
    %144 = vmatprep.subr.mxu0 0.0
    %145 = vmatpush1.msra.mxu0 %v29
    %146 = vmatprep.subr.mxu0 0.0
    %147 = vmatpush1.msra.mxu0 %v28
    %148 = vmatprep.subr.mxu0 0.0
    %149 = vmatpush1.msra.mxu0 %v27
    %150 = vmatprep.subr.mxu0 0.0
    %151 = vmatpush1.msra.mxu0 %v26
    %152 = vmatprep.subr.mxu0 0.0
    %153 = vmatpush1.msra.mxu0 %v25
    %154 = vmatprep.subr.mxu0 0.0
    %155 = vmatpush1.msra.mxu0 %v24
    %156 = vmatprep.subr.mxu0 0.0
    %157 = vmatpush1.msra.mxu0 %v23
    %158 = vmatprep.subr.mxu0 0.0
    %159 = vmatpush1.msra.mxu0 %v22
    %160 = vmatprep.subr.mxu0 0.0
    %161 = vmatpush1.msra.mxu0 %v21
    %162 = vmatprep.subr.mxu0 0.0
    %163 = vmatpush1.msra.mxu0 %v20
    %164 = vmatprep.subr.mxu0 0.0
    %165 = vmatpush1.msra.mxu0 %v19
    %166 = vmatprep.subr.mxu0 0.0
    %167 = vmatpush2.msra.mxu0 %v50
    %168 = vmatprep.subr.mxu0 0.0
    %169 = vmatpush2.msra.mxu0 %v49
    %170 = vmatprep.subr.mxu0 0.0
    %171 = vmatpush2.msra.mxu0 %v48
    %172 = vmatprep.subr.mxu0 0.0
    %173 = vmatpush2.msra.mxu0 %v47
    %174 = vmatprep.subr.mxu0 0.0
    %175 = vmatpush2.msra.mxu0 %v46
    %176 = vmatprep.subr.mxu0 0.0
    %177 = vmatpush2.msra.mxu0 %v45
    %178 = vmatprep.subr.mxu0 0.0
    %179 = vmatpush2.msra.mxu0 %v44
    %180 = vmatprep.subr.mxu0 0.0
    %181 = vmatpush2.msra.mxu0 %v43
    %182 = vmatprep.subr.mxu0 0.0
    %183 = vmatpush2.msra.mxu0 %v42
    %184 = vmatprep.subr.mxu0 0.0
    %185 = vmatpush2.msra.mxu0 %v41
    %186 = vmatprep.subr.mxu0 0.0
    %187 = vmatpush2.msra.mxu0 %v40
    %188 = vmatprep.subr.mxu0 0.0
    %189 = vmatpush2.msra.mxu0 %v39
    %190 = vmatprep.subr.mxu0 0.0
    %191 = vmatpush2.msra.mxu0 %v38
    %192 = vmatprep.subr.mxu0 0.0
    %193 = vmatpush2.msra.mxu0 %v37
    %194 = vmatprep.subr.mxu0 0.0
    %195 = vmatpush2.msra.mxu0 %v36
    %196 = vmatprep.subr.mxu0 0.0
    %197 = vmatpush2.msra.mxu0 %v35
    %198 = vmatprep.mubr.f32.mxu0 %v127
    %199 = vmatmul.mubr.f32.gmra.mxu0 %v126
    %v200 = vpop.f32.mrf.mxu0
    %v201 = vadd.f32 %v88, %v200
    %v202 = vpop.f32.mrf.mxu0
    %203 = vdwg.mxu0
    %204 = vmatprep.subr.mxu0 0.0
    %205 = vmatpush1.msra.mxu0 %v66
    %206 = vmatprep.subr.mxu0 0.0
    %207 = vmatpush1.msra.mxu0 %v65
    %208 = vmatprep.subr.mxu0 0.0
    %209 = vmatpush1.msra.mxu0 %v64
    %210 = vmatprep.subr.mxu0 0.0
    %211 = vmatpush1.msra.mxu0 %v63
    %212 = vmatprep.subr.mxu0 0.0
    %213 = vmatpush1.msra.mxu0 %v62
    %214 = vmatprep.subr.mxu0 0.0
    %215 = vmatpush1.msra.mxu0 %v61
    %216 = vmatprep.subr.mxu0 0.0
    %217 = vmatpush1.msra.mxu0 %v60
    %218 = vmatprep.subr.mxu0 0.0
    %219 = vmatpush1.msra.mxu0 %v59
    %220 = vmatprep.subr.mxu0 0.0
    %221 = vmatpush1.msra.mxu0 %v58
    %222 = vmatprep.subr.mxu0 0.0
    %223 = vmatpush1.msra.mxu0 %v57
    %224 = vmatprep.subr.mxu0 0.0
    %225 = vmatpush1.msra.mxu0 %v56
    %226 = vmatprep.subr.mxu0 0.0
    %227 = vmatpush1.msra.mxu0 %v55
    %228 = vmatprep.subr.mxu0 0.0
    %229 = vmatpush1.msra.mxu0 %v54
    %230 = vmatprep.subr.mxu0 0.0
    %231 = vmatpush1.msra.mxu0 %v53
    %232 = vmatprep.subr.mxu0 0.0
    %233 = vmatpush1.msra.mxu0 %v52
    %234 = vmatprep.subr.mxu0 0.0
    %235 = vmatpush1.msra.mxu0 %v51
    %236 = vmatprep.subr.mxu0 0.0
    %237 = vmatpush2.msra.mxu0 %v82
    %238 = vmatprep.subr.mxu0 0.0
    %239 = vmatpush2.msra.mxu0 %v81
    %240 = vmatprep.subr.mxu0 0.0
    %241 = vmatpush2.msra.mxu0 %v80
    %242 = vmatprep.subr.mxu0 0.0
    %243 = vmatpush2.msra.mxu0 %v79
    %244 = vmatprep.subr.mxu0 0.0
    %245 = vmatpush2.msra.mxu0 %v78
    %246 = vmatprep.subr.mxu0 0.0
    %247 = vmatpush2.msra.mxu0 %v77
    %248 = vmatprep.subr.mxu0 0.0
    %249 = vmatpush2.msra.mxu0 %v76
    %250 = vmatprep.subr.mxu0 0.0
    %251 = vmatpush2.msra.mxu0 %v75
    %252 = vmatprep.subr.mxu0 0.0
    %253 = vmatpush2.msra.mxu0 %v74
    %254 = vmatprep.subr.mxu0 0.0
    %255 = vmatpush2.msra.mxu0 %v73
    %256 = vmatprep.subr.mxu0 0.0
    %257 = vmatpush2.msra.mxu0 %v72
    %258 = vmatprep.subr.mxu0 0.0
    %259 = vmatpush2.msra.mxu0 %v71
    %260 = vmatprep.subr.mxu0 0.0
    %261 = vmatpush2.msra.mxu0 %v70
    %262 = vmatprep.subr.mxu0 0.0
    %263 = vmatpush2.msra.mxu0 %v69
    %264 = vmatprep.subr.mxu0 0.0
    %265 = vmatpush2.msra.mxu0 %v68
    %266 = vmatprep.subr.mxu0 0.0
    %267 = vmatpush2.msra.mxu0 %v67
    %268 = vmatprep.mubr.f32.mxu0 %v129
    %269 = vmatmul.mubr.f32.gmra.mxu0 %v128
    %v270 = vpop.f32.mrf.mxu0
    %v271 = vadd.f32 %v201, %v270
    %v272 = vpop.f32.mrf.mxu0
    %273 = vdwg.mxu0
    %v274 = vlaneseq
    %v275 = vand.u32 %v274, 127
    %vm276 = vcmp.lt.s32.totalorder %v275, 10
    %v277 = vsel %vm276, %v271, -1e+30
    %278 = vmax.xlane.f32.xlu0 %v277
    %v279 = vpop.xlane.xlu0 %278
    %v280 = vsub.f32 %v277, %v279
    %v281 = vmul.f32 %v280, 1.442695
    %v282 = vpow.pop %v281
    %v283 = vsel %vm276, %v282, 0.0
    %284 = vadd.xlane.f32.xlu0 %v283
    %v285 = vpop.xlane.xlu0 %284
    %v286 = vlog2.pop %v285
    %v287 = vmul.f32 %v286, 0.6931472
    %v288 = vadd.f32 %v279, %v287
    %v289 = vsub.f32 %v271, %v288
    %290 = vst [vmem:[#allocation2] sm:$0xff] %v289
    // Predicated region
    $region14: #{net_forward.11} parent=1 // pred_check
      _
    $region15: #{net_forward.11} parent=1 // pred_check_branch
      %292 = sbr.rel (0) target = $region17
    $region16: #{net_forward.11} parent=1 // pred_region
      %s294 = ssub.s32 128, 32
      %295 = vsyncadd [#allocation3], %s294
      %s296 = sshll.u32 [#allocation2], 4
      %s297 = int_to_ptr.vmem [resolvable:$true] %s296
      %302 = dma.vmem_to_hbm [thread:$0]  %s297, 32, %s3, [#allocation3], 32, 32, 2
    $region17: #{net_forward.11} parent=1 // pred_fallthru
      _
    // Predicated region
    $region18: #{net_forward.11} parent=1 // pred_check
      _
    $region19: #{net_forward.11} parent=1 // pred_check_branch
      %304 = sbr.rel (0) target = $region21
    $region20: #{net_forward.11} parent=1 // pred_region
      %305 = dma.done [#allocation3], 128
    $region21: #{net_forward.11} parent=1 // pred_fallthru
      _
    %306 = vsyncpa [#allocation3], 1

</llo_original>
